<compile_context>
chip_gen: v7x
topology: tpu7x:2x2x1
jax: 0.10.0
libtpu: 0.0.40
codegen_flags: <defaults>
</compile_context>

<pallas_src>
import functools

import jax
import jax.numpy as jnp
from jax.experimental import pallas as pl
from jax.experimental.pallas import tpu as pltpu


# --------------------------------------------------------------------------
# Fused forward kernel.
# Layer-0 "wide" gate layout over 8H lanes: [I(2H) | F(2H) | O(2H) | G(2H)],
# each 2H group = [fwd(H) | rev(H)]. State h01/c01 layout: [h_fwd(H) | h_rev(H)].
# Layer-1 gate layout over 8H lanes: [fwd i|f|o|g (4H) | rev i|f|o|g (4H)].
# --------------------------------------------------------------------------
def _fused_forward_kernel(x2_ref, w02_ref, b0_ref, whh0_ref,
                          wih1_ref, b1_ref, whh1f_ref,
                          w1a_ref, w1b_ref, bm1_ref, w2_ref, bm2_ref,
                          o_ref, x1_buf, *, T, B, H):
    f32 = jnp.float32
    H2, H3, H4, H6 = 2 * H, 3 * H, 4 * H, 6 * H
    H8 = 8 * H

    # ---- layer 0: ONE matmul covers fwd+rev input->gate projections + biases.
    gx0 = jnp.dot(x2_ref[...], w02_ref[...], preferred_element_type=f32) + b0_ref[...]
    whh0 = whh0_ref[...]                                   # (2H, 8H) block-diagonal

    h01 = jnp.zeros((B, H2), f32)                          # [h_fwd | h_rev]
    c01 = jnp.zeros((B, H2), f32)

    # Static unroll over time (T small & static at trace time). Iteration s
    # advances forward time t = s and reverse time t = T-1-s simultaneously.
    for s in range(T):
        g = gx0[s * B:(s + 1) * B, :] + jnp.dot(h01, whh0,
                                                preferred_element_type=f32)
        sg = jax.nn.sigmoid(g[:, :H6])                     # i | f | o contiguous
        gg = jnp.tanh(g[:, H6:])                           # g
        c01 = sg[:, H2:H4] * c01 + sg[:, :H2] * gg
        h01 = sg[:, H4:H6] * jnp.tanh(c01)
        # lane ranges of source and destination coincide -> plain masked stores
        x1_buf[s * B:(s + 1) * B, 0:H] = h01[:, 0:H]               # fwd @ time s
        x1_buf[(T - 1 - s) * B:(T - s) * B, H:H2] = h01[:, H:H2]   # rev @ time T-1-s

    # TODO(synk): inter-layer LSTM dropout (p=0.1) is training-only; eval no-op.

    # ---- layer 1: fwd + rev input->gate projections in ONE batched matmul.
    gx1 = jnp.dot(x1_buf[...], wih1_ref[...], preferred_element_type=f32) + b1_ref[...]

    # layer-1 forward recurrence: only the final hidden is needed.
    whh1f = whh1f_ref[...]                                 # (H, 4H), gates [i|f|o|g]
    h1 = jnp.zeros((B, H), f32)
    c1 = jnp.zeros((B, H), f32)
    for s in range(T):
        g = gx1[s * B:(s + 1) * B, 0:H4] + jnp.dot(h1, whh1f,
                                                   preferred_element_type=f32)
        sg = jax.nn.sigmoid(g[:, :H3])                     # i | f | o
        gg = jnp.tanh(g[:, H3:H4])                         # g
        c1 = sg[:, H:H2] * c1 + sg[:, :H] * gg
        h1 = sg[:, H2:H3] * jnp.tanh(c1)

    # layer-1 reverse hidden at original index T-1 == one LSTM step from zero
    # state (f-gate / Whh / c_prev terms vanish); its input projection already
    # sits in gx1's upper 4H lanes of the last row block.
    gr = gx1[(T - 1) * B:T * B, H4:H8]
    h1r = jax.nn.sigmoid(gr[:, H2:H3]) * jnp.tanh(
        jax.nn.sigmoid(gr[:, 0:H]) * jnp.tanh(gr[:, H3:H4]))

    # ---- MLP head: Linear(2H,1024) -> ReLU -> [Dropout eval no-op] -> Linear(1024,O)
    # split-K matmuls instead of a lane-axis concat of [h1 | h1r].
    z = (jnp.dot(h1, w1a_ref[...], preferred_element_type=f32)
         + jnp.dot(h1r, w1b_ref[...], preferred_element_type=f32)
         + bm1_ref[...])
    z = jnp.maximum(z, 0.0)
    o_ref[...] = jnp.dot(z, w2_ref[...], preferred_element_type=f32) + bm2_ref[...]


# --------------------------------------------------------------------------
# Host-side weight re-layout (plain XLA ops, executed once per call).
# --------------------------------------------------------------------------
_GATE_PERM = (0, 1, 3, 2)   # PyTorch gate order [i f g o] -> kernel order [i f o g]


def _reorder_gates(w_t, H):
    """(rows, 4H) gate-major [i f g o] -> [i f o g]."""
    rows = w_t.shape[0]
    return w_t.reshape(rows, 4, H)[:, _GATE_PERM, :].reshape(rows, 4 * H)


def _spread_gates(w_t, d_idx, H):
    """(rows, 4H) [i f g o] -> (rows, 8H) wide layout
    [i_f i_r | f_f f_r | o_f o_r | g_f g_r]; the other direction's lanes are 0."""
    rows = w_t.shape[0]
    g = w_t.reshape(rows, 4, H)[:, _GATE_PERM, :]
    wide = jnp.zeros((rows, 4, 2, H), w_t.dtype)
    wide = wide.at[:, :, d_idx, :].set(g)
    return wide.reshape(rows, 8 * H)


def my_lstm_di_seqlen_forward(seq, last, params):
    """seq: (B, T, input_size) float32, batch-first (like nn.LSTM batch_first=True).
    `last` is unused, exactly as in the PyTorch module's forward."""
    del last
    B, T, D = seq.shape
    wih0f_t, whh0f_t, b0f = params["l0f"]
    wih0r_t, whh0r_t, b0r = params["l0r"]
    wih1f_t, whh1f_t, b1f = params["l1f"]
    wih1r_t, _whh1r_t, b1r = params["l1r"]   # layer-1 reverse Whh not needed (single step, zero state)
    H = whh0f_t.shape[0]
    O = params["w2"].shape[1]

    # time-major flattened rows (row t*B + b == seq[b, t, :]) + time-flipped copy,
    # stacked along the feature axis so one matmul does fwd + rev projections.
    x_tbd = jnp.transpose(seq, (1, 0, 2)).astype(jnp.float32)           # (T, B, D)
    x2 = jnp.concatenate([x_tbd.reshape(T * B, D),
                          x_tbd[::-1].reshape(T * B, D)], axis=1)       # (T*B, 2D)

    # layer-0 combined weights (gate order [i|f|o|g], fwd/rev lanes per gate).
    w02 = jnp.concatenate([_spread_gates(wih0f_t, 0, H),
                           _spread_gates(wih0r_t, 1, H)], axis=0)       # (2D, 8H)
    b0 = _spread_gates(b0f, 0, H) + _spread_gates(b0r, 1, H)            # (1, 8H)
    whh0_bd = jnp.concatenate([_spread_gates(whh0f_t, 0, H),
                               _spread_gates(whh0r_t, 1, H)], axis=0)   # (2H, 8H)

    # layer-1: fold fwd + rev input projections into one (2H, 8H) weight.
    wih1_both = jnp.concatenate([_reorder_gates(wih1f_t, H),
                                 _reorder_gates(wih1r_t, H)], axis=1)   # (2H, 8H)
    b1_both = jnp.concatenate([_reorder_gates(b1f, H),
                               _reorder_gates(b1r, H)], axis=1)         # (1, 8H)
    whh1f_r = _reorder_gates(whh1f_t, H)                                # (H, 4H)

    # MLP first layer split along K (matches [h1_fwd | h1_rev] halves).
    w1a, w1b = params["w1"][:H], params["w1"][H:]

    kernel = functools.partial(_fused_forward_kernel, T=T, B=B, H=H)
    return pl.pallas_call(
        kernel,
        out_shape=jax.ShapeDtypeStruct((B, O), jnp.float32),
        scratch_shapes=[pltpu.VMEM((T * B, 2 * H), jnp.float32)],  # x1 sequence buffer
    )(x2, w02, b0, whh0_bd,
      wih1_both, b1_both, whh1f_r,
      w1a, w1b, params["b1"], params["w2"], params["b2"])


# --------------------------------------------------------------------------
# Deterministic parameter init (PyTorch-style uniform ranges). Synthetic.
# --------------------------------------------------------------------------
def init_params(key, input_size, hidden_size, output_size, mlp_hidden=1024):
    H = hidden_size
    k_lstm = 1.0 / jnp.sqrt(H)

    def lstm_dir(key, in_dim):
        k1, k2, k3, k4 = jax.random.split(key, 4)
        wih = jax.random.uniform(k1, (4 * H, in_dim), jnp.float32, -k_lstm, k_lstm)
        whh = jax.random.uniform(k2, (4 * H, H), jnp.float32, -k_lstm, k_lstm)
        bih = jax.random.uniform(k3, (4 * H,), jnp.float32, -k_lstm, k_lstm)
        bhh = jax.random.uniform(k4, (4 * H,), jnp.float32, -k_lstm, k_lstm)
        # canonical layout: (in_features, 4H) and combined bias (1, 4H), gates [i f g o]
        return (wih.T, whh.T, (bih + bhh)[None, :])

    keys = jax.random.split(key, 8)
    params = {
        "l0f": lstm_dir(keys[0], input_size),
        "l0r": lstm_dir(keys[1], input_size),
        "l1f": lstm_dir(keys[2], 2 * H),
        "l1r": lstm_dir(keys[3], 2 * H),
    }
    k1 = 1.0 / jnp.sqrt(2 * H)
    params["w1"] = jax.random.uniform(keys[4], (2 * H, mlp_hidden), jnp.float32, -k1, k1)
    params["b1"] = jax.random.uniform(keys[5], (1, mlp_hidden), jnp.float32, -k1, k1)
    k2 = 1.0 / jnp.sqrt(mlp_hidden)
    params["w2"] = jax.random.uniform(keys[6], (mlp_hidden, output_size), jnp.float32, -k2, k2)
    params["b2"] = jax.random.uniform(keys[7], (1, output_size), jnp.float32, -k2, k2)
    return params


# --------------------------------------------------------------------------
# Pure-JAX reference for validation (full 2-layer bidirectional scan + MLP).
# --------------------------------------------------------------------------
def _ref_lstm_dir(x_tbd, wih_t, whh_t, b, reverse):
    T, B, _ = x_tbd.shape
    H = whh_t.shape[0]
    xs = x_tbd[::-1] if reverse else x_tbd

    def step(carry, x):
        h, c = carry
        gates = x @ wih_t + h @ whh_t + b
        i = jax.nn.sigmoid(gates[:, 0 * H:1 * H])
        f = jax.nn.sigmoid(gates[:, 1 * H:2 * H])
        g = jnp.tanh(gates[:, 2 * H:3 * H])
        o = jax.nn.sigmoid(gates[:, 3 * H:4 * H])
        c = f * c + i * g
        h = o * jnp.tanh(c)
        return (h, c), h

    init = (jnp.zeros((B, H), jnp.float32), jnp.zeros((B, H), jnp.float32))
    _, hs = jax.lax.scan(step, init, xs)
    return hs[::-1] if reverse else hs


def reference_forward(seq, params):
    x = jnp.transpose(seq, (1, 0, 2)).astype(jnp.float32)
    h0f = _ref_lstm_dir(x, *params["l0f"], reverse=False)
    h0r = _ref_lstm_dir(x, *params["l0r"], reverse=True)
    x1 = jnp.concatenate([h0f, h0r], axis=-1)
    h1f = _ref_lstm_dir(x1, *params["l1f"], reverse=False)
    h1r = _ref_lstm_dir(x1, *params["l1r"], reverse=True)
    out_last = jnp.concatenate([h1f[-1], h1r[-1]], axis=-1)
    h = jnp.maximum(out_last @ params["w1"] + params["b1"], 0.0)
    return h @ params["w2"] + params["b2"]


if __name__ == "__main__":
    B, T, INPUT, HIDDEN, OUTPUT = 2, 8, 4, 32, 4

    key = jax.random.PRNGKey(0)
    k_seq, k_last, k_params = jax.random.split(key, 3)

    seq = jax.random.normal(k_seq, (B, T, INPUT), jnp.float32)
    last = jax.random.normal(k_last, (B, INPUT), jnp.float32)   # unused by forward
    params = init_params(k_params, INPUT, HIDDEN, OUTPUT)

    out = my_lstm_di_seqlen_forward(seq, last, params)
    out = jax.block_until_ready(out)
    assert out.shape == (B, OUTPUT), out.shape

    ref = reference_forward(seq, params)
    assert jnp.allclose(out, ref, atol=1e-4, rtol=1e-4), (
        float(jnp.max(jnp.abs(out - ref))))

    print("KERNEL_OK")
</pallas_src>

<mosaic_0001>
module attributes {stable_mosaic.version = 11 : i64} {
  func.func @_fused_forward_kernel(%arg0: memref<16x8xf32, #tpu.memory_space<vmem>>, %arg1: memref<8x256xf32, #tpu.memory_space<vmem>>, %arg2: memref<1x256xf32, #tpu.memory_space<vmem>>, %arg3: memref<64x256xf32, #tpu.memory_space<vmem>>, %arg4: memref<64x256xf32, #tpu.memory_space<vmem>>, %arg5: memref<1x256xf32, #tpu.memory_space<vmem>>, %arg6: memref<32x128xf32, #tpu.memory_space<vmem>>, %arg7: memref<32x1024xf32, #tpu.memory_space<vmem>>, %arg8: memref<32x1024xf32, #tpu.memory_space<vmem>>, %arg9: memref<1x1024xf32, #tpu.memory_space<vmem>>, %arg10: memref<1024x4xf32, #tpu.memory_space<vmem>>, %arg11: memref<1x4xf32, #tpu.memory_space<vmem>>, %arg12: memref<2x4xf32, #tpu.memory_space<vmem>>, %arg13: memref<16x64xf32, #tpu.memory_space<vmem>>) attributes {dimension_semantics = [], scalar_prefetch = 0 : i64, scratch_operands = 1 : i64, tpu.core_type = #tpu.core_type<tc>} {
    %c0 = arith.constant 0 : index
    %c0_0 = arith.constant 0 : index
    %0 = vector.load %arg0[%c0, %c0_0] : memref<16x8xf32, #tpu.memory_space<vmem>>, vector<16x8xf32>
    %c0_1 = arith.constant 0 : index
    %c0_2 = arith.constant 0 : index
    %1 = vector.load %arg1[%c0_1, %c0_2] : memref<8x256xf32, #tpu.memory_space<vmem>>, vector<8x256xf32>
    %cst = arith.constant dense<0.000000e+00> : vector<16x256xf32>
    %2 = tpu.matmul %0, %1, %cst {dimension_numbers = #tpu.dot_dimension_numbers<[1], [0], [0], [1], [0, 0, 1, 1], [], []>} : vector<16x8xf32>, vector<8x256xf32>, vector<16x256xf32> -> vector<16x256xf32>
    %c0_3 = arith.constant 0 : index
    %c0_4 = arith.constant 0 : index
    %3 = vector.load %arg2[%c0_3, %c0_4] : memref<1x256xf32, #tpu.memory_space<vmem>>, vector<1x256xf32>
    %4 = vector.broadcast %3 : vector<1x256xf32> to vector<16x256xf32>
    %5 = arith.addf %2, %4 : vector<16x256xf32>
    %c0_5 = arith.constant 0 : index
    %c0_6 = arith.constant 0 : index
    %6 = vector.load %arg3[%c0_5, %c0_6] : memref<64x256xf32, #tpu.memory_space<vmem>>, vector<64x256xf32>
    %cst_7 = arith.constant 0.000000e+00 : f32
    %7 = vector.broadcast %cst_7 : f32 to vector<2x64xf32>
    %cst_8 = arith.constant 0.000000e+00 : f32
    %8 = vector.broadcast %cst_8 : f32 to vector<2x64xf32>
    %9 = vector.extract_strided_slice %5 {offsets = [0, 0], sizes = [2, 256], strides = [1, 1]} : vector<16x256xf32> to vector<2x256xf32>
    %cst_9 = arith.constant dense<0.000000e+00> : vector<2x256xf32>
    %10 = tpu.matmul %7, %6, %cst_9 {dimension_numbers = #tpu.dot_dimension_numbers<[1], [0], [0], [1], [0, 0, 1, 1], [], []>} : vector<2x64xf32>, vector<64x256xf32>, vector<2x256xf32> -> vector<2x256xf32>
    %11 = arith.addf %9, %10 : vector<2x256xf32>
    %12 = vector.extract_strided_slice %11 {offsets = [0, 0], sizes = [2, 192], strides = [1, 1]} : vector<2x256xf32> to vector<2x192xf32>
    %13 = arith.negf %12 : vector<2x192xf32>
    %14 = math.exp %13 : vector<2x192xf32>
    %cst_10 = arith.constant 1.000000e+00 : f32
    %15 = vector.broadcast %cst_10 : f32 to vector<2x192xf32>
    %16 = arith.addf %15, %14 : vector<2x192xf32>
    %17 = arith.divf %15, %16 : vector<2x192xf32>
    %18 = vector.extract_strided_slice %11 {offsets = [0, 192], sizes = [2, 64], strides = [1, 1]} : vector<2x256xf32> to vector<2x64xf32>
    %19 = math.tanh %18 : vector<2x64xf32>
    %20 = vector.extract_strided_slice %17 {offsets = [0, 64], sizes = [2, 64], strides = [1, 1]} : vector<2x192xf32> to vector<2x64xf32>
    %21 = arith.mulf %20, %8 : vector<2x64xf32>
    %22 = vector.extract_strided_slice %17 {offsets = [0, 0], sizes = [2, 64], strides = [1, 1]} : vector<2x192xf32> to vector<2x64xf32>
    %23 = arith.mulf %22, %19 : vector<2x64xf32>
    %24 = arith.addf %21, %23 : vector<2x64xf32>
    %25 = vector.extract_strided_slice %17 {offsets = [0, 128], sizes = [2, 64], strides = [1, 1]} : vector<2x192xf32> to vector<2x64xf32>
    %26 = math.tanh %24 : vector<2x64xf32>
    %27 = arith.mulf %25, %26 : vector<2x64xf32>
    %28 = vector.extract_strided_slice %27 {offsets = [0, 0], sizes = [2, 32], strides = [1, 1]} : vector<2x64xf32> to vector<2x32xf32>
    %c0_11 = arith.constant 0 : index
    %c0_12 = arith.constant 0 : index
    %29 = vector.load %arg13[%c0_11, %c0_12] : memref<16x64xf32, #tpu.memory_space<vmem>>, vector<2x32xf32>
    tpu.vector_store %arg13[%c0_11, %c0_12], %28 {strides = array<i32>} : memref<16x64xf32, #tpu.memory_space<vmem>>, vector<2x32xf32>,
    %30 = vector.extract_strided_slice %27 {offsets = [0, 32], sizes = [2, 32], strides = [1, 1]} : vector<2x64xf32> to vector<2x32xf32>
    %c14 = arith.constant 14 : index
    %c32 = arith.constant 32 : index
    %31 = vector.load %arg13[%c14, %c32] : memref<16x64xf32, #tpu.memory_space<vmem>>, vector<2x32xf32>
    tpu.vector_store %arg13[%c14, %c32], %30 {strides = array<i32>} : memref<16x64xf32, #tpu.memory_space<vmem>>, vector<2x32xf32>,
    %32 = vector.extract_strided_slice %5 {offsets = [2, 0], sizes = [2, 256], strides = [1, 1]} : vector<16x256xf32> to vector<2x256xf32>
    %cst_13 = arith.constant dense<0.000000e+00> : vector<2x256xf32>
    %33 = tpu.matmul %27, %6, %cst_13 {dimension_numbers = #tpu.dot_dimension_numbers<[1], [0], [0], [1], [0, 0, 1, 1], [], []>} : vector<2x64xf32>, vector<64x256xf32>, vector<2x256xf32> -> vector<2x256xf32>
    %34 = arith.addf %32, %33 : vector<2x256xf32>
    %35 = vector.extract_strided_slice %34 {offsets = [0, 0], sizes = [2, 192], strides = [1, 1]} : vector<2x256xf32> to vector<2x192xf32>
    %36 = arith.negf %35 : vector<2x192xf32>
    %37 = math.exp %36 : vector<2x192xf32>
    %cst_14 = arith.constant 1.000000e+00 : f32
    %38 = vector.broadcast %cst_14 : f32 to vector<2x192xf32>
    %39 = arith.addf %38, %37 : vector<2x192xf32>
    %40 = arith.divf %38, %39 : vector<2x192xf32>
    %41 = vector.extract_strided_slice %34 {offsets = [0, 192], sizes = [2, 64], strides = [1, 1]} : vector<2x256xf32> to vector<2x64xf32>
    %42 = math.tanh %41 : vector<2x64xf32>
    %43 = vector.extract_strided_slice %40 {offsets = [0, 64], sizes = [2, 64], strides = [1, 1]} : vector<2x192xf32> to vector<2x64xf32>
    %44 = arith.mulf %43, %24 : vector<2x64xf32>
    %45 = vector.extract_strided_slice %40 {offsets = [0, 0], sizes = [2, 64], strides = [1, 1]} : vector<2x192xf32> to vector<2x64xf32>
    %46 = arith.mulf %45, %42 : vector<2x64xf32>
    %47 = arith.addf %44, %46 : vector<2x64xf32>
    %48 = vector.extract_strided_slice %40 {offsets = [0, 128], sizes = [2, 64], strides = [1, 1]} : vector<2x192xf32> to vector<2x64xf32>
    %49 = math.tanh %47 : vector<2x64xf32>
    %50 = arith.mulf %48, %49 : vector<2x64xf32>
    %51 = vector.extract_strided_slice %50 {offsets = [0, 0], sizes = [2, 32], strides = [1, 1]} : vector<2x64xf32> to vector<2x32xf32>
    %c2 = arith.constant 2 : index
    %c0_15 = arith.constant 0 : index
    %52 = vector.load %arg13[%c2, %c0_15] : memref<16x64xf32, #tpu.memory_space<vmem>>, vector<2x32xf32>
    tpu.vector_store %arg13[%c2, %c0_15], %51 {strides = array<i32>} : memref<16x64xf32, #tpu.memory_space<vmem>>, vector<2x32xf32>,
    %53 = vector.extract_strided_slice %50 {offsets = [0, 32], sizes = [2, 32], strides = [1, 1]} : vector<2x64xf32> to vector<2x32xf32>
    %c12 = arith.constant 12 : index
    %c32_16 = arith.constant 32 : index
    %54 = vector.load %arg13[%c12, %c32_16] : memref<16x64xf32, #tpu.memory_space<vmem>>, vector<2x32xf32>
    tpu.vector_store %arg13[%c12, %c32_16], %53 {strides = array<i32>} : memref<16x64xf32, #tpu.memory_space<vmem>>, vector<2x32xf32>,
    %55 = vector.extract_strided_slice %5 {offsets = [4, 0], sizes = [2, 256], strides = [1, 1]} : vector<16x256xf32> to vector<2x256xf32>
    %cst_17 = arith.constant dense<0.000000e+00> : vector<2x256xf32>
    %56 = tpu.matmul %50, %6, %cst_17 {dimension_numbers = #tpu.dot_dimension_numbers<[1], [0], [0], [1], [0, 0, 1, 1], [], []>} : vector<2x64xf32>, vector<64x256xf32>, vector<2x256xf32> -> vector<2x256xf32>
    %57 = arith.addf %55, %56 : vector<2x256xf32>
    %58 = vector.extract_strided_slice %57 {offsets = [0, 0], sizes = [2, 192], strides = [1, 1]} : vector<2x256xf32> to vector<2x192xf32>
    %59 = arith.negf %58 : vector<2x192xf32>
    %60 = math.exp %59 : vector<2x192xf32>
    %cst_18 = arith.constant 1.000000e+00 : f32
    %61 = vector.broadcast %cst_18 : f32 to vector<2x192xf32>
    %62 = arith.addf %61, %60 : vector<2x192xf32>
    %63 = arith.divf %61, %62 : vector<2x192xf32>
    %64 = vector.extract_strided_slice %57 {offsets = [0, 192], sizes = [2, 64], strides = [1, 1]} : vector<2x256xf32> to vector<2x64xf32>
    %65 = math.tanh %64 : vector<2x64xf32>
    %66 = vector.extract_strided_slice %63 {offsets = [0, 64], sizes = [2, 64], strides = [1, 1]} : vector<2x192xf32> to vector<2x64xf32>
    %67 = arith.mulf %66, %47 : vector<2x64xf32>
    %68 = vector.extract_strided_slice %63 {offsets = [0, 0], sizes = [2, 64], strides = [1, 1]} : vector<2x192xf32> to vector<2x64xf32>
    %69 = arith.mulf %68, %65 : vector<2x64xf32>
    %70 = arith.addf %67, %69 : vector<2x64xf32>
    %71 = vector.extract_strided_slice %63 {offsets = [0, 128], sizes = [2, 64], strides = [1, 1]} : vector<2x192xf32> to vector<2x64xf32>
    %72 = math.tanh %70 : vector<2x64xf32>
    %73 = arith.mulf %71, %72 : vector<2x64xf32>
    %74 = vector.extract_strided_slice %73 {offsets = [0, 0], sizes = [2, 32], strides = [1, 1]} : vector<2x64xf32> to vector<2x32xf32>
    %c4 = arith.constant 4 : index
    %c0_19 = arith.constant 0 : index
    %75 = vector.load %arg13[%c4, %c0_19] : memref<16x64xf32, #tpu.memory_space<vmem>>, vector<2x32xf32>
    tpu.vector_store %arg13[%c4, %c0_19], %74 {strides = array<i32>} : memref<16x64xf32, #tpu.memory_space<vmem>>, vector<2x32xf32>,
    %76 = vector.extract_strided_slice %73 {offsets = [0, 32], sizes = [2, 32], strides = [1, 1]} : vector<2x64xf32> to vector<2x32xf32>
    %c10 = arith.constant 10 : index
    %c32_20 = arith.constant 32 : index
    %77 = vector.load %arg13[%c10, %c32_20] : memref<16x64xf32, #tpu.memory_space<vmem>>, vector<2x32xf32>
    tpu.vector_store %arg13[%c10, %c32_20], %76 {strides = array<i32>} : memref<16x64xf32, #tpu.memory_space<vmem>>, vector<2x32xf32>,
    %78 = vector.extract_strided_slice %5 {offsets = [6, 0], sizes = [2, 256], strides = [1, 1]} : vector<16x256xf32> to vector<2x256xf32>
    %cst_21 = arith.constant dense<0.000000e+00> : vector<2x256xf32>
    %79 = tpu.matmul %73, %6, %cst_21 {dimension_numbers = #tpu.dot_dimension_numbers<[1], [0], [0], [1], [0, 0, 1, 1], [], []>} : vector<2x64xf32>, vector<64x256xf32>, vector<2x256xf32> -> vector<2x256xf32>
    %80 = arith.addf %78, %79 : vector<2x256xf32>
    %81 = vector.extract_strided_slice %80 {offsets = [0, 0], sizes = [2, 192], strides = [1, 1]} : vector<2x256xf32> to vector<2x192xf32>
    %82 = arith.negf %81 : vector<2x192xf32>
    %83 = math.exp %82 : vector<2x192xf32>
    %cst_22 = arith.constant 1.000000e+00 : f32
    %84 = vector.broadcast %cst_22 : f32 to vector<2x192xf32>
    %85 = arith.addf %84, %83 : vector<2x192xf32>
    %86 = arith.divf %84, %85 : vector<2x192xf32>
    %87 = vector.extract_strided_slice %80 {offsets = [0, 192], sizes = [2, 64], strides = [1, 1]} : vector<2x256xf32> to vector<2x64xf32>
    %88 = math.tanh %87 : vector<2x64xf32>
    %89 = vector.extract_strided_slice %86 {offsets = [0, 64], sizes = [2, 64], strides = [1, 1]} : vector<2x192xf32> to vector<2x64xf32>
    %90 = arith.mulf %89, %70 : vector<2x64xf32>
    %91 = vector.extract_strided_slice %86 {offsets = [0, 0], sizes = [2, 64], strides = [1, 1]} : vector<2x192xf32> to vector<2x64xf32>
    %92 = arith.mulf %91, %88 : vector<2x64xf32>
    %93 = arith.addf %90, %92 : vector<2x64xf32>
    %94 = vector.extract_strided_slice %86 {offsets = [0, 128], sizes = [2, 64], strides = [1, 1]} : vector<2x192xf32> to vector<2x64xf32>
    %95 = math.tanh %93 : vector<2x64xf32>
    %96 = arith.mulf %94, %95 : vector<2x64xf32>
    %97 = vector.extract_strided_slice %96 {offsets = [0, 0], sizes = [2, 32], strides = [1, 1]} : vector<2x64xf32> to vector<2x32xf32>
    %c6 = arith.constant 6 : index
    %c0_23 = arith.constant 0 : index
    %98 = vector.load %arg13[%c6, %c0_23] : memref<16x64xf32, #tpu.memory_space<vmem>>, vector<2x32xf32>
    tpu.vector_store %arg13[%c6, %c0_23], %97 {strides = array<i32>} : memref<16x64xf32, #tpu.memory_space<vmem>>, vector<2x32xf32>,
    %99 = vector.extract_strided_slice %96 {offsets = [0, 32], sizes = [2, 32], strides = [1, 1]} : vector<2x64xf32> to vector<2x32xf32>
    %c8 = arith.constant 8 : index
    %c32_24 = arith.constant 32 : index
    %100 = vector.load %arg13[%c8, %c32_24] : memref<16x64xf32, #tpu.memory_space<vmem>>, vector<2x32xf32>
    tpu.vector_store %arg13[%c8, %c32_24], %99 {strides = array<i32>} : memref<16x64xf32, #tpu.memory_space<vmem>>, vector<2x32xf32>,
    %101 = vector.extract_strided_slice %5 {offsets = [8, 0], sizes = [2, 256], strides = [1, 1]} : vector<16x256xf32> to vector<2x256xf32>
    %cst_25 = arith.constant dense<0.000000e+00> : vector<2x256xf32>
    %102 = tpu.matmul %96, %6, %cst_25 {dimension_numbers = #tpu.dot_dimension_numbers<[1], [0], [0], [1], [0, 0, 1, 1], [], []>} : vector<2x64xf32>, vector<64x256xf32>, vector<2x256xf32> -> vector<2x256xf32>
    %103 = arith.addf %101, %102 : vector<2x256xf32>
    %104 = vector.extract_strided_slice %103 {offsets = [0, 0], sizes = [2, 192], strides = [1, 1]} : vector<2x256xf32> to vector<2x192xf32>
    %105 = arith.negf %104 : vector<2x192xf32>
    %106 = math.exp %105 : vector<2x192xf32>
    %cst_26 = arith.constant 1.000000e+00 : f32
    %107 = vector.broadcast %cst_26 : f32 to vector<2x192xf32>
    %108 = arith.addf %107, %106 : vector<2x192xf32>
    %109 = arith.divf %107, %108 : vector<2x192xf32>
    %110 = vector.extract_strided_slice %103 {offsets = [0, 192], sizes = [2, 64], strides = [1, 1]} : vector<2x256xf32> to vector<2x64xf32>
    %111 = math.tanh %110 : vector<2x64xf32>
    %112 = vector.extract_strided_slice %109 {offsets = [0, 64], sizes = [2, 64], strides = [1, 1]} : vector<2x192xf32> to vector<2x64xf32>
    %113 = arith.mulf %112, %93 : vector<2x64xf32>
    %114 = vector.extract_strided_slice %109 {offsets = [0, 0], sizes = [2, 64], strides = [1, 1]} : vector<2x192xf32> to vector<2x64xf32>
    %115 = arith.mulf %114, %111 : vector<2x64xf32>
    %116 = arith.addf %113, %115 : vector<2x64xf32>
    %117 = vector.extract_strided_slice %109 {offsets = [0, 128], sizes = [2, 64], strides = [1, 1]} : vector<2x192xf32> to vector<2x64xf32>
    %118 = math.tanh %116 : vector<2x64xf32>
    %119 = arith.mulf %117, %118 : vector<2x64xf32>
    %120 = vector.extract_strided_slice %119 {offsets = [0, 0], sizes = [2, 32], strides = [1, 1]} : vector<2x64xf32> to vector<2x32xf32>
    %c8_27 = arith.constant 8 : index
    %c0_28 = arith.constant 0 : index
    %121 = vector.load %arg13[%c8_27, %c0_28] : memref<16x64xf32, #tpu.memory_space<vmem>>, vector<2x32xf32>
    tpu.vector_store %arg13[%c8_27, %c0_28], %120 {strides = array<i32>} : memref<16x64xf32, #tpu.memory_space<vmem>>, vector<2x32xf32>,
    %122 = vector.extract_strided_slice %119 {offsets = [0, 32], sizes = [2, 32], strides = [1, 1]} : vector<2x64xf32> to vector<2x32xf32>
    %c6_29 = arith.constant 6 : index
    %c32_30 = arith.constant 32 : index
    %123 = vector.load %arg13[%c6_29, %c32_30] : memref<16x64xf32, #tpu.memory_space<vmem>>, vector<2x32xf32>
    tpu.vector_store %arg13[%c6_29, %c32_30], %122 {strides = array<i32>} : memref<16x64xf32, #tpu.memory_space<vmem>>, vector<2x32xf32>,
    %124 = vector.extract_strided_slice %5 {offsets = [10, 0], sizes = [2, 256], strides = [1, 1]} : vector<16x256xf32> to vector<2x256xf32>
    %cst_31 = arith.constant dense<0.000000e+00> : vector<2x256xf32>
    %125 = tpu.matmul %119, %6, %cst_31 {dimension_numbers = #tpu.dot_dimension_numbers<[1], [0], [0], [1], [0, 0, 1, 1], [], []>} : vector<2x64xf32>, vector<64x256xf32>, vector<2x256xf32> -> vector<2x256xf32>
    %126 = arith.addf %124, %125 : vector<2x256xf32>
    %127 = vector.extract_strided_slice %126 {offsets = [0, 0], sizes = [2, 192], strides = [1, 1]} : vector<2x256xf32> to vector<2x192xf32>
    %128 = arith.negf %127 : vector<2x192xf32>
    %129 = math.exp %128 : vector<2x192xf32>
    %cst_32 = arith.constant 1.000000e+00 : f32
    %130 = vector.broadcast %cst_32 : f32 to vector<2x192xf32>
    %131 = arith.addf %130, %129 : vector<2x192xf32>
    %132 = arith.divf %130, %131 : vector<2x192xf32>
    %133 = vector.extract_strided_slice %126 {offsets = [0, 192], sizes = [2, 64], strides = [1, 1]} : vector<2x256xf32> to vector<2x64xf32>
    %134 = math.tanh %133 : vector<2x64xf32>
    %135 = vector.extract_strided_slice %132 {offsets = [0, 64], sizes = [2, 64], strides = [1, 1]} : vector<2x192xf32> to vector<2x64xf32>
    %136 = arith.mulf %135, %116 : vector<2x64xf32>
    %137 = vector.extract_strided_slice %132 {offsets = [0, 0], sizes = [2, 64], strides = [1, 1]} : vector<2x192xf32> to vector<2x64xf32>
    %138 = arith.mulf %137, %134 : vector<2x64xf32>
    %139 = arith.addf %136, %138 : vector<2x64xf32>
    %140 = vector.extract_strided_slice %132 {offsets = [0, 128], sizes = [2, 64], strides = [1, 1]} : vector<2x192xf32> to vector<2x64xf32>
    %141 = math.tanh %139 : vector<2x64xf32>
    %142 = arith.mulf %140, %141 : vector<2x64xf32>
    %143 = vector.extract_strided_slice %142 {offsets = [0, 0], sizes = [2, 32], strides = [1, 1]} : vector<2x64xf32> to vector<2x32xf32>
    %c10_33 = arith.constant 10 : index
    %c0_34 = arith.constant 0 : index
    %144 = vector.load %arg13[%c10_33, %c0_34] : memref<16x64xf32, #tpu.memory_space<vmem>>, vector<2x32xf32>
    tpu.vector_store %arg13[%c10_33, %c0_34], %143 {strides = array<i32>} : memref<16x64xf32, #tpu.memory_space<vmem>>, vector<2x32xf32>,
    %145 = vector.extract_strided_slice %142 {offsets = [0, 32], sizes = [2, 32], strides = [1, 1]} : vector<2x64xf32> to vector<2x32xf32>
    %c4_35 = arith.constant 4 : index
    %c32_36 = arith.constant 32 : index
    %146 = vector.load %arg13[%c4_35, %c32_36] : memref<16x64xf32, #tpu.memory_space<vmem>>, vector<2x32xf32>
    tpu.vector_store %arg13[%c4_35, %c32_36], %145 {strides = array<i32>} : memref<16x64xf32, #tpu.memory_space<vmem>>, vector<2x32xf32>,
    %147 = vector.extract_strided_slice %5 {offsets = [12, 0], sizes = [2, 256], strides = [1, 1]} : vector<16x256xf32> to vector<2x256xf32>
    %cst_37 = arith.constant dense<0.000000e+00> : vector<2x256xf32>
    %148 = tpu.matmul %142, %6, %cst_37 {dimension_numbers = #tpu.dot_dimension_numbers<[1], [0], [0], [1], [0, 0, 1, 1], [], []>} : vector<2x64xf32>, vector<64x256xf32>, vector<2x256xf32> -> vector<2x256xf32>
    %149 = arith.addf %147, %148 : vector<2x256xf32>
    %150 = vector.extract_strided_slice %149 {offsets = [0, 0], sizes = [2, 192], strides = [1, 1]} : vector<2x256xf32> to vector<2x192xf32>
    %151 = arith.negf %150 : vector<2x192xf32>
    %152 = math.exp %151 : vector<2x192xf32>
    %cst_38 = arith.constant 1.000000e+00 : f32
    %153 = vector.broadcast %cst_38 : f32 to vector<2x192xf32>
    %154 = arith.addf %153, %152 : vector<2x192xf32>
    %155 = arith.divf %153, %154 : vector<2x192xf32>
    %156 = vector.extract_strided_slice %149 {offsets = [0, 192], sizes = [2, 64], strides = [1, 1]} : vector<2x256xf32> to vector<2x64xf32>
    %157 = math.tanh %156 : vector<2x64xf32>
    %158 = vector.extract_strided_slice %155 {offsets = [0, 64], sizes = [2, 64], strides = [1, 1]} : vector<2x192xf32> to vector<2x64xf32>
    %159 = arith.mulf %158, %139 : vector<2x64xf32>
    %160 = vector.extract_strided_slice %155 {offsets = [0, 0], sizes = [2, 64], strides = [1, 1]} : vector<2x192xf32> to vector<2x64xf32>
    %161 = arith.mulf %160, %157 : vector<2x64xf32>
    %162 = arith.addf %159, %161 : vector<2x64xf32>
    %163 = vector.extract_strided_slice %155 {offsets = [0, 128], sizes = [2, 64], strides = [1, 1]} : vector<2x192xf32> to vector<2x64xf32>
    %164 = math.tanh %162 : vector<2x64xf32>
    %165 = arith.mulf %163, %164 : vector<2x64xf32>
    %166 = vector.extract_strided_slice %165 {offsets = [0, 0], sizes = [2, 32], strides = [1, 1]} : vector<2x64xf32> to vector<2x32xf32>
    %c12_39 = arith.constant 12 : index
    %c0_40 = arith.constant 0 : index
    %167 = vector.load %arg13[%c12_39, %c0_40] : memref<16x64xf32, #tpu.memory_space<vmem>>, vector<2x32xf32>
    tpu.vector_store %arg13[%c12_39, %c0_40], %166 {strides = array<i32>} : memref<16x64xf32, #tpu.memory_space<vmem>>, vector<2x32xf32>,
    %168 = vector.extract_strided_slice %165 {offsets = [0, 32], sizes = [2, 32], strides = [1, 1]} : vector<2x64xf32> to vector<2x32xf32>
    %c2_41 = arith.constant 2 : index
    %c32_42 = arith.constant 32 : index
    %169 = vector.load %arg13[%c2_41, %c32_42] : memref<16x64xf32, #tpu.memory_space<vmem>>, vector<2x32xf32>
    tpu.vector_store %arg13[%c2_41, %c32_42], %168 {strides = array<i32>} : memref<16x64xf32, #tpu.memory_space<vmem>>, vector<2x32xf32>,
    %170 = vector.extract_strided_slice %5 {offsets = [14, 0], sizes = [2, 256], strides = [1, 1]} : vector<16x256xf32> to vector<2x256xf32>
    %cst_43 = arith.constant dense<0.000000e+00> : vector<2x256xf32>
    %171 = tpu.matmul %165, %6, %cst_43 {dimension_numbers = #tpu.dot_dimension_numbers<[1], [0], [0], [1], [0, 0, 1, 1], [], []>} : vector<2x64xf32>, vector<64x256xf32>, vector<2x256xf32> -> vector<2x256xf32>
    %172 = arith.addf %170, %171 : vector<2x256xf32>
    %173 = vector.extract_strided_slice %172 {offsets = [0, 0], sizes = [2, 192], strides = [1, 1]} : vector<2x256xf32> to vector<2x192xf32>
    %174 = arith.negf %173 : vector<2x192xf32>
    %175 = math.exp %174 : vector<2x192xf32>
    %cst_44 = arith.constant 1.000000e+00 : f32
    %176 = vector.broadcast %cst_44 : f32 to vector<2x192xf32>
    %177 = arith.addf %176, %175 : vector<2x192xf32>
    %178 = arith.divf %176, %177 : vector<2x192xf32>
    %179 = vector.extract_strided_slice %172 {offsets = [0, 192], sizes = [2, 64], strides = [1, 1]} : vector<2x256xf32> to vector<2x64xf32>
    %180 = math.tanh %179 : vector<2x64xf32>
    %181 = vector.extract_strided_slice %178 {offsets = [0, 64], sizes = [2, 64], strides = [1, 1]} : vector<2x192xf32> to vector<2x64xf32>
    %182 = arith.mulf %181, %162 : vector<2x64xf32>
    %183 = vector.extract_strided_slice %178 {offsets = [0, 0], sizes = [2, 64], strides = [1, 1]} : vector<2x192xf32> to vector<2x64xf32>
    %184 = arith.mulf %183, %180 : vector<2x64xf32>
    %185 = arith.addf %182, %184 : vector<2x64xf32>
    %186 = vector.extract_strided_slice %178 {offsets = [0, 128], sizes = [2, 64], strides = [1, 1]} : vector<2x192xf32> to vector<2x64xf32>
    %187 = math.tanh %185 : vector<2x64xf32>
    %188 = arith.mulf %186, %187 : vector<2x64xf32>
    %189 = vector.extract_strided_slice %188 {offsets = [0, 0], sizes = [2, 32], strides = [1, 1]} : vector<2x64xf32> to vector<2x32xf32>
    %c14_45 = arith.constant 14 : index
    %c0_46 = arith.constant 0 : index
    %190 = vector.load %arg13[%c14_45, %c0_46] : memref<16x64xf32, #tpu.memory_space<vmem>>, vector<2x32xf32>
    tpu.vector_store %arg13[%c14_45, %c0_46], %189 {strides = array<i32>} : memref<16x64xf32, #tpu.memory_space<vmem>>, vector<2x32xf32>,
    %191 = vector.extract_strided_slice %188 {offsets = [0, 32], sizes = [2, 32], strides = [1, 1]} : vector<2x64xf32> to vector<2x32xf32>
    %c0_47 = arith.constant 0 : index
    %c32_48 = arith.constant 32 : index
    %192 = vector.load %arg13[%c0_47, %c32_48] : memref<16x64xf32, #tpu.memory_space<vmem>>, vector<2x32xf32>
    tpu.vector_store %arg13[%c0_47, %c32_48], %191 {strides = array<i32>} : memref<16x64xf32, #tpu.memory_space<vmem>>, vector<2x32xf32>,
    %c0_49 = arith.constant 0 : index
    %c0_50 = arith.constant 0 : index
    %193 = vector.load %arg13[%c0_49, %c0_50] : memref<16x64xf32, #tpu.memory_space<vmem>>, vector<16x64xf32>
    %c0_51 = arith.constant 0 : index
    %c0_52 = arith.constant 0 : index
    %194 = vector.load %arg4[%c0_51, %c0_52] : memref<64x256xf32, #tpu.memory_space<vmem>>, vector<64x256xf32>
    %cst_53 = arith.constant dense<0.000000e+00> : vector<16x256xf32>
    %195 = tpu.matmul %193, %194, %cst_53 {dimension_numbers = #tpu.dot_dimension_numbers<[1], [0], [0], [1], [0, 0, 1, 1], [], []>} : vector<16x64xf32>, vector<64x256xf32>, vector<16x256xf32> -> vector<16x256xf32>
    %c0_54 = arith.constant 0 : index
    %c0_55 = arith.constant 0 : index
    %196 = vector.load %arg5[%c0_54, %c0_55] : memref<1x256xf32, #tpu.memory_space<vmem>>, vector<1x256xf32>
    %197 = vector.broadcast %196 : vector<1x256xf32> to vector<16x256xf32>
    %198 = arith.addf %195, %197 : vector<16x256xf32>
    %c0_56 = arith.constant 0 : index
    %c0_57 = arith.constant 0 : index
    %199 = vector.load %arg6[%c0_56, %c0_57] : memref<32x128xf32, #tpu.memory_space<vmem>>, vector<32x128xf32>
    %cst_58 = arith.constant 0.000000e+00 : f32
    %200 = vector.broadcast %cst_58 : f32 to vector<2x32xf32>
    %cst_59 = arith.constant 0.000000e+00 : f32
    %201 = vector.broadcast %cst_59 : f32 to vector<2x32xf32>
    %202 = vector.extract_strided_slice %198 {offsets = [0, 0], sizes = [2, 128], strides = [1, 1]} : vector<16x256xf32> to vector<2x128xf32>
    %cst_60 = arith.constant dense<0.000000e+00> : vector<2x128xf32>
    %203 = tpu.matmul %200, %199, %cst_60 {dimension_numbers = #tpu.dot_dimension_numbers<[1], [0], [0], [1], [0, 0, 1, 1], [], []>} : vector<2x32xf32>, vector<32x128xf32>, vector<2x128xf32> -> vector<2x128xf32>
    %204 = arith.addf %202, %203 : vector<2x128xf32>
    %205 = vector.extract_strided_slice %204 {offsets = [0, 0], sizes = [2, 96], strides = [1, 1]} : vector<2x128xf32> to vector<2x96xf32>
    %206 = arith.negf %205 : vector<2x96xf32>
    %207 = math.exp %206 : vector<2x96xf32>
    %cst_61 = arith.constant 1.000000e+00 : f32
    %208 = vector.broadcast %cst_61 : f32 to vector<2x96xf32>
    %209 = arith.addf %208, %207 : vector<2x96xf32>
    %210 = arith.divf %208, %209 : vector<2x96xf32>
    %211 = vector.extract_strided_slice %204 {offsets = [0, 96], sizes = [2, 32], strides = [1, 1]} : vector<2x128xf32> to vector<2x32xf32>
    %212 = math.tanh %211 : vector<2x32xf32>
    %213 = vector.extract_strided_slice %210 {offsets = [0, 32], sizes = [2, 32], strides = [1, 1]} : vector<2x96xf32> to vector<2x32xf32>
    %214 = arith.mulf %213, %201 : vector<2x32xf32>
    %215 = vector.extract_strided_slice %210 {offsets = [0, 0], sizes = [2, 32], strides = [1, 1]} : vector<2x96xf32> to vector<2x32xf32>
    %216 = arith.mulf %215, %212 : vector<2x32xf32>
    %217 = arith.addf %214, %216 : vector<2x32xf32>
    %218 = vector.extract_strided_slice %210 {offsets = [0, 64], sizes = [2, 32], strides = [1, 1]} : vector<2x96xf32> to vector<2x32xf32>
    %219 = math.tanh %217 : vector<2x32xf32>
    %220 = arith.mulf %218, %219 : vector<2x32xf32>
    %221 = vector.extract_strided_slice %198 {offsets = [2, 0], sizes = [2, 128], strides = [1, 1]} : vector<16x256xf32> to vector<2x128xf32>
    %cst_62 = arith.constant dense<0.000000e+00> : vector<2x128xf32>
    %222 = tpu.matmul %220, %199, %cst_62 {dimension_numbers = #tpu.dot_dimension_numbers<[1], [0], [0], [1], [0, 0, 1, 1], [], []>} : vector<2x32xf32>, vector<32x128xf32>, vector<2x128xf32> -> vector<2x128xf32>
    %223 = arith.addf %221, %222 : vector<2x128xf32>
    %224 = vector.extract_strided_slice %223 {offsets = [0, 0], sizes = [2, 96], strides = [1, 1]} : vector<2x128xf32> to vector<2x96xf32>
    %225 = arith.negf %224 : vector<2x96xf32>
    %226 = math.exp %225 : vector<2x96xf32>
    %cst_63 = arith.constant 1.000000e+00 : f32
    %227 = vector.broadcast %cst_63 : f32 to vector<2x96xf32>
    %228 = arith.addf %227, %226 : vector<2x96xf32>
    %229 = arith.divf %227, %228 : vector<2x96xf32>
    %230 = vector.extract_strided_slice %223 {offsets = [0, 96], sizes = [2, 32], strides = [1, 1]} : vector<2x128xf32> to vector<2x32xf32>
    %231 = math.tanh %230 : vector<2x32xf32>
    %232 = vector.extract_strided_slice %229 {offsets = [0, 32], sizes = [2, 32], strides = [1, 1]} : vector<2x96xf32> to vector<2x32xf32>
    %233 = arith.mulf %232, %217 : vector<2x32xf32>
    %234 = vector.extract_strided_slice %229 {offsets = [0, 0], sizes = [2, 32], strides = [1, 1]} : vector<2x96xf32> to vector<2x32xf32>
    %235 = arith.mulf %234, %231 : vector<2x32xf32>
    %236 = arith.addf %233, %235 : vector<2x32xf32>
    %237 = vector.extract_strided_slice %229 {offsets = [0, 64], sizes = [2, 32], strides = [1, 1]} : vector<2x96xf32> to vector<2x32xf32>
    %238 = math.tanh %236 : vector<2x32xf32>
    %239 = arith.mulf %237, %238 : vector<2x32xf32>
    %240 = vector.extract_strided_slice %198 {offsets = [4, 0], sizes = [2, 128], strides = [1, 1]} : vector<16x256xf32> to vector<2x128xf32>
    %cst_64 = arith.constant dense<0.000000e+00> : vector<2x128xf32>
    %241 = tpu.matmul %239, %199, %cst_64 {dimension_numbers = #tpu.dot_dimension_numbers<[1], [0], [0], [1], [0, 0, 1, 1], [], []>} : vector<2x32xf32>, vector<32x128xf32>, vector<2x128xf32> -> vector<2x128xf32>
    %242 = arith.addf %240, %241 : vector<2x128xf32>
    %243 = vector.extract_strided_slice %242 {offsets = [0, 0], sizes = [2, 96], strides = [1, 1]} : vector<2x128xf32> to vector<2x96xf32>
    %244 = arith.negf %243 : vector<2x96xf32>
    %245 = math.exp %244 : vector<2x96xf32>
    %cst_65 = arith.constant 1.000000e+00 : f32
    %246 = vector.broadcast %cst_65 : f32 to vector<2x96xf32>
    %247 = arith.addf %246, %245 : vector<2x96xf32>
    %248 = arith.divf %246, %247 : vector<2x96xf32>
    %249 = vector.extract_strided_slice %242 {offsets = [0, 96], sizes = [2, 32], strides = [1, 1]} : vector<2x128xf32> to vector<2x32xf32>
    %250 = math.tanh %249 : vector<2x32xf32>
    %251 = vector.extract_strided_slice %248 {offsets = [0, 32], sizes = [2, 32], strides = [1, 1]} : vector<2x96xf32> to vector<2x32xf32>
    %252 = arith.mulf %251, %236 : vector<2x32xf32>
    %253 = vector.extract_strided_slice %248 {offsets = [0, 0], sizes = [2, 32], strides = [1, 1]} : vector<2x96xf32> to vector<2x32xf32>
    %254 = arith.mulf %253, %250 : vector<2x32xf32>
    %255 = arith.addf %252, %254 : vector<2x32xf32>
    %256 = vector.extract_strided_slice %248 {offsets = [0, 64], sizes = [2, 32], strides = [1, 1]} : vector<2x96xf32> to vector<2x32xf32>
    %257 = math.tanh %255 : vector<2x32xf32>
    %258 = arith.mulf %256, %257 : vector<2x32xf32>
    %259 = vector.extract_strided_slice %198 {offsets = [6, 0], sizes = [2, 128], strides = [1, 1]} : vector<16x256xf32> to vector<2x128xf32>
    %cst_66 = arith.constant dense<0.000000e+00> : vector<2x128xf32>
    %260 = tpu.matmul %258, %199, %cst_66 {dimension_numbers = #tpu.dot_dimension_numbers<[1], [0], [0], [1], [0, 0, 1, 1], [], []>} : vector<2x32xf32>, vector<32x128xf32>, vector<2x128xf32> -> vector<2x128xf32>
    %261 = arith.addf %259, %260 : vector<2x128xf32>
    %262 = vector.extract_strided_slice %261 {offsets = [0, 0], sizes = [2, 96], strides = [1, 1]} : vector<2x128xf32> to vector<2x96xf32>
    %263 = arith.negf %262 : vector<2x96xf32>
    %264 = math.exp %263 : vector<2x96xf32>
    %cst_67 = arith.constant 1.000000e+00 : f32
    %265 = vector.broadcast %cst_67 : f32 to vector<2x96xf32>
    %266 = arith.addf %265, %264 : vector<2x96xf32>
    %267 = arith.divf %265, %266 : vector<2x96xf32>
    %268 = vector.extract_strided_slice %261 {offsets = [0, 96], sizes = [2, 32], strides = [1, 1]} : vector<2x128xf32> to vector<2x32xf32>
    %269 = math.tanh %268 : vector<2x32xf32>
    %270 = vector.extract_strided_slice %267 {offsets = [0, 32], sizes = [2, 32], strides = [1, 1]} : vector<2x96xf32> to vector<2x32xf32>
    %271 = arith.mulf %270, %255 : vector<2x32xf32>
    %272 = vector.extract_strided_slice %267 {offsets = [0, 0], sizes = [2, 32], strides = [1, 1]} : vector<2x96xf32> to vector<2x32xf32>
    %273 = arith.mulf %272, %269 : vector<2x32xf32>
    %274 = arith.addf %271, %273 : vector<2x32xf32>
    %275 = vector.extract_strided_slice %267 {offsets = [0, 64], sizes = [2, 32], strides = [1, 1]} : vector<2x96xf32> to vector<2x32xf32>
    %276 = math.tanh %274 : vector<2x32xf32>
    %277 = arith.mulf %275, %276 : vector<2x32xf32>
    %278 = vector.extract_strided_slice %198 {offsets = [8, 0], sizes = [2, 128], strides = [1, 1]} : vector<16x256xf32> to vector<2x128xf32>
    %cst_68 = arith.constant dense<0.000000e+00> : vector<2x128xf32>
    %279 = tpu.matmul %277, %199, %cst_68 {dimension_numbers = #tpu.dot_dimension_numbers<[1], [0], [0], [1], [0, 0, 1, 1], [], []>} : vector<2x32xf32>, vector<32x128xf32>, vector<2x128xf32> -> vector<2x128xf32>
    %280 = arith.addf %278, %279 : vector<2x128xf32>
    %281 = vector.extract_strided_slice %280 {offsets = [0, 0], sizes = [2, 96], strides = [1, 1]} : vector<2x128xf32> to vector<2x96xf32>
    %282 = arith.negf %281 : vector<2x96xf32>
    %283 = math.exp %282 : vector<2x96xf32>
    %cst_69 = arith.constant 1.000000e+00 : f32
    %284 = vector.broadcast %cst_69 : f32 to vector<2x96xf32>
    %285 = arith.addf %284, %283 : vector<2x96xf32>
    %286 = arith.divf %284, %285 : vector<2x96xf32>
    %287 = vector.extract_strided_slice %280 {offsets = [0, 96], sizes = [2, 32], strides = [1, 1]} : vector<2x128xf32> to vector<2x32xf32>
    %288 = math.tanh %287 : vector<2x32xf32>
    %289 = vector.extract_strided_slice %286 {offsets = [0, 32], sizes = [2, 32], strides = [1, 1]} : vector<2x96xf32> to vector<2x32xf32>
    %290 = arith.mulf %289, %274 : vector<2x32xf32>
    %291 = vector.extract_strided_slice %286 {offsets = [0, 0], sizes = [2, 32], strides = [1, 1]} : vector<2x96xf32> to vector<2x32xf32>
    %292 = arith.mulf %291, %288 : vector<2x32xf32>
    %293 = arith.addf %290, %292 : vector<2x32xf32>
    %294 = vector.extract_strided_slice %286 {offsets = [0, 64], sizes = [2, 32], strides = [1, 1]} : vector<2x96xf32> to vector<2x32xf32>
    %295 = math.tanh %293 : vector<2x32xf32>
    %296 = arith.mulf %294, %295 : vector<2x32xf32>
    %297 = vector.extract_strided_slice %198 {offsets = [10, 0], sizes = [2, 128], strides = [1, 1]} : vector<16x256xf32> to vector<2x128xf32>
    %cst_70 = arith.constant dense<0.000000e+00> : vector<2x128xf32>
    %298 = tpu.matmul %296, %199, %cst_70 {dimension_numbers = #tpu.dot_dimension_numbers<[1], [0], [0], [1], [0, 0, 1, 1], [], []>} : vector<2x32xf32>, vector<32x128xf32>, vector<2x128xf32> -> vector<2x128xf32>
    %299 = arith.addf %297, %298 : vector<2x128xf32>
    %300 = vector.extract_strided_slice %299 {offsets = [0, 0], sizes = [2, 96], strides = [1, 1]} : vector<2x128xf32> to vector<2x96xf32>
    %301 = arith.negf %300 : vector<2x96xf32>
    %302 = math.exp %301 : vector<2x96xf32>
    %cst_71 = arith.constant 1.000000e+00 : f32
    %303 = vector.broadcast %cst_71 : f32 to vector<2x96xf32>
    %304 = arith.addf %303, %302 : vector<2x96xf32>
    %305 = arith.divf %303, %304 : vector<2x96xf32>
    %306 = vector.extract_strided_slice %299 {offsets = [0, 96], sizes = [2, 32], strides = [1, 1]} : vector<2x128xf32> to vector<2x32xf32>
    %307 = math.tanh %306 : vector<2x32xf32>
    %308 = vector.extract_strided_slice %305 {offsets = [0, 32], sizes = [2, 32], strides = [1, 1]} : vector<2x96xf32> to vector<2x32xf32>
    %309 = arith.mulf %308, %293 : vector<2x32xf32>
    %310 = vector.extract_strided_slice %305 {offsets = [0, 0], sizes = [2, 32], strides = [1, 1]} : vector<2x96xf32> to vector<2x32xf32>
    %311 = arith.mulf %310, %307 : vector<2x32xf32>
    %312 = arith.addf %309, %311 : vector<2x32xf32>
    %313 = vector.extract_strided_slice %305 {offsets = [0, 64], sizes = [2, 32], strides = [1, 1]} : vector<2x96xf32> to vector<2x32xf32>
    %314 = math.tanh %312 : vector<2x32xf32>
    %315 = arith.mulf %313, %314 : vector<2x32xf32>
    %316 = vector.extract_strided_slice %198 {offsets = [12, 0], sizes = [2, 128], strides = [1, 1]} : vector<16x256xf32> to vector<2x128xf32>
    %cst_72 = arith.constant dense<0.000000e+00> : vector<2x128xf32>
    %317 = tpu.matmul %315, %199, %cst_72 {dimension_numbers = #tpu.dot_dimension_numbers<[1], [0], [0], [1], [0, 0, 1, 1], [], []>} : vector<2x32xf32>, vector<32x128xf32>, vector<2x128xf32> -> vector<2x128xf32>
    %318 = arith.addf %316, %317 : vector<2x128xf32>
    %319 = vector.extract_strided_slice %318 {offsets = [0, 0], sizes = [2, 96], strides = [1, 1]} : vector<2x128xf32> to vector<2x96xf32>
    %320 = arith.negf %319 : vector<2x96xf32>
    %321 = math.exp %320 : vector<2x96xf32>
    %cst_73 = arith.constant 1.000000e+00 : f32
    %322 = vector.broadcast %cst_73 : f32 to vector<2x96xf32>
    %323 = arith.addf %322, %321 : vector<2x96xf32>
    %324 = arith.divf %322, %323 : vector<2x96xf32>
    %325 = vector.extract_strided_slice %318 {offsets = [0, 96], sizes = [2, 32], strides = [1, 1]} : vector<2x128xf32> to vector<2x32xf32>
    %326 = math.tanh %325 : vector<2x32xf32>
    %327 = vector.extract_strided_slice %324 {offsets = [0, 32], sizes = [2, 32], strides = [1, 1]} : vector<2x96xf32> to vector<2x32xf32>
    %328 = arith.mulf %327, %312 : vector<2x32xf32>
    %329 = vector.extract_strided_slice %324 {offsets = [0, 0], sizes = [2, 32], strides = [1, 1]} : vector<2x96xf32> to vector<2x32xf32>
    %330 = arith.mulf %329, %326 : vector<2x32xf32>
    %331 = arith.addf %328, %330 : vector<2x32xf32>
    %332 = vector.extract_strided_slice %324 {offsets = [0, 64], sizes = [2, 32], strides = [1, 1]} : vector<2x96xf32> to vector<2x32xf32>
    %333 = math.tanh %331 : vector<2x32xf32>
    %334 = arith.mulf %332, %333 : vector<2x32xf32>
    %335 = vector.extract_strided_slice %198 {offsets = [14, 0], sizes = [2, 128], strides = [1, 1]} : vector<16x256xf32> to vector<2x128xf32>
    %cst_74 = arith.constant dense<0.000000e+00> : vector<2x128xf32>
    %336 = tpu.matmul %334, %199, %cst_74 {dimension_numbers = #tpu.dot_dimension_numbers<[1], [0], [0], [1], [0, 0, 1, 1], [], []>} : vector<2x32xf32>, vector<32x128xf32>, vector<2x128xf32> -> vector<2x128xf32>
    %337 = arith.addf %335, %336 : vector<2x128xf32>
    %338 = vector.extract_strided_slice %337 {offsets = [0, 0], sizes = [2, 96], strides = [1, 1]} : vector<2x128xf32> to vector<2x96xf32>
    %339 = arith.negf %338 : vector<2x96xf32>
    %340 = math.exp %339 : vector<2x96xf32>
    %cst_75 = arith.constant 1.000000e+00 : f32
    %341 = vector.broadcast %cst_75 : f32 to vector<2x96xf32>
    %342 = arith.addf %341, %340 : vector<2x96xf32>
    %343 = arith.divf %341, %342 : vector<2x96xf32>
    %344 = vector.extract_strided_slice %337 {offsets = [0, 96], sizes = [2, 32], strides = [1, 1]} : vector<2x128xf32> to vector<2x32xf32>
    %345 = math.tanh %344 : vector<2x32xf32>
    %346 = vector.extract_strided_slice %343 {offsets = [0, 32], sizes = [2, 32], strides = [1, 1]} : vector<2x96xf32> to vector<2x32xf32>
    %347 = arith.mulf %346, %331 : vector<2x32xf32>
    %348 = vector.extract_strided_slice %343 {offsets = [0, 0], sizes = [2, 32], strides = [1, 1]} : vector<2x96xf32> to vector<2x32xf32>
    %349 = arith.mulf %348, %345 : vector<2x32xf32>
    %350 = arith.addf %347, %349 : vector<2x32xf32>
    %351 = vector.extract_strided_slice %343 {offsets = [0, 64], sizes = [2, 32], strides = [1, 1]} : vector<2x96xf32> to vector<2x32xf32>
    %352 = math.tanh %350 : vector<2x32xf32>
    %353 = arith.mulf %351, %352 : vector<2x32xf32>
    %354 = vector.extract_strided_slice %198 {offsets = [14, 128], sizes = [2, 128], strides = [1, 1]} : vector<16x256xf32> to vector<2x128xf32>
    %355 = vector.extract_strided_slice %354 {offsets = [0, 64], sizes = [2, 32], strides = [1, 1]} : vector<2x128xf32> to vector<2x32xf32>
    %356 = arith.negf %355 : vector<2x32xf32>
    %357 = math.exp %356 : vector<2x32xf32>
    %cst_76 = arith.constant 1.000000e+00 : f32
    %358 = vector.broadcast %cst_76 : f32 to vector<2x32xf32>
    %359 = arith.addf %358, %357 : vector<2x32xf32>
    %360 = arith.divf %358, %359 : vector<2x32xf32>
    %361 = vector.extract_strided_slice %354 {offsets = [0, 0], sizes = [2, 32], strides = [1, 1]} : vector<2x128xf32> to vector<2x32xf32>
    %362 = arith.negf %361 : vector<2x32xf32>
    %363 = math.exp %362 : vector<2x32xf32>
    %cst_77 = arith.constant 1.000000e+00 : f32
    %364 = vector.broadcast %cst_77 : f32 to vector<2x32xf32>
    %365 = arith.addf %364, %363 : vector<2x32xf32>
    %366 = arith.divf %364, %365 : vector<2x32xf32>
    %367 = vector.extract_strided_slice %354 {offsets = [0, 96], sizes = [2, 32], strides = [1, 1]} : vector<2x128xf32> to vector<2x32xf32>
    %368 = math.tanh %367 : vector<2x32xf32>
    %369 = arith.mulf %366, %368 : vector<2x32xf32>
    %370 = math.tanh %369 : vector<2x32xf32>
    %371 = arith.mulf %360, %370 : vector<2x32xf32>
    %c0_78 = arith.constant 0 : index
    %c0_79 = arith.constant 0 : index
    %372 = vector.load %arg7[%c0_78, %c0_79] : memref<32x1024xf32, #tpu.memory_space<vmem>>, vector<32x1024xf32>
    %cst_80 = arith.constant dense<0.000000e+00> : vector<2x1024xf32>
    %373 = tpu.matmul %353, %372, %cst_80 {dimension_numbers = #tpu.dot_dimension_numbers<[1], [0], [0], [1], [0, 0, 1, 1], [], []>} : vector<2x32xf32>, vector<32x1024xf32>, vector<2x1024xf32> -> vector<2x1024xf32>
    %c0_81 = arith.constant 0 : index
    %c0_82 = arith.constant 0 : index
    %374 = vector.load %arg8[%c0_81, %c0_82] : memref<32x1024xf32, #tpu.memory_space<vmem>>, vector<32x1024xf32>
    %cst_83 = arith.constant dense<0.000000e+00> : vector<2x1024xf32>
    %375 = tpu.matmul %371, %374, %cst_83 {dimension_numbers = #tpu.dot_dimension_numbers<[1], [0], [0], [1], [0, 0, 1, 1], [], []>} : vector<2x32xf32>, vector<32x1024xf32>, vector<2x1024xf32> -> vector<2x1024xf32>
    %376 = arith.addf %373, %375 : vector<2x1024xf32>
    %c0_84 = arith.constant 0 : index
    %c0_85 = arith.constant 0 : index
    %377 = vector.load %arg9[%c0_84, %c0_85] : memref<1x1024xf32, #tpu.memory_space<vmem>>, vector<1x1024xf32>
    %378 = vector.broadcast %377 : vector<1x1024xf32> to vector<2x1024xf32>
    %379 = arith.addf %376, %378 : vector<2x1024xf32>
    %cst_86 = arith.constant 0.000000e+00 : f32
    %380 = vector.broadcast %cst_86 : f32 to vector<2x1024xf32>
    %381 = arith.maximumf %379, %380 : vector<2x1024xf32>
    %c0_87 = arith.constant 0 : index
    %c0_88 = arith.constant 0 : index
    %382 = vector.load %arg10[%c0_87, %c0_88] : memref<1024x4xf32, #tpu.memory_space<vmem>>, vector<1024x4xf32>
    %cst_89 = arith.constant dense<0.000000e+00> : vector<2x4xf32>
    %383 = tpu.matmul %381, %382, %cst_89 {dimension_numbers = #tpu.dot_dimension_numbers<[1], [0], [0], [1], [0, 0, 1, 1], [], []>} : vector<2x1024xf32>, vector<1024x4xf32>, vector<2x4xf32> -> vector<2x4xf32>
    %c0_90 = arith.constant 0 : index
    %c0_91 = arith.constant 0 : index
    %384 = vector.load %arg11[%c0_90, %c0_91] : memref<1x4xf32, #tpu.memory_space<vmem>>, vector<1x4xf32>
    %385 = vector.broadcast %384 : vector<1x4xf32> to vector<2x4xf32>
    %386 = arith.addf %383, %385 : vector<2x4xf32>
    %c0_92 = arith.constant 0 : index
    %c0_93 = arith.constant 0 : index
    %387 = vector.load %arg12[%c0_92, %c0_93] : memref<2x4xf32, #tpu.memory_space<vmem>>, vector<2x4xf32>
    tpu.vector_store %arg12[%c0_92, %c0_93], %386 {strides = array<i32>} : memref<2x4xf32, #tpu.memory_space<vmem>>, vector<2x4xf32>,
    return
  }
}

</mosaic_0001>

<llo_original>
// kernel: tpu_custom_call.1
$region0: #{tpu_custom_call.1}
  #allocation0 [shape = 'u32[]', space=smem, size = 0x4, offset = 0x4, fixed_abs, tag = 'smem constant byte address 0x4 - core index']
  #allocation1 [shape = 'u32[144,128]{1,0:T(1,128)}', space=vmem, size = 0x12000, scoped, tag = 'internal scratch']
  #allocation2 [shape = 'f32[16,64]{1,0:T(8,128)}', space=vmem, size = 0x2000, scoped, tag = 'scratch operand']
  %s0 = inlined_call_operand.vmem [shape: f32[16,8], index: 0, kind: input, shape index: {}]
  %s1 = inlined_call_operand.vmem [shape: f32[8,256], index: 1, kind: input, shape index: {}]
  %s2 = inlined_call_operand.vmem [shape: f32[1,256], index: 2, kind: input, shape index: {}]
  %s3 = inlined_call_operand.vmem [shape: f32[64,256], index: 3, kind: input, shape index: {}]
  %s4 = inlined_call_operand.vmem [shape: f32[64,256], index: 4, kind: input, shape index: {}]
  %s5 = inlined_call_operand.vmem [shape: f32[1,256], index: 5, kind: input, shape index: {}]
  %s6 = inlined_call_operand.vmem [shape: f32[32,128], index: 6, kind: input, shape index: {}]
  %s7 = inlined_call_operand.vmem [shape: f32[32,1024], index: 7, kind: input, shape index: {}]
  %s8 = inlined_call_operand.vmem [shape: f32[32,1024], index: 8, kind: input, shape index: {}]
  %s9 = inlined_call_operand.vmem [shape: f32[1,1024], index: 9, kind: input, shape index: {}]
  %s10 = inlined_call_operand.vmem [shape: f32[1024,4], index: 10, kind: input, shape index: {}]
  %s11 = inlined_call_operand.vmem [shape: f32[1,4], index: 11, kind: input, shape index: {}]
  %s12 = inlined_call_operand.hbm [shape: f32[2,4], index: 12, kind: output, shape index: {}]
  %s13 = sld [smem:[#allocation0]]
  $region58: #{tpu_custom_call.1} parent=0
    _
  %s15 = ssub.s32 1, %s13
  %s16 = scalar_select 0, %s15, %s13
  $region1: #{tpu_custom_call.1} parent=0
    #allocation3 [shape = 'u8[1024]{0}', space=vmem, size = 0x400, scoped, tag = 'output window, operand 0, single buffered']
    #allocation4 [shape = 's32[1]{0}', space=sflag, size = 0x4, scoped, tag = 'scoped memory for tpu_custom_call.1']
    %17 = vsyncpa [#allocation4], 0
    // Predicated region
    $region2: #{tpu_custom_call.1} parent=1 // pred_check
      _
    $region3: #{tpu_custom_call.1} parent=1 // pred_check_branch
      %19 = sbr.rel (0) target = $region5
    $region4: #{tpu_custom_call.1} parent=1 // pred_region
      _
    $region5: #{tpu_custom_call.1} parent=1 // pred_fallthru
      _
    // Predicated region
    $region6: #{tpu_custom_call.1} parent=1 // pred_check
      _
    $region7: #{tpu_custom_call.1} parent=1 // pred_check_branch
      %21 = sbr.rel (0) target = $region9
    $region8: #{tpu_custom_call.1} parent=1 // pred_region
      _
    $region9: #{tpu_custom_call.1} parent=1 // pred_fallthru
      _
    // Predicated region
    $region10: #{tpu_custom_call.1} parent=1 // pred_check
      _
    $region11: #{tpu_custom_call.1} parent=1 // pred_check_branch
      %23 = sbr.rel (0) target = $region13
    $region12: #{tpu_custom_call.1} parent=1 // pred_region
      _
    $region13: #{tpu_custom_call.1} parent=1 // pred_fallthru
      _
    // Predicated region
    $region14: #{tpu_custom_call.1} parent=1 // pred_check
      _
    $region15: #{tpu_custom_call.1} parent=1 // pred_check_branch
      %25 = sbr.rel (0) target = $region17
    $region16: #{tpu_custom_call.1} parent=1 // pred_region
      _
    $region17: #{tpu_custom_call.1} parent=1 // pred_fallthru
      _
    // Predicated region
    $region18: #{tpu_custom_call.1} parent=1 // pred_check
      _
    $region19: #{tpu_custom_call.1} parent=1 // pred_check_branch
      %27 = sbr.rel (0) target = $region21
    $region20: #{tpu_custom_call.1} parent=1 // pred_region
      _
    $region21: #{tpu_custom_call.1} parent=1 // pred_fallthru
      _
    // Predicated region
    $region22: #{tpu_custom_call.1} parent=1 // pred_check
      _
    $region23: #{tpu_custom_call.1} parent=1 // pred_check_branch
      %29 = sbr.rel (0) target = $region25
    $region24: #{tpu_custom_call.1} parent=1 // pred_region
      _
    $region25: #{tpu_custom_call.1} parent=1 // pred_fallthru
      _
    // Predicated region
    $region26: #{tpu_custom_call.1} parent=1 // pred_check
      _
    $region27: #{tpu_custom_call.1} parent=1 // pred_check_branch
      %31 = sbr.rel (0) target = $region29
    $region28: #{tpu_custom_call.1} parent=1 // pred_region
      _
    $region29: #{tpu_custom_call.1} parent=1 // pred_fallthru
      _
    // Predicated region
    $region30: #{tpu_custom_call.1} parent=1 // pred_check
      _
    $region31: #{tpu_custom_call.1} parent=1 // pred_check_branch
      %33 = sbr.rel (0) target = $region33
    $region32: #{tpu_custom_call.1} parent=1 // pred_region
      _
    $region33: #{tpu_custom_call.1} parent=1 // pred_fallthru
      _
    // Predicated region
    $region34: #{tpu_custom_call.1} parent=1 // pred_check
      _
    $region35: #{tpu_custom_call.1} parent=1 // pred_check_branch
      %35 = sbr.rel (0) target = $region37
    $region36: #{tpu_custom_call.1} parent=1 // pred_region
      _
    $region37: #{tpu_custom_call.1} parent=1 // pred_fallthru
      _
    // Predicated region
    $region38: #{tpu_custom_call.1} parent=1 // pred_check
      _
    $region39: #{tpu_custom_call.1} parent=1 // pred_check_branch
      %37 = sbr.rel (0) target = $region41
    $region40: #{tpu_custom_call.1} parent=1 // pred_region
      _
    $region41: #{tpu_custom_call.1} parent=1 // pred_fallthru
      _
    // Predicated region
    $region42: #{tpu_custom_call.1} parent=1 // pred_check
      _
    $region43: #{tpu_custom_call.1} parent=1 // pred_check_branch
      %39 = sbr.rel (0) target = $region45
    $region44: #{tpu_custom_call.1} parent=1 // pred_region
      _
    $region45: #{tpu_custom_call.1} parent=1 // pred_fallthru
      _
    // Predicated region
    $region46: #{tpu_custom_call.1} parent=1 // pred_check
      _
    $region47: #{tpu_custom_call.1} parent=1 // pred_check_branch
      %41 = sbr.rel (0) target = $region49
    $region48: #{tpu_custom_call.1} parent=1 // pred_region
      _
    $region49: #{tpu_custom_call.1} parent=1 // pred_fallthru
      _
    %v42 = vld [vmem:[%s0] sm:$0xff]
    %v43 = vld [vmem:[%s0 + $0x8] sm:$0xff]
    %v44 = vld [vmem:[%s1] sm:$0xff]
    %v45 = vld [vmem:[%s1 + $0x8] sm:$0xff]
    %v46 = vld [vmem:[%s2] sm:$0x3]
    %v48 = vlaneseq
    %v49 = vshrl.u32 %v48, 7
    %v50 = vsub.s32 0, %v49
    %v51 = vrot.slane %v46, %v50
    %v52 = vlaneseq
    %v53 = vshrl.u32 %v52, 7
    %v54 = vsub.s32 1, %v53
    %v55 = vrot.slane %v46, %v54
    %vm58 = vcmask 64512
    %v60 = vsel %vm58, %v42, 0
    %v63 = vsel %vm58, %v43, 0
    %65 = vmatprep.subr.mxu0 %v45
    %66 = vmatpush1.msra.mxu0 %v44
    %67 = vmatprep.subr.mxu0 0.0
    %68 = vmatpush1.msra.mxu0 0.0
    %69 = vmatprep.subr.mxu0 0.0
    %70 = vmatpush1.msra.mxu0 0.0
    %71 = vmatprep.subr.mxu0 0.0
    %72 = vmatpush1.msra.mxu0 0.0
    %73 = vmatprep.subr.mxu0 0.0
    %74 = vmatpush1.msra.mxu0 0.0
    %75 = vmatprep.subr.mxu0 0.0
    %76 = vmatpush1.msra.mxu0 0.0
    %77 = vmatprep.subr.mxu0 0.0
    %78 = vmatpush1.msra.mxu0 0.0
    %79 = vmatprep.subr.mxu0 0.0
    %80 = vmatpush1.msra.mxu0 0.0
    %81 = vmatprep.subr.mxu0 0.0
    %82 = vmatpush1.msra.mxu0 0.0
    %83 = vmatprep.subr.mxu0 0.0
    %84 = vmatpush1.msra.mxu0 0.0
    %85 = vmatprep.subr.mxu0 0.0
    %86 = vmatpush1.msra.mxu0 0.0
    %87 = vmatprep.subr.mxu0 0.0
    %88 = vmatpush1.msra.mxu0 0.0
    %89 = vmatprep.subr.mxu0 0.0
    %90 = vmatpush1.msra.mxu0 0.0
    %91 = vmatprep.subr.mxu0 0.0
    %92 = vmatpush1.msra.mxu0 0.0
    %93 = vmatprep.subr.mxu0 0.0
    %94 = vmatpush1.msra.mxu0 0.0
    %95 = vmatprep.subr.mxu0 0.0
    %96 = vmatpush1.msra.mxu0 0.0
    %97 = vmatprep.subr.mxu0 0.0
    %98 = vmatpush1.msra.mxu0 0.0
    %99 = vmatprep.subr.mxu0 0.0
    %100 = vmatpush1.msra.mxu0 0.0
    %101 = vmatprep.subr.mxu0 0.0
    %102 = vmatpush1.msra.mxu0 0.0
    %103 = vmatprep.subr.mxu0 0.0
    %104 = vmatpush1.msra.mxu0 0.0
    %105 = vmatprep.subr.mxu0 0.0
    %106 = vmatpush1.msra.mxu0 0.0
    %107 = vmatprep.subr.mxu0 0.0
    %108 = vmatpush1.msra.mxu0 0.0
    %109 = vmatprep.subr.mxu0 0.0
    %110 = vmatpush1.msra.mxu0 0.0
    %111 = vmatprep.subr.mxu0 0.0
    %112 = vmatpush1.msra.mxu0 0.0
    %113 = vmatprep.subr.mxu0 0.0
    %114 = vmatpush1.msra.mxu0 0.0
    %115 = vmatprep.subr.mxu0 0.0
    %116 = vmatpush1.msra.mxu0 0.0
    %117 = vmatprep.subr.mxu0 0.0
    %118 = vmatpush1.msra.mxu0 0.0
    %119 = vmatprep.subr.mxu0 0.0
    %120 = vmatpush1.msra.mxu0 0.0
    %121 = vmatprep.subr.mxu0 0.0
    %122 = vmatpush1.msra.mxu0 0.0
    %123 = vmatprep.subr.mxu0 0.0
    %124 = vmatpush1.msra.mxu0 0.0
    %125 = vmatprep.subr.mxu0 0.0
    %126 = vmatpush1.msra.mxu0 0.0
    %127 = vmatprep.subr.mxu0 0.0
    %128 = vmatpush1.msra.mxu0 0.0
    %129 = vmatprep.mubr.f32.mxu0 0.0
    %130 = vmatmul.mubr.f32.gmra.mrb[0].mxu0 %v60
    %v131 = vpop.f32.mrb[0].mxu0
    %v132 = vadd.f32 %v51, %v131
    %v133 = vpop.f32.mrb[0].mxu0
    %v134 = vadd.f32 %v55, %v133
    %135 = vmatprep.mubr.f32.mxu0 0.0
    %136 = vmatmul.mubr.f32.gmra.mrb[0].mxu0 %v63
    %v137 = vpop.f32.mrb[0].mxu0
    %v138 = vadd.f32 %v51, %v137
    %v139 = vpop.f32.mrb[0].mxu0
    %v140 = vadd.f32 %v55, %v139
    %141 = vdwg.mxu0
    %v142 = vld [vmem:[%s3] sm:$0xff]
    %v143 = vld [vmem:[%s3 + $0x8] sm:$0xff]
    %v144 = vld [vmem:[%s3 + $0x10] sm:$0xff]
    %v145 = vld [vmem:[%s3 + $0x18] sm:$0xff]
    %v146 = vld [vmem:[%s3 + $0x20] sm:$0xff]
    %v147 = vld [vmem:[%s3 + $0x28] sm:$0xff]
    %v148 = vld [vmem:[%s3 + $0x30] sm:$0xff]
    %v149 = vld [vmem:[%s3 + $0x38] sm:$0xff]
    %v150 = vld [vmem:[%s3 + $0x40] sm:$0xff]
    %v151 = vld [vmem:[%s3 + $0x48] sm:$0xff]
    %v152 = vld [vmem:[%s3 + $0x50] sm:$0xff]
    %v153 = vld [vmem:[%s3 + $0x58] sm:$0xff]
    %v154 = vld [vmem:[%s3 + $0x60] sm:$0xff]
    %v155 = vld [vmem:[%s3 + $0x68] sm:$0xff]
    %v156 = vld [vmem:[%s3 + $0x70] sm:$0xff]
    %v157 = vld [vmem:[%s3 + $0x78] sm:$0xff]
    %vm158 = vcmask 523264
    %v160 = vsel %vm158, 0.0, 0
    %162 = vmatprep.subr.mxu0 %v143
    %163 = vmatpush1.msra.mxu0 %v142
    %164 = vmatprep.subr.mxu0 %v145
    %165 = vmatpush1.msra.mxu0 %v144
    %166 = vmatprep.subr.mxu0 %v147
    %167 = vmatpush1.msra.mxu0 %v146
    %168 = vmatprep.subr.mxu0 %v149
    %169 = vmatpush1.msra.mxu0 %v148
    %170 = vmatprep.subr.mxu0 %v151
    %171 = vmatpush1.msra.mxu0 %v150
    %172 = vmatprep.subr.mxu0 %v153
    %173 = vmatpush1.msra.mxu0 %v152
    %174 = vmatprep.subr.mxu0 %v155
    %175 = vmatpush1.msra.mxu0 %v154
    %176 = vmatprep.subr.mxu0 %v157
    %177 = vmatpush1.msra.mxu0 %v156
    %178 = vmatprep.subr.mxu0 0.0
    %179 = vmatpush1.msra.mxu0 0.0
    %180 = vmatprep.subr.mxu0 0.0
    %181 = vmatpush1.msra.mxu0 0.0
    %182 = vmatprep.subr.mxu0 0.0
    %183 = vmatpush1.msra.mxu0 0.0
    %184 = vmatprep.subr.mxu0 0.0
    %185 = vmatpush1.msra.mxu0 0.0
    %186 = vmatprep.subr.mxu0 0.0
    %187 = vmatpush1.msra.mxu0 0.0
    %188 = vmatprep.subr.mxu0 0.0
    %189 = vmatpush1.msra.mxu0 0.0
    %190 = vmatprep.subr.mxu0 0.0
    %191 = vmatpush1.msra.mxu0 0.0
    %192 = vmatprep.subr.mxu0 0.0
    %193 = vmatpush1.msra.mxu0 0.0
    %194 = vmatprep.subr.mxu0 0.0
    %195 = vmatpush1.msra.mxu0 0.0
    %196 = vmatprep.subr.mxu0 0.0
    %197 = vmatpush1.msra.mxu0 0.0
    %198 = vmatprep.subr.mxu0 0.0
    %199 = vmatpush1.msra.mxu0 0.0
    %200 = vmatprep.subr.mxu0 0.0
    %201 = vmatpush1.msra.mxu0 0.0
    %202 = vmatprep.subr.mxu0 0.0
    %203 = vmatpush1.msra.mxu0 0.0
    %204 = vmatprep.subr.mxu0 0.0
    %205 = vmatpush1.msra.mxu0 0.0
    %206 = vmatprep.subr.mxu0 0.0
    %207 = vmatpush1.msra.mxu0 0.0
    %208 = vmatprep.subr.mxu0 0.0
    %209 = vmatpush1.msra.mxu0 0.0
    %210 = vmatprep.subr.mxu0 0.0
    %211 = vmatpush1.msra.mxu0 0.0
    %212 = vmatprep.subr.mxu0 0.0
    %213 = vmatpush1.msra.mxu0 0.0
    %214 = vmatprep.subr.mxu0 0.0
    %215 = vmatpush1.msra.mxu0 0.0
    %216 = vmatprep.subr.mxu0 0.0
    %217 = vmatpush1.msra.mxu0 0.0
    %218 = vmatprep.subr.mxu0 0.0
    %219 = vmatpush1.msra.mxu0 0.0
    %220 = vmatprep.subr.mxu0 0.0
    %221 = vmatpush1.msra.mxu0 0.0
    %222 = vmatprep.subr.mxu0 0.0
    %223 = vmatpush1.msra.mxu0 0.0
    %224 = vmatprep.subr.mxu0 0.0
    %225 = vmatpush1.msra.mxu0 0.0
    %226 = vmatprep.mubr.f32.mxu0 0.0
    %227 = vmatmul.mubr.f32.gmra.mrb[0].mxu0 %v160
    %v228 = vpop.f32.mrb[0].mxu0
    %v229 = vadd.f32 0.0, %v228
    %v230 = vpop.f32.mrb[0].mxu0
    %v231 = vadd.f32 0.0, %v230
    %232 = vdwg.mxu0
    %v233 = vadd.f32 %v132, %v229
    %v234 = vadd.f32 %v134, %v231
    %v235 = vxor.u32 %v233, 2147483648
    %v236 = vxor.u32 %v234, 2147483648
    %v237 = vmul.f32 %v235, 1.442695
    %v238 = vpow.pop %v237
    %v239 = vmul.f32 %v236, 1.442695
    %v240 = vpow.pop %v239
    %v241 = vadd.f32 %v238, 1.0
    %v242 = vadd.f32 %v240, 1.0
    %v243 = vrcp.pop %v241
    %v244 = vmul.f32 1.0, %v243
    %v245 = vrcp.pop %v242
    %v246 = vmul.f32 1.0, %v245
    %v247 = vtanh.pop %v234
    %v248 = vmul.f32 %v244, 0.0
    %250 = vrot.lane.b32.xlu0 %v247, 64
    %v251 = vpop.permute.xlu0 %250
    %v253 = vmul.f32 %v244, %v251
    %255 = vrot.lane.b32.xlu0 %v253, 64
    %v256 = vpop.permute.xlu0 %255
    %v258 = vadd.f32 %v248, %v256
    %v259 = vtanh.pop %v258
    %261 = vrot.lane.b32.xlu0 %v259, 64
    %v262 = vpop.permute.xlu0 %261
    %v264 = vmul.f32 %v246, %v262
    %vm265 = vcmask 254976
    %266 = vst.msk [vmem:[#allocation2] sm:$0x3] %vm265, %v264
    %vm267 = vcmask 517376
    %268 = vst.msk [vmem:[#allocation2 + $0xe] sm:$0x3] %vm267, %v264
    %v270 = vsel %vm158, %v264, 0
    %272 = vmatprep.subr.mxu0 %v143
    %273 = vmatpush1.msra.mxu0 %v142
    %274 = vmatprep.subr.mxu0 %v145
    %275 = vmatpush1.msra.mxu0 %v144
    %276 = vmatprep.subr.mxu0 %v147
    %277 = vmatpush1.msra.mxu0 %v146
    %278 = vmatprep.subr.mxu0 %v149
    %279 = vmatpush1.msra.mxu0 %v148
    %280 = vmatprep.subr.mxu0 %v151
    %281 = vmatpush1.msra.mxu0 %v150
    %282 = vmatprep.subr.mxu0 %v153
    %283 = vmatpush1.msra.mxu0 %v152
    %284 = vmatprep.subr.mxu0 %v155
    %285 = vmatpush1.msra.mxu0 %v154
    %286 = vmatprep.subr.mxu0 %v157
    %287 = vmatpush1.msra.mxu0 %v156
    %288 = vmatprep.subr.mxu0 0.0
    %289 = vmatpush1.msra.mxu0 0.0
    %290 = vmatprep.subr.mxu0 0.0
    %291 = vmatpush1.msra.mxu0 0.0
    %292 = vmatprep.subr.mxu0 0.0
    %293 = vmatpush1.msra.mxu0 0.0
    %294 = vmatprep.subr.mxu0 0.0
    %295 = vmatpush1.msra.mxu0 0.0
    %296 = vmatprep.subr.mxu0 0.0
    %297 = vmatpush1.msra.mxu0 0.0
    %298 = vmatprep.subr.mxu0 0.0
    %299 = vmatpush1.msra.mxu0 0.0
    %300 = vmatprep.subr.mxu0 0.0
    %301 = vmatpush1.msra.mxu0 0.0
    %302 = vmatprep.subr.mxu0 0.0
    %303 = vmatpush1.msra.mxu0 0.0
    %304 = vmatprep.subr.mxu0 0.0
    %305 = vmatpush1.msra.mxu0 0.0
    %306 = vmatprep.subr.mxu0 0.0
    %307 = vmatpush1.msra.mxu0 0.0
    %308 = vmatprep.subr.mxu0 0.0
    %309 = vmatpush1.msra.mxu0 0.0
    %310 = vmatprep.subr.mxu0 0.0
    %311 = vmatpush1.msra.mxu0 0.0
    %312 = vmatprep.subr.mxu0 0.0
    %313 = vmatpush1.msra.mxu0 0.0
    %314 = vmatprep.subr.mxu0 0.0
    %315 = vmatpush1.msra.mxu0 0.0
    %316 = vmatprep.subr.mxu0 0.0
    %317 = vmatpush1.msra.mxu0 0.0
    %318 = vmatprep.subr.mxu0 0.0
    %319 = vmatpush1.msra.mxu0 0.0
    %320 = vmatprep.subr.mxu0 0.0
    %321 = vmatpush1.msra.mxu0 0.0
    %322 = vmatprep.subr.mxu0 0.0
    %323 = vmatpush1.msra.mxu0 0.0
    %324 = vmatprep.subr.mxu0 0.0
    %325 = vmatpush1.msra.mxu0 0.0
    %326 = vmatprep.subr.mxu0 0.0
    %327 = vmatpush1.msra.mxu0 0.0
    %328 = vmatprep.subr.mxu0 0.0
    %329 = vmatpush1.msra.mxu0 0.0
    %330 = vmatprep.subr.mxu0 0.0
    %331 = vmatpush1.msra.mxu0 0.0
    %332 = vmatprep.subr.mxu0 0.0
    %333 = vmatpush1.msra.mxu0 0.0
    %334 = vmatprep.subr.mxu0 0.0
    %335 = vmatpush1.msra.mxu0 0.0
    %336 = vmatprep.mubr.f32.mxu0 0.0
    %337 = vmatmul.mubr.f32.gmra.mrb[0].mxu0 %v270
    %v338 = vpop.f32.mrb[0].mxu0
    %v339 = vadd.f32 0.0, %v338
    %v340 = vpop.f32.mrb[0].mxu0
    %v341 = vadd.f32 0.0, %v340
    %342 = vdwg.mxu0
    %v345 = vrot.slane %v339, 6
    %v346 = vrot.slane %v341, 6
    %v349 = vadd.f32 %v132, %v345
    %v350 = vadd.f32 %v134, %v346
    %v351 = vxor.u32 %v349, 2147483648
    %v352 = vxor.u32 %v350, 2147483648
    %v353 = vmul.f32 %v351, 1.442695
    %v354 = vpow.pop %v353
    %v355 = vmul.f32 %v352, 1.442695
    %v356 = vpow.pop %v355
    %v357 = vadd.f32 %v354, 1.0
    %v358 = vadd.f32 %v356, 1.0
    %v359 = vrcp.pop %v357
    %v360 = vmul.f32 1.0, %v359
    %v361 = vrcp.pop %v358
    %v362 = vmul.f32 1.0, %v361
    %v363 = vtanh.pop %v350
    %v365 = vrot.slane %v258, 6
    %v367 = vmul.f32 %v360, %v365
    %369 = vrot.lane.b32.xlu0 %v363, 64
    %v370 = vpop.permute.xlu0 %369
    %v372 = vmul.f32 %v360, %v370
    %374 = vrot.lane.b32.xlu0 %v372, 64
    %v375 = vpop.permute.xlu0 %374
    %v377 = vadd.f32 %v367, %v375
    %v378 = vtanh.pop %v377
    %380 = vrot.lane.b32.xlu0 %v378, 64
    %v381 = vpop.permute.xlu0 %380
    %v383 = vmul.f32 %v362, %v381
    %vm384 = vcmask 257026
    %385 = vst.msk [vmem:[#allocation2] sm:$0xc] %vm384, %v383
    %vm386 = vcmask 519426
    %387 = vst.msk [vmem:[#allocation2 + $0xa] sm:$0xc] %vm386, %v383
    %v389 = vrot.slane %v383, 2
    %v390 = vsel %vm158, %v389, 0
    %392 = vmatprep.subr.mxu0 %v143
    %393 = vmatpush1.msra.mxu0 %v142
    %394 = vmatprep.subr.mxu0 %v145
    %395 = vmatpush1.msra.mxu0 %v144
    %396 = vmatprep.subr.mxu0 %v147
    %397 = vmatpush1.msra.mxu0 %v146
    %398 = vmatprep.subr.mxu0 %v149
    %399 = vmatpush1.msra.mxu0 %v148
    %400 = vmatprep.subr.mxu0 %v151
    %401 = vmatpush1.msra.mxu0 %v150
    %402 = vmatprep.subr.mxu0 %v153
    %403 = vmatpush1.msra.mxu0 %v152
    %404 = vmatprep.subr.mxu0 %v155
    %405 = vmatpush1.msra.mxu0 %v154
    %406 = vmatprep.subr.mxu0 %v157
    %407 = vmatpush1.msra.mxu0 %v156
    %408 = vmatprep.subr.mxu0 0.0
    %409 = vmatpush1.msra.mxu0 0.0
    %410 = vmatprep.subr.mxu0 0.0
    %411 = vmatpush1.msra.mxu0 0.0
    %412 = vmatprep.subr.mxu0 0.0
    %413 = vmatpush1.msra.mxu0 0.0
    %414 = vmatprep.subr.mxu0 0.0
    %415 = vmatpush1.msra.mxu0 0.0
    %416 = vmatprep.subr.mxu0 0.0
    %417 = vmatpush1.msra.mxu0 0.0
    %418 = vmatprep.subr.mxu0 0.0
    %419 = vmatpush1.msra.mxu0 0.0
    %420 = vmatprep.subr.mxu0 0.0
    %421 = vmatpush1.msra.mxu0 0.0
    %422 = vmatprep.subr.mxu0 0.0
    %423 = vmatpush1.msra.mxu0 0.0
    %424 = vmatprep.subr.mxu0 0.0
    %425 = vmatpush1.msra.mxu0 0.0
    %426 = vmatprep.subr.mxu0 0.0
    %427 = vmatpush1.msra.mxu0 0.0
    %428 = vmatprep.subr.mxu0 0.0
    %429 = vmatpush1.msra.mxu0 0.0
    %430 = vmatprep.subr.mxu0 0.0
    %431 = vmatpush1.msra.mxu0 0.0
    %432 = vmatprep.subr.mxu0 0.0
    %433 = vmatpush1.msra.mxu0 0.0
    %434 = vmatprep.subr.mxu0 0.0
    %435 = vmatpush1.msra.mxu0 0.0
    %436 = vmatprep.subr.mxu0 0.0
    %437 = vmatpush1.msra.mxu0 0.0
    %438 = vmatprep.subr.mxu0 0.0
    %439 = vmatpush1.msra.mxu0 0.0
    %440 = vmatprep.subr.mxu0 0.0
    %441 = vmatpush1.msra.mxu0 0.0
    %442 = vmatprep.subr.mxu0 0.0
    %443 = vmatpush1.msra.mxu0 0.0
    %444 = vmatprep.subr.mxu0 0.0
    %445 = vmatpush1.msra.mxu0 0.0
    %446 = vmatprep.subr.mxu0 0.0
    %447 = vmatpush1.msra.mxu0 0.0
    %448 = vmatprep.subr.mxu0 0.0
    %449 = vmatpush1.msra.mxu0 0.0
    %450 = vmatprep.subr.mxu0 0.0
    %451 = vmatpush1.msra.mxu0 0.0
    %452 = vmatprep.subr.mxu0 0.0
    %453 = vmatpush1.msra.mxu0 0.0
    %454 = vmatprep.subr.mxu0 0.0
    %455 = vmatpush1.msra.mxu0 0.0
    %456 = vmatprep.mubr.f32.mxu0 0.0
    %457 = vmatmul.mubr.f32.gmra.mrb[0].mxu0 %v390
    %v458 = vpop.f32.mrb[0].mxu0
    %v459 = vadd.f32 0.0, %v458
    %v460 = vpop.f32.mrb[0].mxu0
    %v461 = vadd.f32 0.0, %v460
    %462 = vdwg.mxu0
    %v465 = vrot.slane %v459, 4
    %v466 = vrot.slane %v461, 4
    %v469 = vadd.f32 %v132, %v465
    %v470 = vadd.f32 %v134, %v466
    %v471 = vxor.u32 %v469, 2147483648
    %v472 = vxor.u32 %v470, 2147483648
    %v473 = vmul.f32 %v471, 1.442695
    %v474 = vpow.pop %v473
    %v475 = vmul.f32 %v472, 1.442695
    %v476 = vpow.pop %v475
    %v477 = vadd.f32 %v474, 1.0
    %v478 = vadd.f32 %v476, 1.0
    %v479 = vrcp.pop %v477
    %v480 = vmul.f32 1.0, %v479
    %v481 = vrcp.pop %v478
    %v482 = vmul.f32 1.0, %v481
    %v483 = vtanh.pop %v470
    %v485 = vrot.slane %v377, 6
    %v487 = vmul.f32 %v480, %v485
    %489 = vrot.lane.b32.xlu0 %v483, 64
    %v490 = vpop.permute.xlu0 %489
    %v492 = vmul.f32 %v480, %v490
    %494 = vrot.lane.b32.xlu0 %v492, 64
    %v495 = vpop.permute.xlu0 %494
    %v497 = vadd.f32 %v487, %v495
    %v498 = vtanh.pop %v497
    %500 = vrot.lane.b32.xlu0 %v498, 64
    %v501 = vpop.permute.xlu0 %500
    %v503 = vmul.f32 %v482, %v501
    %vm504 = vcmask 259076
    %505 = vst.msk [vmem:[#allocation2] sm:$0x30] %vm504, %v503
    %vm506 = vcmask 521476
    %507 = vst.msk [vmem:[#allocation2 + $0x6] sm:$0x30] %vm506, %v503
    %v509 = vrot.slane %v503, 4
    %v510 = vsel %vm158, %v509, 0
    %512 = vmatprep.subr.mxu0 %v143
    %513 = vmatpush1.msra.mxu0 %v142
    %514 = vmatprep.subr.mxu0 %v145
    %515 = vmatpush1.msra.mxu0 %v144
    %516 = vmatprep.subr.mxu0 %v147
    %517 = vmatpush1.msra.mxu0 %v146
    %518 = vmatprep.subr.mxu0 %v149
    %519 = vmatpush1.msra.mxu0 %v148
    %520 = vmatprep.subr.mxu0 %v151
    %521 = vmatpush1.msra.mxu0 %v150
    %522 = vmatprep.subr.mxu0 %v153
    %523 = vmatpush1.msra.mxu0 %v152
    %524 = vmatprep.subr.mxu0 %v155
    %525 = vmatpush1.msra.mxu0 %v154
    %526 = vmatprep.subr.mxu0 %v157
    %527 = vmatpush1.msra.mxu0 %v156
    %528 = vmatprep.subr.mxu0 0.0
    %529 = vmatpush1.msra.mxu0 0.0
    %530 = vmatprep.subr.mxu0 0.0
    %531 = vmatpush1.msra.mxu0 0.0
    %532 = vmatprep.subr.mxu0 0.0
    %533 = vmatpush1.msra.mxu0 0.0
    %534 = vmatprep.subr.mxu0 0.0
    %535 = vmatpush1.msra.mxu0 0.0
    %536 = vmatprep.subr.mxu0 0.0
    %537 = vmatpush1.msra.mxu0 0.0
    %538 = vmatprep.subr.mxu0 0.0
    %539 = vmatpush1.msra.mxu0 0.0
    %540 = vmatprep.subr.mxu0 0.0
    %541 = vmatpush1.msra.mxu0 0.0
    %542 = vmatprep.subr.mxu0 0.0
    %543 = vmatpush1.msra.mxu0 0.0
    %544 = vmatprep.subr.mxu0 0.0
    %545 = vmatpush1.msra.mxu0 0.0
    %546 = vmatprep.subr.mxu0 0.0
    %547 = vmatpush1.msra.mxu0 0.0
    %548 = vmatprep.subr.mxu0 0.0
    %549 = vmatpush1.msra.mxu0 0.0
    %550 = vmatprep.subr.mxu0 0.0
    %551 = vmatpush1.msra.mxu0 0.0
    %552 = vmatprep.subr.mxu0 0.0
    %553 = vmatpush1.msra.mxu0 0.0
    %554 = vmatprep.subr.mxu0 0.0
    %555 = vmatpush1.msra.mxu0 0.0
    %556 = vmatprep.subr.mxu0 0.0
    %557 = vmatpush1.msra.mxu0 0.0
    %558 = vmatprep.subr.mxu0 0.0
    %559 = vmatpush1.msra.mxu0 0.0
    %560 = vmatprep.subr.mxu0 0.0
    %561 = vmatpush1.msra.mxu0 0.0
    %562 = vmatprep.subr.mxu0 0.0
    %563 = vmatpush1.msra.mxu0 0.0
    %564 = vmatprep.subr.mxu0 0.0
    %565 = vmatpush1.msra.mxu0 0.0
    %566 = vmatprep.subr.mxu0 0.0
    %567 = vmatpush1.msra.mxu0 0.0
    %568 = vmatprep.subr.mxu0 0.0
    %569 = vmatpush1.msra.mxu0 0.0
    %570 = vmatprep.subr.mxu0 0.0
    %571 = vmatpush1.msra.mxu0 0.0
    %572 = vmatprep.subr.mxu0 0.0
    %573 = vmatpush1.msra.mxu0 0.0
    %574 = vmatprep.subr.mxu0 0.0
    %575 = vmatpush1.msra.mxu0 0.0
    %576 = vmatprep.mubr.f32.mxu0 0.0
    %577 = vmatmul.mubr.f32.gmra.mrb[0].mxu0 %v510
    %v578 = vpop.f32.mrb[0].mxu0
    %v579 = vadd.f32 0.0, %v578
    %v580 = vpop.f32.mrb[0].mxu0
    %v581 = vadd.f32 0.0, %v580
    %582 = vdwg.mxu0
    %v585 = vrot.slane %v579, 2
    %v586 = vrot.slane %v581, 2
    %v589 = vadd.f32 %v132, %v585
    %v590 = vadd.f32 %v134, %v586
    %v591 = vxor.u32 %v589, 2147483648
    %v592 = vxor.u32 %v590, 2147483648
    %v593 = vmul.f32 %v591, 1.442695
    %v594 = vpow.pop %v593
    %v595 = vmul.f32 %v592, 1.442695
    %v596 = vpow.pop %v595
    %v597 = vadd.f32 %v594, 1.0
    %v598 = vadd.f32 %v596, 1.0
    %v599 = vrcp.pop %v597
    %v600 = vmul.f32 1.0, %v599
    %v601 = vrcp.pop %v598
    %v602 = vmul.f32 1.0, %v601
    %v603 = vtanh.pop %v590
    %v605 = vrot.slane %v497, 6
    %v607 = vmul.f32 %v600, %v605
    %609 = vrot.lane.b32.xlu0 %v603, 64
    %v610 = vpop.permute.xlu0 %609
    %v612 = vmul.f32 %v600, %v610
    %614 = vrot.lane.b32.xlu0 %v612, 64
    %v615 = vpop.permute.xlu0 %614
    %v617 = vadd.f32 %v607, %v615
    %v618 = vtanh.pop %v617
    %620 = vrot.lane.b32.xlu0 %v618, 64
    %v621 = vpop.permute.xlu0 %620
    %v623 = vmul.f32 %v602, %v621
    %vm624 = vcmask 261126
    %625 = vst.msk [vmem:[#allocation2] sm:$0xc0] %vm624, %v623
    %vm626 = vcmask 523526
    %627 = vst.msk [vmem:[#allocation2 + $0x2] sm:$0xc0] %vm626, %v623
    %v629 = vrot.slane %v623, 6
    %v630 = vsel %vm158, %v629, 0
    %632 = vmatprep.subr.mxu0 %v143
    %633 = vmatpush1.msra.mxu0 %v142
    %634 = vmatprep.subr.mxu0 %v145
    %635 = vmatpush1.msra.mxu0 %v144
    %636 = vmatprep.subr.mxu0 %v147
    %637 = vmatpush1.msra.mxu0 %v146
    %638 = vmatprep.subr.mxu0 %v149
    %639 = vmatpush1.msra.mxu0 %v148
    %640 = vmatprep.subr.mxu0 %v151
    %641 = vmatpush1.msra.mxu0 %v150
    %642 = vmatprep.subr.mxu0 %v153
    %643 = vmatpush1.msra.mxu0 %v152
    %644 = vmatprep.subr.mxu0 %v155
    %645 = vmatpush1.msra.mxu0 %v154
    %646 = vmatprep.subr.mxu0 %v157
    %647 = vmatpush1.msra.mxu0 %v156
    %648 = vmatprep.subr.mxu0 0.0
    %649 = vmatpush1.msra.mxu0 0.0
    %650 = vmatprep.subr.mxu0 0.0
    %651 = vmatpush1.msra.mxu0 0.0
    %652 = vmatprep.subr.mxu0 0.0
    %653 = vmatpush1.msra.mxu0 0.0
    %654 = vmatprep.subr.mxu0 0.0
    %655 = vmatpush1.msra.mxu0 0.0
    %656 = vmatprep.subr.mxu0 0.0
    %657 = vmatpush1.msra.mxu0 0.0
    %658 = vmatprep.subr.mxu0 0.0
    %659 = vmatpush1.msra.mxu0 0.0
    %660 = vmatprep.subr.mxu0 0.0
    %661 = vmatpush1.msra.mxu0 0.0
    %662 = vmatprep.subr.mxu0 0.0
    %663 = vmatpush1.msra.mxu0 0.0
    %664 = vmatprep.subr.mxu0 0.0
    %665 = vmatpush1.msra.mxu0 0.0
    %666 = vmatprep.subr.mxu0 0.0
    %667 = vmatpush1.msra.mxu0 0.0
    %668 = vmatprep.subr.mxu0 0.0
    %669 = vmatpush1.msra.mxu0 0.0
    %670 = vmatprep.subr.mxu0 0.0
    %671 = vmatpush1.msra.mxu0 0.0
    %672 = vmatprep.subr.mxu0 0.0
    %673 = vmatpush1.msra.mxu0 0.0
    %674 = vmatprep.subr.mxu0 0.0
    %675 = vmatpush1.msra.mxu0 0.0
    %676 = vmatprep.subr.mxu0 0.0
    %677 = vmatpush1.msra.mxu0 0.0
    %678 = vmatprep.subr.mxu0 0.0
    %679 = vmatpush1.msra.mxu0 0.0
    %680 = vmatprep.subr.mxu0 0.0
    %681 = vmatpush1.msra.mxu0 0.0
    %682 = vmatprep.subr.mxu0 0.0
    %683 = vmatpush1.msra.mxu0 0.0
    %684 = vmatprep.subr.mxu0 0.0
    %685 = vmatpush1.msra.mxu0 0.0
    %686 = vmatprep.subr.mxu0 0.0
    %687 = vmatpush1.msra.mxu0 0.0
    %688 = vmatprep.subr.mxu0 0.0
    %689 = vmatpush1.msra.mxu0 0.0
    %690 = vmatprep.subr.mxu0 0.0
    %691 = vmatpush1.msra.mxu0 0.0
    %692 = vmatprep.subr.mxu0 0.0
    %693 = vmatpush1.msra.mxu0 0.0
    %694 = vmatprep.subr.mxu0 0.0
    %695 = vmatpush1.msra.mxu0 0.0
    %696 = vmatprep.mubr.f32.mxu0 0.0
    %697 = vmatmul.mubr.f32.gmra.mrb[0].mxu0 %v630
    %v698 = vpop.f32.mrb[0].mxu0
    %v699 = vadd.f32 0.0, %v698
    %v700 = vpop.f32.mrb[0].mxu0
    %v701 = vadd.f32 0.0, %v700
    %702 = vdwg.mxu0
    %v703 = vadd.f32 %v138, %v699
    %v704 = vadd.f32 %v140, %v701
    %v705 = vxor.u32 %v703, 2147483648
    %v706 = vxor.u32 %v704, 2147483648
    %v707 = vmul.f32 %v705, 1.442695
    %v708 = vpow.pop %v707
    %v709 = vmul.f32 %v706, 1.442695
    %v710 = vpow.pop %v709
    %v711 = vadd.f32 %v708, 1.0
    %v712 = vadd.f32 %v710, 1.0
    %v713 = vrcp.pop %v711
    %v714 = vmul.f32 1.0, %v713
    %v715 = vrcp.pop %v712
    %v716 = vmul.f32 1.0, %v715
    %v717 = vtanh.pop %v704
    %v719 = vrot.slane %v617, 6
    %v721 = vmul.f32 %v714, %v719
    %723 = vrot.lane.b32.xlu0 %v717, 64
    %v724 = vpop.permute.xlu0 %723
    %v726 = vmul.f32 %v714, %v724
    %728 = vrot.lane.b32.xlu0 %v726, 64
    %v729 = vpop.permute.xlu0 %728
    %v731 = vadd.f32 %v721, %v729
    %v732 = vtanh.pop %v731
    %734 = vrot.lane.b32.xlu0 %v732, 64
    %v735 = vpop.permute.xlu0 %734
    %v737 = vmul.f32 %v716, %v735
    %738 = vst.msk [vmem:[#allocation2 + $0x8] sm:$0x3] %vm265, %v737
    %739 = vst.msk [vmem:[#allocation2 + $0x6] sm:$0x3] %vm267, %v737
    %v741 = vsel %vm158, %v737, 0
    %743 = vmatprep.subr.mxu0 %v143
    %744 = vmatpush1.msra.mxu0 %v142
    %745 = vmatprep.subr.mxu0 %v145
    %746 = vmatpush1.msra.mxu0 %v144
    %747 = vmatprep.subr.mxu0 %v147
    %748 = vmatpush1.msra.mxu0 %v146
    %749 = vmatprep.subr.mxu0 %v149
    %750 = vmatpush1.msra.mxu0 %v148
    %751 = vmatprep.subr.mxu0 %v151
    %752 = vmatpush1.msra.mxu0 %v150
    %753 = vmatprep.subr.mxu0 %v153
    %754 = vmatpush1.msra.mxu0 %v152
    %755 = vmatprep.subr.mxu0 %v155
    %756 = vmatpush1.msra.mxu0 %v154
    %757 = vmatprep.subr.mxu0 %v157
    %758 = vmatpush1.msra.mxu0 %v156
    %759 = vmatprep.subr.mxu0 0.0
    %760 = vmatpush1.msra.mxu0 0.0
    %761 = vmatprep.subr.mxu0 0.0
    %762 = vmatpush1.msra.mxu0 0.0
    %763 = vmatprep.subr.mxu0 0.0
    %764 = vmatpush1.msra.mxu0 0.0
    %765 = vmatprep.subr.mxu0 0.0
    %766 = vmatpush1.msra.mxu0 0.0
    %767 = vmatprep.subr.mxu0 0.0
    %768 = vmatpush1.msra.mxu0 0.0
    %769 = vmatprep.subr.mxu0 0.0
    %770 = vmatpush1.msra.mxu0 0.0
    %771 = vmatprep.subr.mxu0 0.0
    %772 = vmatpush1.msra.mxu0 0.0
    %773 = vmatprep.subr.mxu0 0.0
    %774 = vmatpush1.msra.mxu0 0.0
    %775 = vmatprep.subr.mxu0 0.0
    %776 = vmatpush1.msra.mxu0 0.0
    %777 = vmatprep.subr.mxu0 0.0
    %778 = vmatpush1.msra.mxu0 0.0
    %779 = vmatprep.subr.mxu0 0.0
    %780 = vmatpush1.msra.mxu0 0.0
    %781 = vmatprep.subr.mxu0 0.0
    %782 = vmatpush1.msra.mxu0 0.0
    %783 = vmatprep.subr.mxu0 0.0
    %784 = vmatpush1.msra.mxu0 0.0
    %785 = vmatprep.subr.mxu0 0.0
    %786 = vmatpush1.msra.mxu0 0.0
    %787 = vmatprep.subr.mxu0 0.0
    %788 = vmatpush1.msra.mxu0 0.0
    %789 = vmatprep.subr.mxu0 0.0
    %790 = vmatpush1.msra.mxu0 0.0
    %791 = vmatprep.subr.mxu0 0.0
    %792 = vmatpush1.msra.mxu0 0.0
    %793 = vmatprep.subr.mxu0 0.0
    %794 = vmatpush1.msra.mxu0 0.0
    %795 = vmatprep.subr.mxu0 0.0
    %796 = vmatpush1.msra.mxu0 0.0
    %797 = vmatprep.subr.mxu0 0.0
    %798 = vmatpush1.msra.mxu0 0.0
    %799 = vmatprep.subr.mxu0 0.0
    %800 = vmatpush1.msra.mxu0 0.0
    %801 = vmatprep.subr.mxu0 0.0
    %802 = vmatpush1.msra.mxu0 0.0
    %803 = vmatprep.subr.mxu0 0.0
    %804 = vmatpush1.msra.mxu0 0.0
    %805 = vmatprep.subr.mxu0 0.0
    %806 = vmatpush1.msra.mxu0 0.0
    %807 = vmatprep.mubr.f32.mxu0 0.0
    %808 = vmatmul.mubr.f32.gmra.mrb[0].mxu0 %v741
    %v809 = vpop.f32.mrb[0].mxu0
    %v810 = vadd.f32 0.0, %v809
    %v811 = vpop.f32.mrb[0].mxu0
    %v812 = vadd.f32 0.0, %v811
    %813 = vdwg.mxu0
    %v816 = vrot.slane %v810, 6
    %v817 = vrot.slane %v812, 6
    %v820 = vadd.f32 %v138, %v816
    %v821 = vadd.f32 %v140, %v817
    %v822 = vxor.u32 %v820, 2147483648
    %v823 = vxor.u32 %v821, 2147483648
    %v824 = vmul.f32 %v822, 1.442695
    %v825 = vpow.pop %v824
    %v826 = vmul.f32 %v823, 1.442695
    %v827 = vpow.pop %v826
    %v828 = vadd.f32 %v825, 1.0
    %v829 = vadd.f32 %v827, 1.0
    %v830 = vrcp.pop %v828
    %v831 = vmul.f32 1.0, %v830
    %v832 = vrcp.pop %v829
    %v833 = vmul.f32 1.0, %v832
    %v834 = vtanh.pop %v821
    %v836 = vrot.slane %v731, 6
    %v838 = vmul.f32 %v831, %v836
    %840 = vrot.lane.b32.xlu0 %v834, 64
    %v841 = vpop.permute.xlu0 %840
    %v843 = vmul.f32 %v831, %v841
    %845 = vrot.lane.b32.xlu0 %v843, 64
    %v846 = vpop.permute.xlu0 %845
    %v848 = vadd.f32 %v838, %v846
    %v849 = vtanh.pop %v848
    %851 = vrot.lane.b32.xlu0 %v849, 64
    %v852 = vpop.permute.xlu0 %851
    %v854 = vmul.f32 %v833, %v852
    %855 = vst.msk [vmem:[#allocation2 + $0x8] sm:$0xc] %vm384, %v854
    %856 = vst.msk [vmem:[#allocation2 + $0x2] sm:$0xc] %vm386, %v854
    %v858 = vrot.slane %v854, 2
    %v859 = vsel %vm158, %v858, 0
    %861 = vmatprep.subr.mxu0 %v143
    %862 = vmatpush1.msra.mxu0 %v142
    %863 = vmatprep.subr.mxu0 %v145
    %864 = vmatpush1.msra.mxu0 %v144
    %865 = vmatprep.subr.mxu0 %v147
    %866 = vmatpush1.msra.mxu0 %v146
    %867 = vmatprep.subr.mxu0 %v149
    %868 = vmatpush1.msra.mxu0 %v148
    %869 = vmatprep.subr.mxu0 %v151
    %870 = vmatpush1.msra.mxu0 %v150
    %871 = vmatprep.subr.mxu0 %v153
    %872 = vmatpush1.msra.mxu0 %v152
    %873 = vmatprep.subr.mxu0 %v155
    %874 = vmatpush1.msra.mxu0 %v154
    %875 = vmatprep.subr.mxu0 %v157
    %876 = vmatpush1.msra.mxu0 %v156
    %877 = vmatprep.subr.mxu0 0.0
    %878 = vmatpush1.msra.mxu0 0.0
    %879 = vmatprep.subr.mxu0 0.0
    %880 = vmatpush1.msra.mxu0 0.0
    %881 = vmatprep.subr.mxu0 0.0
    %882 = vmatpush1.msra.mxu0 0.0
    %883 = vmatprep.subr.mxu0 0.0
    %884 = vmatpush1.msra.mxu0 0.0
    %885 = vmatprep.subr.mxu0 0.0
    %886 = vmatpush1.msra.mxu0 0.0
    %887 = vmatprep.subr.mxu0 0.0
    %888 = vmatpush1.msra.mxu0 0.0
    %889 = vmatprep.subr.mxu0 0.0
    %890 = vmatpush1.msra.mxu0 0.0
    %891 = vmatprep.subr.mxu0 0.0
    %892 = vmatpush1.msra.mxu0 0.0
    %893 = vmatprep.subr.mxu0 0.0
    %894 = vmatpush1.msra.mxu0 0.0
    %895 = vmatprep.subr.mxu0 0.0
    %896 = vmatpush1.msra.mxu0 0.0
    %897 = vmatprep.subr.mxu0 0.0
    %898 = vmatpush1.msra.mxu0 0.0
    %899 = vmatprep.subr.mxu0 0.0
    %900 = vmatpush1.msra.mxu0 0.0
    %901 = vmatprep.subr.mxu0 0.0
    %902 = vmatpush1.msra.mxu0 0.0
    %903 = vmatprep.subr.mxu0 0.0
    %904 = vmatpush1.msra.mxu0 0.0
    %905 = vmatprep.subr.mxu0 0.0
    %906 = vmatpush1.msra.mxu0 0.0
    %907 = vmatprep.subr.mxu0 0.0
    %908 = vmatpush1.msra.mxu0 0.0
    %909 = vmatprep.subr.mxu0 0.0
    %910 = vmatpush1.msra.mxu0 0.0
    %911 = vmatprep.subr.mxu0 0.0
    %912 = vmatpush1.msra.mxu0 0.0
    %913 = vmatprep.subr.mxu0 0.0
    %914 = vmatpush1.msra.mxu0 0.0
    %915 = vmatprep.subr.mxu0 0.0
    %916 = vmatpush1.msra.mxu0 0.0
    %917 = vmatprep.subr.mxu0 0.0
    %918 = vmatpush1.msra.mxu0 0.0
    %919 = vmatprep.subr.mxu0 0.0
    %920 = vmatpush1.msra.mxu0 0.0
    %921 = vmatprep.subr.mxu0 0.0
    %922 = vmatpush1.msra.mxu0 0.0
    %923 = vmatprep.subr.mxu0 0.0
    %924 = vmatpush1.msra.mxu0 0.0
    %925 = vmatprep.mubr.f32.mxu0 0.0
    %926 = vmatmul.mubr.f32.gmra.mrb[0].mxu0 %v859
    %v927 = vpop.f32.mrb[0].mxu0
    %v928 = vadd.f32 0.0, %v927
    %v929 = vpop.f32.mrb[0].mxu0
    %v930 = vadd.f32 0.0, %v929
    %931 = vdwg.mxu0
    %v934 = vrot.slane %v928, 4
    %v935 = vrot.slane %v930, 4
    %v938 = vadd.f32 %v138, %v934
    %v939 = vadd.f32 %v140, %v935
    %v940 = vxor.u32 %v938, 2147483648
    %v941 = vxor.u32 %v939, 2147483648
    %v942 = vmul.f32 %v940, 1.442695
    %v943 = vpow.pop %v942
    %v944 = vmul.f32 %v941, 1.442695
    %v945 = vpow.pop %v944
    %v946 = vadd.f32 %v943, 1.0
    %v947 = vadd.f32 %v945, 1.0
    %v948 = vrcp.pop %v946
    %v949 = vmul.f32 1.0, %v948
    %v950 = vrcp.pop %v947
    %v951 = vmul.f32 1.0, %v950
    %v952 = vtanh.pop %v939
    %v954 = vrot.slane %v848, 6
    %v956 = vmul.f32 %v949, %v954
    %958 = vrot.lane.b32.xlu0 %v952, 64
    %v959 = vpop.permute.xlu0 %958
    %v961 = vmul.f32 %v949, %v959
    %963 = vrot.lane.b32.xlu0 %v961, 64
    %v964 = vpop.permute.xlu0 %963
    %v966 = vadd.f32 %v956, %v964
    %v967 = vtanh.pop %v966
    %969 = vrot.lane.b32.xlu0 %v967, 64
    %v970 = vpop.permute.xlu0 %969
    %v972 = vmul.f32 %v951, %v970
    %973 = vst.msk [vmem:[#allocation2 + $0x8] sm:$0x30] %vm504, %v972
    %974 = vst.msk [vmem:[#allocation2 - $0x2] sm:$0x30] %vm506, %v972
    %v976 = vrot.slane %v972, 4
    %v977 = vsel %vm158, %v976, 0
    %979 = vmatprep.subr.mxu0 %v143
    %980 = vmatpush1.msra.mxu0 %v142
    %981 = vmatprep.subr.mxu0 %v145
    %982 = vmatpush1.msra.mxu0 %v144
    %983 = vmatprep.subr.mxu0 %v147
    %984 = vmatpush1.msra.mxu0 %v146
    %985 = vmatprep.subr.mxu0 %v149
    %986 = vmatpush1.msra.mxu0 %v148
    %987 = vmatprep.subr.mxu0 %v151
    %988 = vmatpush1.msra.mxu0 %v150
    %989 = vmatprep.subr.mxu0 %v153
    %990 = vmatpush1.msra.mxu0 %v152
    %991 = vmatprep.subr.mxu0 %v155
    %992 = vmatpush1.msra.mxu0 %v154
    %993 = vmatprep.subr.mxu0 %v157
    %994 = vmatpush1.msra.mxu0 %v156
    %995 = vmatprep.subr.mxu0 0.0
    %996 = vmatpush1.msra.mxu0 0.0
    %997 = vmatprep.subr.mxu0 0.0
    %998 = vmatpush1.msra.mxu0 0.0
    %999 = vmatprep.subr.mxu0 0.0
    %1000 = vmatpush1.msra.mxu0 0.0
    %1001 = vmatprep.subr.mxu0 0.0
    %1002 = vmatpush1.msra.mxu0 0.0
    %1003 = vmatprep.subr.mxu0 0.0
    %1004 = vmatpush1.msra.mxu0 0.0
    %1005 = vmatprep.subr.mxu0 0.0
    %1006 = vmatpush1.msra.mxu0 0.0
    %1007 = vmatprep.subr.mxu0 0.0
    %1008 = vmatpush1.msra.mxu0 0.0
    %1009 = vmatprep.subr.mxu0 0.0
    %1010 = vmatpush1.msra.mxu0 0.0
    %1011 = vmatprep.subr.mxu0 0.0
    %1012 = vmatpush1.msra.mxu0 0.0
    %1013 = vmatprep.subr.mxu0 0.0
    %1014 = vmatpush1.msra.mxu0 0.0
    %1015 = vmatprep.subr.mxu0 0.0
    %1016 = vmatpush1.msra.mxu0 0.0
    %1017 = vmatprep.subr.mxu0 0.0
    %1018 = vmatpush1.msra.mxu0 0.0
    %1019 = vmatprep.subr.mxu0 0.0
    %1020 = vmatpush1.msra.mxu0 0.0
    %1021 = vmatprep.subr.mxu0 0.0
    %1022 = vmatpush1.msra.mxu0 0.0
    %1023 = vmatprep.subr.mxu0 0.0
    %1024 = vmatpush1.msra.mxu0 0.0
    %1025 = vmatprep.subr.mxu0 0.0
    %1026 = vmatpush1.msra.mxu0 0.0
    %1027 = vmatprep.subr.mxu0 0.0
    %1028 = vmatpush1.msra.mxu0 0.0
    %1029 = vmatprep.subr.mxu0 0.0
    %1030 = vmatpush1.msra.mxu0 0.0
    %1031 = vmatprep.subr.mxu0 0.0
    %1032 = vmatpush1.msra.mxu0 0.0
    %1033 = vmatprep.subr.mxu0 0.0
    %1034 = vmatpush1.msra.mxu0 0.0
    %1035 = vmatprep.subr.mxu0 0.0
    %1036 = vmatpush1.msra.mxu0 0.0
    %1037 = vmatprep.subr.mxu0 0.0
    %1038 = vmatpush1.msra.mxu0 0.0
    %1039 = vmatprep.subr.mxu0 0.0
    %1040 = vmatpush1.msra.mxu0 0.0
    %1041 = vmatprep.subr.mxu0 0.0
    %1042 = vmatpush1.msra.mxu0 0.0
    %1043 = vmatprep.mubr.f32.mxu0 0.0
    %1044 = vmatmul.mubr.f32.gmra.mrb[0].mxu0 %v977
    %v1045 = vpop.f32.mrb[0].mxu0
    %v1046 = vadd.f32 0.0, %v1045
    %v1047 = vpop.f32.mrb[0].mxu0
    %v1048 = vadd.f32 0.0, %v1047
    %1049 = vdwg.mxu0
    %v1052 = vrot.slane %v1046, 2
    %v1053 = vrot.slane %v1048, 2
    %v1056 = vadd.f32 %v138, %v1052
    %v1057 = vadd.f32 %v140, %v1053
    %v1058 = vxor.u32 %v1056, 2147483648
    %v1059 = vxor.u32 %v1057, 2147483648
    %v1060 = vmul.f32 %v1058, 1.442695
    %v1061 = vpow.pop %v1060
    %v1062 = vmul.f32 %v1059, 1.442695
    %v1063 = vpow.pop %v1062
    %v1064 = vadd.f32 %v1061, 1.0
    %v1065 = vadd.f32 %v1063, 1.0
    %v1066 = vrcp.pop %v1064
    %v1067 = vmul.f32 1.0, %v1066
    %v1068 = vrcp.pop %v1065
    %v1069 = vmul.f32 1.0, %v1068
    %v1070 = vtanh.pop %v1057
    %v1072 = vrot.slane %v966, 6
    %v1074 = vmul.f32 %v1067, %v1072
    %1076 = vrot.lane.b32.xlu0 %v1070, 64
    %v1077 = vpop.permute.xlu0 %1076
    %v1079 = vmul.f32 %v1067, %v1077
    %1081 = vrot.lane.b32.xlu0 %v1079, 64
    %v1082 = vpop.permute.xlu0 %1081
    %v1084 = vadd.f32 %v1074, %v1082
    %v1085 = vtanh.pop %v1084
    %1087 = vrot.lane.b32.xlu0 %v1085, 64
    %v1088 = vpop.permute.xlu0 %1087
    %v1090 = vmul.f32 %v1069, %v1088
    %1091 = vst.msk [vmem:[#allocation2 + $0x8] sm:$0xc0] %vm624, %v1090
    %1092 = vst.msk [vmem:[#allocation2 - $0x6] sm:$0xc0] %vm626, %v1090
    %v1093 = vld [vmem:[#allocation2] sm:$0xff]
    %v1094 = vld [vmem:[#allocation2 + $0x8] sm:$0xff]
    %v1095 = vld [vmem:[%s4] sm:$0xff]
    %v1096 = vld [vmem:[%s4 + $0x8] sm:$0xff]
    %v1097 = vld [vmem:[%s4 + $0x10] sm:$0xff]
    %v1098 = vld [vmem:[%s4 + $0x18] sm:$0xff]
    %v1099 = vld [vmem:[%s4 + $0x20] sm:$0xff]
    %v1100 = vld [vmem:[%s4 + $0x28] sm:$0xff]
    %v1101 = vld [vmem:[%s4 + $0x30] sm:$0xff]
    %v1102 = vld [vmem:[%s4 + $0x38] sm:$0xff]
    %v1103 = vld [vmem:[%s4 + $0x40] sm:$0xff]
    %v1104 = vld [vmem:[%s4 + $0x48] sm:$0xff]
    %v1105 = vld [vmem:[%s4 + $0x50] sm:$0xff]
    %v1106 = vld [vmem:[%s4 + $0x58] sm:$0xff]
    %v1107 = vld [vmem:[%s4 + $0x60] sm:$0xff]
    %v1108 = vld [vmem:[%s4 + $0x68] sm:$0xff]
    %v1109 = vld [vmem:[%s4 + $0x70] sm:$0xff]
    %v1110 = vld [vmem:[%s4 + $0x78] sm:$0xff]
    %v1111 = vld [vmem:[%s5] sm:$0x3]
    %v1113 = vlaneseq
    %v1114 = vshrl.u32 %v1113, 7
    %v1115 = vsub.s32 0, %v1114
    %v1116 = vrot.slane %v1111, %v1115
    %v1117 = vlaneseq
    %v1118 = vshrl.u32 %v1117, 7
    %v1119 = vsub.s32 1, %v1118
    %v1120 = vrot.slane %v1111, %v1119
    %v1124 = vsel %vm158, %v1093, 0
    %v1127 = vsel %vm158, %v1094, 0
    %1129 = vmatprep.subr.mxu0 %v1096
    %1130 = vmatpush1.msra.mxu0 %v1095
    %1131 = vmatprep.subr.mxu0 %v1098
    %1132 = vmatpush1.msra.mxu0 %v1097
    %1133 = vmatprep.subr.mxu0 %v1100
    %1134 = vmatpush1.msra.mxu0 %v1099
    %1135 = vmatprep.subr.mxu0 %v1102
    %1136 = vmatpush1.msra.mxu0 %v1101
    %1137 = vmatprep.subr.mxu0 %v1104
    %1138 = vmatpush1.msra.mxu0 %v1103
    %1139 = vmatprep.subr.mxu0 %v1106
    %1140 = vmatpush1.msra.mxu0 %v1105
    %1141 = vmatprep.subr.mxu0 %v1108
    %1142 = vmatpush1.msra.mxu0 %v1107
    %1143 = vmatprep.subr.mxu0 %v1110
    %1144 = vmatpush1.msra.mxu0 %v1109
    %1145 = vmatprep.subr.mxu0 0.0
    %1146 = vmatpush1.msra.mxu0 0.0
    %1147 = vmatprep.subr.mxu0 0.0
    %1148 = vmatpush1.msra.mxu0 0.0
    %1149 = vmatprep.subr.mxu0 0.0
    %1150 = vmatpush1.msra.mxu0 0.0
    %1151 = vmatprep.subr.mxu0 0.0
    %1152 = vmatpush1.msra.mxu0 0.0
    %1153 = vmatprep.subr.mxu0 0.0
    %1154 = vmatpush1.msra.mxu0 0.0
    %1155 = vmatprep.subr.mxu0 0.0
    %1156 = vmatpush1.msra.mxu0 0.0
    %1157 = vmatprep.subr.mxu0 0.0
    %1158 = vmatpush1.msra.mxu0 0.0
    %1159 = vmatprep.subr.mxu0 0.0
    %1160 = vmatpush1.msra.mxu0 0.0
    %1161 = vmatprep.subr.mxu0 0.0
    %1162 = vmatpush1.msra.mxu0 0.0
    %1163 = vmatprep.subr.mxu0 0.0
    %1164 = vmatpush1.msra.mxu0 0.0
    %1165 = vmatprep.subr.mxu0 0.0
    %1166 = vmatpush1.msra.mxu0 0.0
    %1167 = vmatprep.subr.mxu0 0.0
    %1168 = vmatpush1.msra.mxu0 0.0
    %1169 = vmatprep.subr.mxu0 0.0
    %1170 = vmatpush1.msra.mxu0 0.0
    %1171 = vmatprep.subr.mxu0 0.0
    %1172 = vmatpush1.msra.mxu0 0.0
    %1173 = vmatprep.subr.mxu0 0.0
    %1174 = vmatpush1.msra.mxu0 0.0
    %1175 = vmatprep.subr.mxu0 0.0
    %1176 = vmatpush1.msra.mxu0 0.0
    %1177 = vmatprep.subr.mxu0 0.0
    %1178 = vmatpush1.msra.mxu0 0.0
    %1179 = vmatprep.subr.mxu0 0.0
    %1180 = vmatpush1.msra.mxu0 0.0
    %1181 = vmatprep.subr.mxu0 0.0
    %1182 = vmatpush1.msra.mxu0 0.0
    %1183 = vmatprep.subr.mxu0 0.0
    %1184 = vmatpush1.msra.mxu0 0.0
    %1185 = vmatprep.subr.mxu0 0.0
    %1186 = vmatpush1.msra.mxu0 0.0
    %1187 = vmatprep.subr.mxu0 0.0
    %1188 = vmatpush1.msra.mxu0 0.0
    %1189 = vmatprep.subr.mxu0 0.0
    %1190 = vmatpush1.msra.mxu0 0.0
    %1191 = vmatprep.subr.mxu0 0.0
    %1192 = vmatpush1.msra.mxu0 0.0
    %1193 = vmatprep.mubr.f32.mxu0 0.0
    %1194 = vmatmul.mubr.f32.gmra.mrb[0].mxu0 %v1124
    %v1195 = vpop.f32.mrb[0].mxu0
    %v1196 = vadd.f32 %v1116, %v1195
    %v1197 = vpop.f32.mrb[0].mxu0
    %1198 = vmatprep.mubr.f32.mxu0 0.0
    %1199 = vmatmul.mubr.f32.gmra.mrb[0].mxu0 %v1127
    %v1200 = vpop.f32.mrb[0].mxu0
    %v1201 = vadd.f32 %v1116, %v1200
    %v1202 = vpop.f32.mrb[0].mxu0
    %v1203 = vadd.f32 %v1120, %v1202
    %1204 = vdwg.mxu0
    %v1205 = vld [vmem:[%s6] sm:$0xff]
    %v1206 = vld [vmem:[%s6 + $0x8] sm:$0xff]
    %v1207 = vld [vmem:[%s6 + $0x10] sm:$0xff]
    %v1208 = vld [vmem:[%s6 + $0x18] sm:$0xff]
    %vm1209 = vcmask 261120
    %v1210 = vsel %vm1209, 0.0, 0
    %1212 = vmatprep.subr.mxu0 0.0
    %1213 = vmatpush1.msra.mxu0 %v1205
    %1214 = vmatprep.subr.mxu0 0.0
    %1215 = vmatpush1.msra.mxu0 %v1206
    %1216 = vmatprep.subr.mxu0 0.0
    %1217 = vmatpush1.msra.mxu0 %v1207
    %1218 = vmatprep.subr.mxu0 0.0
    %1219 = vmatpush1.msra.mxu0 %v1208
    %1220 = vmatprep.subr.mxu0 0.0
    %1221 = vmatpush1.msra.mxu0 0.0
    %1222 = vmatprep.subr.mxu0 0.0
    %1223 = vmatpush1.msra.mxu0 0.0
    %1224 = vmatprep.subr.mxu0 0.0
    %1225 = vmatpush1.msra.mxu0 0.0
    %1226 = vmatprep.subr.mxu0 0.0
    %1227 = vmatpush1.msra.mxu0 0.0
    %1228 = vmatprep.subr.mxu0 0.0
    %1229 = vmatpush1.msra.mxu0 0.0
    %1230 = vmatprep.subr.mxu0 0.0
    %1231 = vmatpush1.msra.mxu0 0.0
    %1232 = vmatprep.subr.mxu0 0.0
    %1233 = vmatpush1.msra.mxu0 0.0
    %1234 = vmatprep.subr.mxu0 0.0
    %1235 = vmatpush1.msra.mxu0 0.0
    %1236 = vmatprep.subr.mxu0 0.0
    %1237 = vmatpush1.msra.mxu0 0.0
    %1238 = vmatprep.subr.mxu0 0.0
    %1239 = vmatpush1.msra.mxu0 0.0
    %1240 = vmatprep.subr.mxu0 0.0
    %1241 = vmatpush1.msra.mxu0 0.0
    %1242 = vmatprep.subr.mxu0 0.0
    %1243 = vmatpush1.msra.mxu0 0.0
    %1244 = vmatprep.subr.mxu0 0.0
    %1245 = vmatpush1.msra.mxu0 0.0
    %1246 = vmatprep.subr.mxu0 0.0
    %1247 = vmatpush1.msra.mxu0 0.0
    %1248 = vmatprep.subr.mxu0 0.0
    %1249 = vmatpush1.msra.mxu0 0.0
    %1250 = vmatprep.subr.mxu0 0.0
    %1251 = vmatpush1.msra.mxu0 0.0
    %1252 = vmatprep.subr.mxu0 0.0
    %1253 = vmatpush1.msra.mxu0 0.0
    %1254 = vmatprep.subr.mxu0 0.0
    %1255 = vmatpush1.msra.mxu0 0.0
    %1256 = vmatprep.subr.mxu0 0.0
    %1257 = vmatpush1.msra.mxu0 0.0
    %1258 = vmatprep.subr.mxu0 0.0
    %1259 = vmatpush1.msra.mxu0 0.0
    %1260 = vmatprep.subr.mxu0 0.0
    %1261 = vmatpush1.msra.mxu0 0.0
    %1262 = vmatprep.subr.mxu0 0.0
    %1263 = vmatpush1.msra.mxu0 0.0
    %1264 = vmatprep.subr.mxu0 0.0
    %1265 = vmatpush1.msra.mxu0 0.0
    %1266 = vmatprep.subr.mxu0 0.0
    %1267 = vmatpush1.msra.mxu0 0.0
    %1268 = vmatprep.subr.mxu0 0.0
    %1269 = vmatpush1.msra.mxu0 0.0
    %1270 = vmatprep.subr.mxu0 0.0
    %1271 = vmatpush1.msra.mxu0 0.0
    %1272 = vmatprep.subr.mxu0 0.0
    %1273 = vmatpush1.msra.mxu0 0.0
    %1274 = vmatprep.subr.mxu0 0.0
    %1275 = vmatpush1.msra.mxu0 0.0
    %1276 = vmatprep.mubr.f32.mxu0 0.0
    %1277 = vmatmul.mubr.f32.gmra.mrb[0].mxu0 %v1210
    %v1278 = vpop.f32.mrb[0].mxu0
    %v1279 = vadd.f32 0.0, %v1278
    %v1280 = vpop.f32.mrb[0].mxu0
    %1281 = vdwg.mxu0
    %v1282 = vadd.f32 %v1196, %v1279
    %v1283 = vxor.u32 %v1282, 2147483648
    %v1284 = vmul.f32 %v1283, 1.442695
    %v1285 = vpow.pop %v1284
    %v1286 = vadd.f32 %v1285, 1.0
    %v1287 = vrcp.pop %v1286
    %v1288 = vmul.f32 1.0, %v1287
    %v1289 = vtanh.pop %v1282
    %v1290 = vmul.f32 %v1288, 0.0
    %1292 = vrot.lane.b32.xlu0 %v1289, 32
    %v1293 = vpop.permute.xlu0 %1292
    %v1295 = vmul.f32 %v1288, %v1293
    %1297 = vrot.lane.b32.xlu0 %v1295, 32
    %v1298 = vpop.permute.xlu0 %1297
    %v1300 = vadd.f32 %v1290, %v1298
    %v1301 = vtanh.pop %v1300
    %1303 = vrot.lane.b32.xlu0 %v1301, 32
    %v1304 = vpop.permute.xlu0 %1303
    %v1306 = vmul.f32 %v1288, %v1304
    %1308 = vrot.lane.b32.xlu0 %v1306, 64
    %v1309 = vpop.permute.xlu0 %1308
    %v1310 = vsel %vm1209, %v1309, 0
    %1312 = vmatprep.subr.mxu0 0.0
    %1313 = vmatpush1.msra.mxu0 %v1205
    %1314 = vmatprep.subr.mxu0 0.0
    %1315 = vmatpush1.msra.mxu0 %v1206
    %1316 = vmatprep.subr.mxu0 0.0
    %1317 = vmatpush1.msra.mxu0 %v1207
    %1318 = vmatprep.subr.mxu0 0.0
    %1319 = vmatpush1.msra.mxu0 %v1208
    %1320 = vmatprep.subr.mxu0 0.0
    %1321 = vmatpush1.msra.mxu0 0.0
    %1322 = vmatprep.subr.mxu0 0.0
    %1323 = vmatpush1.msra.mxu0 0.0
    %1324 = vmatprep.subr.mxu0 0.0
    %1325 = vmatpush1.msra.mxu0 0.0
    %1326 = vmatprep.subr.mxu0 0.0
    %1327 = vmatpush1.msra.mxu0 0.0
    %1328 = vmatprep.subr.mxu0 0.0
    %1329 = vmatpush1.msra.mxu0 0.0
    %1330 = vmatprep.subr.mxu0 0.0
    %1331 = vmatpush1.msra.mxu0 0.0
    %1332 = vmatprep.subr.mxu0 0.0
    %1333 = vmatpush1.msra.mxu0 0.0
    %1334 = vmatprep.subr.mxu0 0.0
    %1335 = vmatpush1.msra.mxu0 0.0
    %1336 = vmatprep.subr.mxu0 0.0
    %1337 = vmatpush1.msra.mxu0 0.0
    %1338 = vmatprep.subr.mxu0 0.0
    %1339 = vmatpush1.msra.mxu0 0.0
    %1340 = vmatprep.subr.mxu0 0.0
    %1341 = vmatpush1.msra.mxu0 0.0
    %1342 = vmatprep.subr.mxu0 0.0
    %1343 = vmatpush1.msra.mxu0 0.0
    %1344 = vmatprep.subr.mxu0 0.0
    %1345 = vmatpush1.msra.mxu0 0.0
    %1346 = vmatprep.subr.mxu0 0.0
    %1347 = vmatpush1.msra.mxu0 0.0
    %1348 = vmatprep.subr.mxu0 0.0
    %1349 = vmatpush1.msra.mxu0 0.0
    %1350 = vmatprep.subr.mxu0 0.0
    %1351 = vmatpush1.msra.mxu0 0.0
    %1352 = vmatprep.subr.mxu0 0.0
    %1353 = vmatpush1.msra.mxu0 0.0
    %1354 = vmatprep.subr.mxu0 0.0
    %1355 = vmatpush1.msra.mxu0 0.0
    %1356 = vmatprep.subr.mxu0 0.0
    %1357 = vmatpush1.msra.mxu0 0.0
    %1358 = vmatprep.subr.mxu0 0.0
    %1359 = vmatpush1.msra.mxu0 0.0
    %1360 = vmatprep.subr.mxu0 0.0
    %1361 = vmatpush1.msra.mxu0 0.0
    %1362 = vmatprep.subr.mxu0 0.0
    %1363 = vmatpush1.msra.mxu0 0.0
    %1364 = vmatprep.subr.mxu0 0.0
    %1365 = vmatpush1.msra.mxu0 0.0
    %1366 = vmatprep.subr.mxu0 0.0
    %1367 = vmatpush1.msra.mxu0 0.0
    %1368 = vmatprep.subr.mxu0 0.0
    %1369 = vmatpush1.msra.mxu0 0.0
    %1370 = vmatprep.subr.mxu0 0.0
    %1371 = vmatpush1.msra.mxu0 0.0
    %1372 = vmatprep.subr.mxu0 0.0
    %1373 = vmatpush1.msra.mxu0 0.0
    %1374 = vmatprep.subr.mxu0 0.0
    %1375 = vmatpush1.msra.mxu0 0.0
    %1376 = vmatprep.mubr.f32.mxu0 0.0
    %1377 = vmatmul.mubr.f32.gmra.mrb[0].mxu0 %v1310
    %v1378 = vpop.f32.mrb[0].mxu0
    %v1379 = vadd.f32 0.0, %v1378
    %v1380 = vpop.f32.mrb[0].mxu0
    %1381 = vdwg.mxu0
    %v1383 = vrot.slane %v1379, 6
    %v1385 = vadd.f32 %v1196, %v1383
    %v1386 = vxor.u32 %v1385, 2147483648
    %v1387 = vmul.f32 %v1386, 1.442695
    %v1388 = vpow.pop %v1387
    %v1389 = vadd.f32 %v1388, 1.0
    %v1390 = vrcp.pop %v1389
    %v1391 = vmul.f32 1.0, %v1390
    %v1392 = vtanh.pop %v1385
    %v1394 = vrot.slane %v1300, 6
    %v1396 = vmul.f32 %v1391, %v1394
    %1398 = vrot.lane.b32.xlu0 %v1392, 32
    %v1399 = vpop.permute.xlu0 %1398
    %v1401 = vmul.f32 %v1391, %v1399
    %1403 = vrot.lane.b32.xlu0 %v1401, 32
    %v1404 = vpop.permute.xlu0 %1403
    %v1406 = vadd.f32 %v1396, %v1404
    %v1407 = vtanh.pop %v1406
    %1409 = vrot.lane.b32.xlu0 %v1407, 32
    %v1410 = vpop.permute.xlu0 %1409
    %v1412 = vmul.f32 %v1391, %v1410
    %v1414 = vrot.slane %v1412, 2
    %1415 = vrot.lane.b32.xlu0 %v1414, 64
    %v1416 = vpop.permute.xlu0 %1415
    %v1417 = vsel %vm1209, %v1416, 0
    %1419 = vmatprep.subr.mxu0 0.0
    %1420 = vmatpush1.msra.mxu0 %v1205
    %1421 = vmatprep.subr.mxu0 0.0
    %1422 = vmatpush1.msra.mxu0 %v1206
    %1423 = vmatprep.subr.mxu0 0.0
    %1424 = vmatpush1.msra.mxu0 %v1207
    %1425 = vmatprep.subr.mxu0 0.0
    %1426 = vmatpush1.msra.mxu0 %v1208
    %1427 = vmatprep.subr.mxu0 0.0
    %1428 = vmatpush1.msra.mxu0 0.0
    %1429 = vmatprep.subr.mxu0 0.0
    %1430 = vmatpush1.msra.mxu0 0.0
    %1431 = vmatprep.subr.mxu0 0.0
    %1432 = vmatpush1.msra.mxu0 0.0
    %1433 = vmatprep.subr.mxu0 0.0
    %1434 = vmatpush1.msra.mxu0 0.0
    %1435 = vmatprep.subr.mxu0 0.0
    %1436 = vmatpush1.msra.mxu0 0.0
    %1437 = vmatprep.subr.mxu0 0.0
    %1438 = vmatpush1.msra.mxu0 0.0
    %1439 = vmatprep.subr.mxu0 0.0
    %1440 = vmatpush1.msra.mxu0 0.0
    %1441 = vmatprep.subr.mxu0 0.0
    %1442 = vmatpush1.msra.mxu0 0.0
    %1443 = vmatprep.subr.mxu0 0.0
    %1444 = vmatpush1.msra.mxu0 0.0
    %1445 = vmatprep.subr.mxu0 0.0
    %1446 = vmatpush1.msra.mxu0 0.0
    %1447 = vmatprep.subr.mxu0 0.0
    %1448 = vmatpush1.msra.mxu0 0.0
    %1449 = vmatprep.subr.mxu0 0.0
    %1450 = vmatpush1.msra.mxu0 0.0
    %1451 = vmatprep.subr.mxu0 0.0
    %1452 = vmatpush1.msra.mxu0 0.0
    %1453 = vmatprep.subr.mxu0 0.0
    %1454 = vmatpush1.msra.mxu0 0.0
    %1455 = vmatprep.subr.mxu0 0.0
    %1456 = vmatpush1.msra.mxu0 0.0
    %1457 = vmatprep.subr.mxu0 0.0
    %1458 = vmatpush1.msra.mxu0 0.0
    %1459 = vmatprep.subr.mxu0 0.0
    %1460 = vmatpush1.msra.mxu0 0.0
    %1461 = vmatprep.subr.mxu0 0.0
    %1462 = vmatpush1.msra.mxu0 0.0
    %1463 = vmatprep.subr.mxu0 0.0
    %1464 = vmatpush1.msra.mxu0 0.0
    %1465 = vmatprep.subr.mxu0 0.0
    %1466 = vmatpush1.msra.mxu0 0.0
    %1467 = vmatprep.subr.mxu0 0.0
    %1468 = vmatpush1.msra.mxu0 0.0
    %1469 = vmatprep.subr.mxu0 0.0
    %1470 = vmatpush1.msra.mxu0 0.0
    %1471 = vmatprep.subr.mxu0 0.0
    %1472 = vmatpush1.msra.mxu0 0.0
    %1473 = vmatprep.subr.mxu0 0.0
    %1474 = vmatpush1.msra.mxu0 0.0
    %1475 = vmatprep.subr.mxu0 0.0
    %1476 = vmatpush1.msra.mxu0 0.0
    %1477 = vmatprep.subr.mxu0 0.0
    %1478 = vmatpush1.msra.mxu0 0.0
    %1479 = vmatprep.subr.mxu0 0.0
    %1480 = vmatpush1.msra.mxu0 0.0
    %1481 = vmatprep.subr.mxu0 0.0
    %1482 = vmatpush1.msra.mxu0 0.0
    %1483 = vmatprep.mubr.f32.mxu0 0.0
    %1484 = vmatmul.mubr.f32.gmra.mrb[0].mxu0 %v1417
    %v1485 = vpop.f32.mrb[0].mxu0
    %v1486 = vadd.f32 0.0, %v1485
    %v1487 = vpop.f32.mrb[0].mxu0
    %1488 = vdwg.mxu0
    %v1490 = vrot.slane %v1486, 4
    %v1492 = vadd.f32 %v1196, %v1490
    %v1493 = vxor.u32 %v1492, 2147483648
    %v1494 = vmul.f32 %v1493, 1.442695
    %v1495 = vpow.pop %v1494
    %v1496 = vadd.f32 %v1495, 1.0
    %v1497 = vrcp.pop %v1496
    %v1498 = vmul.f32 1.0, %v1497
    %v1499 = vtanh.pop %v1492
    %v1501 = vrot.slane %v1406, 6
    %v1503 = vmul.f32 %v1498, %v1501
    %1505 = vrot.lane.b32.xlu0 %v1499, 32
    %v1506 = vpop.permute.xlu0 %1505
    %v1508 = vmul.f32 %v1498, %v1506
    %1510 = vrot.lane.b32.xlu0 %v1508, 32
    %v1511 = vpop.permute.xlu0 %1510
    %v1513 = vadd.f32 %v1503, %v1511
    %v1514 = vtanh.pop %v1513
    %1516 = vrot.lane.b32.xlu0 %v1514, 32
    %v1517 = vpop.permute.xlu0 %1516
    %v1519 = vmul.f32 %v1498, %v1517
    %v1521 = vrot.slane %v1519, 4
    %1522 = vrot.lane.b32.xlu0 %v1521, 64
    %v1523 = vpop.permute.xlu0 %1522
    %v1524 = vsel %vm1209, %v1523, 0
    %1526 = vmatprep.subr.mxu0 0.0
    %1527 = vmatpush1.msra.mxu0 %v1205
    %1528 = vmatprep.subr.mxu0 0.0
    %1529 = vmatpush1.msra.mxu0 %v1206
    %1530 = vmatprep.subr.mxu0 0.0
    %1531 = vmatpush1.msra.mxu0 %v1207
    %1532 = vmatprep.subr.mxu0 0.0
    %1533 = vmatpush1.msra.mxu0 %v1208
    %1534 = vmatprep.subr.mxu0 0.0
    %1535 = vmatpush1.msra.mxu0 0.0
    %1536 = vmatprep.subr.mxu0 0.0
    %1537 = vmatpush1.msra.mxu0 0.0
    %1538 = vmatprep.subr.mxu0 0.0
    %1539 = vmatpush1.msra.mxu0 0.0
    %1540 = vmatprep.subr.mxu0 0.0
    %1541 = vmatpush1.msra.mxu0 0.0
    %1542 = vmatprep.subr.mxu0 0.0
    %1543 = vmatpush1.msra.mxu0 0.0
    %1544 = vmatprep.subr.mxu0 0.0
    %1545 = vmatpush1.msra.mxu0 0.0
    %1546 = vmatprep.subr.mxu0 0.0
    %1547 = vmatpush1.msra.mxu0 0.0
    %1548 = vmatprep.subr.mxu0 0.0
    %1549 = vmatpush1.msra.mxu0 0.0
    %1550 = vmatprep.subr.mxu0 0.0
    %1551 = vmatpush1.msra.mxu0 0.0
    %1552 = vmatprep.subr.mxu0 0.0
    %1553 = vmatpush1.msra.mxu0 0.0
    %1554 = vmatprep.subr.mxu0 0.0
    %1555 = vmatpush1.msra.mxu0 0.0
    %1556 = vmatprep.subr.mxu0 0.0
    %1557 = vmatpush1.msra.mxu0 0.0
    %1558 = vmatprep.subr.mxu0 0.0
    %1559 = vmatpush1.msra.mxu0 0.0
    %1560 = vmatprep.subr.mxu0 0.0
    %1561 = vmatpush1.msra.mxu0 0.0
    %1562 = vmatprep.subr.mxu0 0.0
    %1563 = vmatpush1.msra.mxu0 0.0
    %1564 = vmatprep.subr.mxu0 0.0
    %1565 = vmatpush1.msra.mxu0 0.0
    %1566 = vmatprep.subr.mxu0 0.0
    %1567 = vmatpush1.msra.mxu0 0.0
    %1568 = vmatprep.subr.mxu0 0.0
    %1569 = vmatpush1.msra.mxu0 0.0
    %1570 = vmatprep.subr.mxu0 0.0
    %1571 = vmatpush1.msra.mxu0 0.0
    %1572 = vmatprep.subr.mxu0 0.0
    %1573 = vmatpush1.msra.mxu0 0.0
    %1574 = vmatprep.subr.mxu0 0.0
    %1575 = vmatpush1.msra.mxu0 0.0
    %1576 = vmatprep.subr.mxu0 0.0
    %1577 = vmatpush1.msra.mxu0 0.0
    %1578 = vmatprep.subr.mxu0 0.0
    %1579 = vmatpush1.msra.mxu0 0.0
    %1580 = vmatprep.subr.mxu0 0.0
    %1581 = vmatpush1.msra.mxu0 0.0
    %1582 = vmatprep.subr.mxu0 0.0
    %1583 = vmatpush1.msra.mxu0 0.0
    %1584 = vmatprep.subr.mxu0 0.0
    %1585 = vmatpush1.msra.mxu0 0.0
    %1586 = vmatprep.subr.mxu0 0.0
    %1587 = vmatpush1.msra.mxu0 0.0
    %1588 = vmatprep.subr.mxu0 0.0
    %1589 = vmatpush1.msra.mxu0 0.0
    %1590 = vmatprep.mubr.f32.mxu0 0.0
    %1591 = vmatmul.mubr.f32.gmra.mrb[0].mxu0 %v1524
    %v1592 = vpop.f32.mrb[0].mxu0
    %v1593 = vadd.f32 0.0, %v1592
    %v1594 = vpop.f32.mrb[0].mxu0
    %1595 = vdwg.mxu0
    %v1597 = vrot.slane %v1593, 2
    %v1599 = vadd.f32 %v1196, %v1597
    %v1600 = vxor.u32 %v1599, 2147483648
    %v1601 = vmul.f32 %v1600, 1.442695
    %v1602 = vpow.pop %v1601
    %v1603 = vadd.f32 %v1602, 1.0
    %v1604 = vrcp.pop %v1603
    %v1605 = vmul.f32 1.0, %v1604
    %v1606 = vtanh.pop %v1599
    %v1608 = vrot.slane %v1513, 6
    %v1610 = vmul.f32 %v1605, %v1608
    %1612 = vrot.lane.b32.xlu0 %v1606, 32
    %v1613 = vpop.permute.xlu0 %1612
    %v1615 = vmul.f32 %v1605, %v1613
    %1617 = vrot.lane.b32.xlu0 %v1615, 32
    %v1618 = vpop.permute.xlu0 %1617
    %v1620 = vadd.f32 %v1610, %v1618
    %v1621 = vtanh.pop %v1620
    %1623 = vrot.lane.b32.xlu0 %v1621, 32
    %v1624 = vpop.permute.xlu0 %1623
    %v1626 = vmul.f32 %v1605, %v1624
    %v1628 = vrot.slane %v1626, 6
    %1629 = vrot.lane.b32.xlu0 %v1628, 64
    %v1630 = vpop.permute.xlu0 %1629
    %v1631 = vsel %vm1209, %v1630, 0
    %1633 = vmatprep.subr.mxu0 0.0
    %1634 = vmatpush1.msra.mxu0 %v1205
    %1635 = vmatprep.subr.mxu0 0.0
    %1636 = vmatpush1.msra.mxu0 %v1206
    %1637 = vmatprep.subr.mxu0 0.0
    %1638 = vmatpush1.msra.mxu0 %v1207
    %1639 = vmatprep.subr.mxu0 0.0
    %1640 = vmatpush1.msra.mxu0 %v1208
    %1641 = vmatprep.subr.mxu0 0.0
    %1642 = vmatpush1.msra.mxu0 0.0
    %1643 = vmatprep.subr.mxu0 0.0
    %1644 = vmatpush1.msra.mxu0 0.0
    %1645 = vmatprep.subr.mxu0 0.0
    %1646 = vmatpush1.msra.mxu0 0.0
    %1647 = vmatprep.subr.mxu0 0.0
    %1648 = vmatpush1.msra.mxu0 0.0
    %1649 = vmatprep.subr.mxu0 0.0
    %1650 = vmatpush1.msra.mxu0 0.0
    %1651 = vmatprep.subr.mxu0 0.0
    %1652 = vmatpush1.msra.mxu0 0.0
    %1653 = vmatprep.subr.mxu0 0.0
    %1654 = vmatpush1.msra.mxu0 0.0
    %1655 = vmatprep.subr.mxu0 0.0
    %1656 = vmatpush1.msra.mxu0 0.0
    %1657 = vmatprep.subr.mxu0 0.0
    %1658 = vmatpush1.msra.mxu0 0.0
    %1659 = vmatprep.subr.mxu0 0.0
    %1660 = vmatpush1.msra.mxu0 0.0
    %1661 = vmatprep.subr.mxu0 0.0
    %1662 = vmatpush1.msra.mxu0 0.0
    %1663 = vmatprep.subr.mxu0 0.0
    %1664 = vmatpush1.msra.mxu0 0.0
    %1665 = vmatprep.subr.mxu0 0.0
    %1666 = vmatpush1.msra.mxu0 0.0
    %1667 = vmatprep.subr.mxu0 0.0
    %1668 = vmatpush1.msra.mxu0 0.0
    %1669 = vmatprep.subr.mxu0 0.0
    %1670 = vmatpush1.msra.mxu0 0.0
    %1671 = vmatprep.subr.mxu0 0.0
    %1672 = vmatpush1.msra.mxu0 0.0
    %1673 = vmatprep.subr.mxu0 0.0
    %1674 = vmatpush1.msra.mxu0 0.0
    %1675 = vmatprep.subr.mxu0 0.0
    %1676 = vmatpush1.msra.mxu0 0.0
    %1677 = vmatprep.subr.mxu0 0.0
    %1678 = vmatpush1.msra.mxu0 0.0
    %1679 = vmatprep.subr.mxu0 0.0
    %1680 = vmatpush1.msra.mxu0 0.0
    %1681 = vmatprep.subr.mxu0 0.0
    %1682 = vmatpush1.msra.mxu0 0.0
    %1683 = vmatprep.subr.mxu0 0.0
    %1684 = vmatpush1.msra.mxu0 0.0
    %1685 = vmatprep.subr.mxu0 0.0
    %1686 = vmatpush1.msra.mxu0 0.0
    %1687 = vmatprep.subr.mxu0 0.0
    %1688 = vmatpush1.msra.mxu0 0.0
    %1689 = vmatprep.subr.mxu0 0.0
    %1690 = vmatpush1.msra.mxu0 0.0
    %1691 = vmatprep.subr.mxu0 0.0
    %1692 = vmatpush1.msra.mxu0 0.0
    %1693 = vmatprep.subr.mxu0 0.0
    %1694 = vmatpush1.msra.mxu0 0.0
    %1695 = vmatprep.subr.mxu0 0.0
    %1696 = vmatpush1.msra.mxu0 0.0
    %1697 = vmatprep.mubr.f32.mxu0 0.0
    %1698 = vmatmul.mubr.f32.gmra.mrb[0].mxu0 %v1631
    %v1699 = vpop.f32.mrb[0].mxu0
    %v1700 = vadd.f32 0.0, %v1699
    %v1701 = vpop.f32.mrb[0].mxu0
    %1702 = vdwg.mxu0
    %v1703 = vadd.f32 %v1201, %v1700
    %v1704 = vxor.u32 %v1703, 2147483648
    %v1705 = vmul.f32 %v1704, 1.442695
    %v1706 = vpow.pop %v1705
    %v1707 = vadd.f32 %v1706, 1.0
    %v1708 = vrcp.pop %v1707
    %v1709 = vmul.f32 1.0, %v1708
    %v1710 = vtanh.pop %v1703
    %v1712 = vrot.slane %v1620, 6
    %v1714 = vmul.f32 %v1709, %v1712
    %1716 = vrot.lane.b32.xlu0 %v1710, 32
    %v1717 = vpop.permute.xlu0 %1716
    %v1719 = vmul.f32 %v1709, %v1717
    %1721 = vrot.lane.b32.xlu0 %v1719, 32
    %v1722 = vpop.permute.xlu0 %1721
    %v1724 = vadd.f32 %v1714, %v1722
    %v1725 = vtanh.pop %v1724
    %1727 = vrot.lane.b32.xlu0 %v1725, 32
    %v1728 = vpop.permute.xlu0 %1727
    %v1730 = vmul.f32 %v1709, %v1728
    %1732 = vrot.lane.b32.xlu0 %v1730, 64
    %v1733 = vpop.permute.xlu0 %1732
    %v1734 = vsel %vm1209, %v1733, 0
    %1736 = vmatprep.subr.mxu0 0.0
    %1737 = vmatpush1.msra.mxu0 %v1205
    %1738 = vmatprep.subr.mxu0 0.0
    %1739 = vmatpush1.msra.mxu0 %v1206
    %1740 = vmatprep.subr.mxu0 0.0
    %1741 = vmatpush1.msra.mxu0 %v1207
    %1742 = vmatprep.subr.mxu0 0.0
    %1743 = vmatpush1.msra.mxu0 %v1208
    %1744 = vmatprep.subr.mxu0 0.0
    %1745 = vmatpush1.msra.mxu0 0.0
    %1746 = vmatprep.subr.mxu0 0.0
    %1747 = vmatpush1.msra.mxu0 0.0
    %1748 = vmatprep.subr.mxu0 0.0
    %1749 = vmatpush1.msra.mxu0 0.0
    %1750 = vmatprep.subr.mxu0 0.0
    %1751 = vmatpush1.msra.mxu0 0.0
    %1752 = vmatprep.subr.mxu0 0.0
    %1753 = vmatpush1.msra.mxu0 0.0
    %1754 = vmatprep.subr.mxu0 0.0
    %1755 = vmatpush1.msra.mxu0 0.0
    %1756 = vmatprep.subr.mxu0 0.0
    %1757 = vmatpush1.msra.mxu0 0.0
    %1758 = vmatprep.subr.mxu0 0.0
    %1759 = vmatpush1.msra.mxu0 0.0
    %1760 = vmatprep.subr.mxu0 0.0
    %1761 = vmatpush1.msra.mxu0 0.0
    %1762 = vmatprep.subr.mxu0 0.0
    %1763 = vmatpush1.msra.mxu0 0.0
    %1764 = vmatprep.subr.mxu0 0.0
    %1765 = vmatpush1.msra.mxu0 0.0
    %1766 = vmatprep.subr.mxu0 0.0
    %1767 = vmatpush1.msra.mxu0 0.0
    %1768 = vmatprep.subr.mxu0 0.0
    %1769 = vmatpush1.msra.mxu0 0.0
    %1770 = vmatprep.subr.mxu0 0.0
    %1771 = vmatpush1.msra.mxu0 0.0
    %1772 = vmatprep.subr.mxu0 0.0
    %1773 = vmatpush1.msra.mxu0 0.0
    %1774 = vmatprep.subr.mxu0 0.0
    %1775 = vmatpush1.msra.mxu0 0.0
    %1776 = vmatprep.subr.mxu0 0.0
    %1777 = vmatpush1.msra.mxu0 0.0
    %1778 = vmatprep.subr.mxu0 0.0
    %1779 = vmatpush1.msra.mxu0 0.0
    %1780 = vmatprep.subr.mxu0 0.0
    %1781 = vmatpush1.msra.mxu0 0.0
    %1782 = vmatprep.subr.mxu0 0.0
    %1783 = vmatpush1.msra.mxu0 0.0
    %1784 = vmatprep.subr.mxu0 0.0
    %1785 = vmatpush1.msra.mxu0 0.0
    %1786 = vmatprep.subr.mxu0 0.0
    %1787 = vmatpush1.msra.mxu0 0.0
    %1788 = vmatprep.subr.mxu0 0.0
    %1789 = vmatpush1.msra.mxu0 0.0
    %1790 = vmatprep.subr.mxu0 0.0
    %1791 = vmatpush1.msra.mxu0 0.0
    %1792 = vmatprep.subr.mxu0 0.0
    %1793 = vmatpush1.msra.mxu0 0.0
    %1794 = vmatprep.subr.mxu0 0.0
    %1795 = vmatpush1.msra.mxu0 0.0
    %1796 = vmatprep.subr.mxu0 0.0
    %1797 = vmatpush1.msra.mxu0 0.0
    %1798 = vmatprep.subr.mxu0 0.0
    %1799 = vmatpush1.msra.mxu0 0.0
    %1800 = vmatprep.mubr.f32.mxu0 0.0
    %1801 = vmatmul.mubr.f32.gmra.mrb[0].mxu0 %v1734
    %v1802 = vpop.f32.mrb[0].mxu0
    %v1803 = vadd.f32 0.0, %v1802
    %v1804 = vpop.f32.mrb[0].mxu0
    %1805 = vdwg.mxu0
    %v1807 = vrot.slane %v1803, 6
    %v1809 = vadd.f32 %v1201, %v1807
    %v1810 = vxor.u32 %v1809, 2147483648
    %v1811 = vmul.f32 %v1810, 1.442695
    %v1812 = vpow.pop %v1811
    %v1813 = vadd.f32 %v1812, 1.0
    %v1814 = vrcp.pop %v1813
    %v1815 = vmul.f32 1.0, %v1814
    %v1816 = vtanh.pop %v1809
    %v1818 = vrot.slane %v1724, 6
    %v1820 = vmul.f32 %v1815, %v1818
    %1822 = vrot.lane.b32.xlu0 %v1816, 32
    %v1823 = vpop.permute.xlu0 %1822
    %v1825 = vmul.f32 %v1815, %v1823
    %1827 = vrot.lane.b32.xlu0 %v1825, 32
    %v1828 = vpop.permute.xlu0 %1827
    %v1830 = vadd.f32 %v1820, %v1828
    %v1831 = vtanh.pop %v1830
    %1833 = vrot.lane.b32.xlu0 %v1831, 32
    %v1834 = vpop.permute.xlu0 %1833
    %v1836 = vmul.f32 %v1815, %v1834
    %v1838 = vrot.slane %v1836, 2
    %1839 = vrot.lane.b32.xlu0 %v1838, 64
    %v1840 = vpop.permute.xlu0 %1839
    %v1841 = vsel %vm1209, %v1840, 0
    %1843 = vmatprep.subr.mxu0 0.0
    %1844 = vmatpush1.msra.mxu0 %v1205
    %1845 = vmatprep.subr.mxu0 0.0
    %1846 = vmatpush1.msra.mxu0 %v1206
    %1847 = vmatprep.subr.mxu0 0.0
    %1848 = vmatpush1.msra.mxu0 %v1207
    %1849 = vmatprep.subr.mxu0 0.0
    %1850 = vmatpush1.msra.mxu0 %v1208
    %1851 = vmatprep.subr.mxu0 0.0
    %1852 = vmatpush1.msra.mxu0 0.0
    %1853 = vmatprep.subr.mxu0 0.0
    %1854 = vmatpush1.msra.mxu0 0.0
    %1855 = vmatprep.subr.mxu0 0.0
    %1856 = vmatpush1.msra.mxu0 0.0
    %1857 = vmatprep.subr.mxu0 0.0
    %1858 = vmatpush1.msra.mxu0 0.0
    %1859 = vmatprep.subr.mxu0 0.0
    %1860 = vmatpush1.msra.mxu0 0.0
    %1861 = vmatprep.subr.mxu0 0.0
    %1862 = vmatpush1.msra.mxu0 0.0
    %1863 = vmatprep.subr.mxu0 0.0
    %1864 = vmatpush1.msra.mxu0 0.0
    %1865 = vmatprep.subr.mxu0 0.0
    %1866 = vmatpush1.msra.mxu0 0.0
    %1867 = vmatprep.subr.mxu0 0.0
    %1868 = vmatpush1.msra.mxu0 0.0
    %1869 = vmatprep.subr.mxu0 0.0
    %1870 = vmatpush1.msra.mxu0 0.0
    %1871 = vmatprep.subr.mxu0 0.0
    %1872 = vmatpush1.msra.mxu0 0.0
    %1873 = vmatprep.subr.mxu0 0.0
    %1874 = vmatpush1.msra.mxu0 0.0
    %1875 = vmatprep.subr.mxu0 0.0
    %1876 = vmatpush1.msra.mxu0 0.0
    %1877 = vmatprep.subr.mxu0 0.0
    %1878 = vmatpush1.msra.mxu0 0.0
    %1879 = vmatprep.subr.mxu0 0.0
    %1880 = vmatpush1.msra.mxu0 0.0
    %1881 = vmatprep.subr.mxu0 0.0
    %1882 = vmatpush1.msra.mxu0 0.0
    %1883 = vmatprep.subr.mxu0 0.0
    %1884 = vmatpush1.msra.mxu0 0.0
    %1885 = vmatprep.subr.mxu0 0.0
    %1886 = vmatpush1.msra.mxu0 0.0
    %1887 = vmatprep.subr.mxu0 0.0
    %1888 = vmatpush1.msra.mxu0 0.0
    %1889 = vmatprep.subr.mxu0 0.0
    %1890 = vmatpush1.msra.mxu0 0.0
    %1891 = vmatprep.subr.mxu0 0.0
    %1892 = vmatpush1.msra.mxu0 0.0
    %1893 = vmatprep.subr.mxu0 0.0
    %1894 = vmatpush1.msra.mxu0 0.0
    %1895 = vmatprep.subr.mxu0 0.0
    %1896 = vmatpush1.msra.mxu0 0.0
    %1897 = vmatprep.subr.mxu0 0.0
    %1898 = vmatpush1.msra.mxu0 0.0
    %1899 = vmatprep.subr.mxu0 0.0
    %1900 = vmatpush1.msra.mxu0 0.0
    %1901 = vmatprep.subr.mxu0 0.0
    %1902 = vmatpush1.msra.mxu0 0.0
    %1903 = vmatprep.subr.mxu0 0.0
    %1904 = vmatpush1.msra.mxu0 0.0
    %1905 = vmatprep.subr.mxu0 0.0
    %1906 = vmatpush1.msra.mxu0 0.0
    %1907 = vmatprep.mubr.f32.mxu0 0.0
    %1908 = vmatmul.mubr.f32.gmra.mrb[0].mxu0 %v1841
    %v1909 = vpop.f32.mrb[0].mxu0
    %v1910 = vadd.f32 0.0, %v1909
    %v1911 = vpop.f32.mrb[0].mxu0
    %1912 = vdwg.mxu0
    %v1914 = vrot.slane %v1910, 4
    %v1916 = vadd.f32 %v1201, %v1914
    %v1917 = vxor.u32 %v1916, 2147483648
    %v1918 = vmul.f32 %v1917, 1.442695
    %v1919 = vpow.pop %v1918
    %v1920 = vadd.f32 %v1919, 1.0
    %v1921 = vrcp.pop %v1920
    %v1922 = vmul.f32 1.0, %v1921
    %v1923 = vtanh.pop %v1916
    %v1925 = vrot.slane %v1830, 6
    %v1927 = vmul.f32 %v1922, %v1925
    %1929 = vrot.lane.b32.xlu0 %v1923, 32
    %v1930 = vpop.permute.xlu0 %1929
    %v1932 = vmul.f32 %v1922, %v1930
    %1934 = vrot.lane.b32.xlu0 %v1932, 32
    %v1935 = vpop.permute.xlu0 %1934
    %v1937 = vadd.f32 %v1927, %v1935
    %v1938 = vtanh.pop %v1937
    %1940 = vrot.lane.b32.xlu0 %v1938, 32
    %v1941 = vpop.permute.xlu0 %1940
    %v1943 = vmul.f32 %v1922, %v1941
    %v1945 = vrot.slane %v1943, 4
    %1946 = vrot.lane.b32.xlu0 %v1945, 64
    %v1947 = vpop.permute.xlu0 %1946
    %v1948 = vsel %vm1209, %v1947, 0
    %1950 = vmatprep.subr.mxu0 0.0
    %1951 = vmatpush1.msra.mxu0 %v1205
    %1952 = vmatprep.subr.mxu0 0.0
    %1953 = vmatpush1.msra.mxu0 %v1206
    %1954 = vmatprep.subr.mxu0 0.0
    %1955 = vmatpush1.msra.mxu0 %v1207
    %1956 = vmatprep.subr.mxu0 0.0
    %1957 = vmatpush1.msra.mxu0 %v1208
    %1958 = vmatprep.subr.mxu0 0.0
    %1959 = vmatpush1.msra.mxu0 0.0
    %1960 = vmatprep.subr.mxu0 0.0
    %1961 = vmatpush1.msra.mxu0 0.0
    %1962 = vmatprep.subr.mxu0 0.0
    %1963 = vmatpush1.msra.mxu0 0.0
    %1964 = vmatprep.subr.mxu0 0.0
    %1965 = vmatpush1.msra.mxu0 0.0
    %1966 = vmatprep.subr.mxu0 0.0
    %1967 = vmatpush1.msra.mxu0 0.0
    %1968 = vmatprep.subr.mxu0 0.0
    %1969 = vmatpush1.msra.mxu0 0.0
    %1970 = vmatprep.subr.mxu0 0.0
    %1971 = vmatpush1.msra.mxu0 0.0
    %1972 = vmatprep.subr.mxu0 0.0
    %1973 = vmatpush1.msra.mxu0 0.0
    %1974 = vmatprep.subr.mxu0 0.0
    %1975 = vmatpush1.msra.mxu0 0.0
    %1976 = vmatprep.subr.mxu0 0.0
    %1977 = vmatpush1.msra.mxu0 0.0
    %1978 = vmatprep.subr.mxu0 0.0
    %1979 = vmatpush1.msra.mxu0 0.0
    %1980 = vmatprep.subr.mxu0 0.0
    %1981 = vmatpush1.msra.mxu0 0.0
    %1982 = vmatprep.subr.mxu0 0.0
    %1983 = vmatpush1.msra.mxu0 0.0
    %1984 = vmatprep.subr.mxu0 0.0
    %1985 = vmatpush1.msra.mxu0 0.0
    %1986 = vmatprep.subr.mxu0 0.0
    %1987 = vmatpush1.msra.mxu0 0.0
    %1988 = vmatprep.subr.mxu0 0.0
    %1989 = vmatpush1.msra.mxu0 0.0
    %1990 = vmatprep.subr.mxu0 0.0
    %1991 = vmatpush1.msra.mxu0 0.0
    %1992 = vmatprep.subr.mxu0 0.0
    %1993 = vmatpush1.msra.mxu0 0.0
    %1994 = vmatprep.subr.mxu0 0.0
    %1995 = vmatpush1.msra.mxu0 0.0
    %1996 = vmatprep.subr.mxu0 0.0
    %1997 = vmatpush1.msra.mxu0 0.0
    %1998 = vmatprep.subr.mxu0 0.0
    %1999 = vmatpush1.msra.mxu0 0.0
    %2000 = vmatprep.subr.mxu0 0.0
    %2001 = vmatpush1.msra.mxu0 0.0
    %2002 = vmatprep.subr.mxu0 0.0
    %2003 = vmatpush1.msra.mxu0 0.0
    %2004 = vmatprep.subr.mxu0 0.0
    %2005 = vmatpush1.msra.mxu0 0.0
    %2006 = vmatprep.subr.mxu0 0.0
    %2007 = vmatpush1.msra.mxu0 0.0
    %2008 = vmatprep.subr.mxu0 0.0
    %2009 = vmatpush1.msra.mxu0 0.0
    %2010 = vmatprep.subr.mxu0 0.0
    %2011 = vmatpush1.msra.mxu0 0.0
    %2012 = vmatprep.subr.mxu0 0.0
    %2013 = vmatpush1.msra.mxu0 0.0
    %2014 = vmatprep.mubr.f32.mxu0 0.0
    %2015 = vmatmul.mubr.f32.gmra.mrb[0].mxu0 %v1948
    %v2016 = vpop.f32.mrb[0].mxu0
    %v2017 = vadd.f32 0.0, %v2016
    %v2018 = vpop.f32.mrb[0].mxu0
    %2019 = vdwg.mxu0
    %v2021 = vrot.slane %v2017, 2
    %v2023 = vadd.f32 %v1201, %v2021
    %v2024 = vxor.u32 %v2023, 2147483648
    %v2025 = vmul.f32 %v2024, 1.442695
    %v2026 = vpow.pop %v2025
    %v2027 = vadd.f32 %v2026, 1.0
    %v2028 = vrcp.pop %v2027
    %v2029 = vmul.f32 1.0, %v2028
    %v2030 = vtanh.pop %v2023
    %v2032 = vrot.slane %v1937, 6
    %v2034 = vmul.f32 %v2029, %v2032
    %2036 = vrot.lane.b32.xlu0 %v2030, 32
    %v2037 = vpop.permute.xlu0 %2036
    %v2039 = vmul.f32 %v2029, %v2037
    %2041 = vrot.lane.b32.xlu0 %v2039, 32
    %v2042 = vpop.permute.xlu0 %2041
    %v2044 = vadd.f32 %v2034, %v2042
    %v2045 = vtanh.pop %v2044
    %2047 = vrot.lane.b32.xlu0 %v2045, 32
    %v2048 = vpop.permute.xlu0 %2047
    %v2050 = vmul.f32 %v2029, %v2048
    %v2051 = vxor.u32 %v1203, 2147483648
    %v2052 = vmul.f32 %v2051, 1.442695
    %v2053 = vpow.pop %v2052
    %v2054 = vadd.f32 %v2053, 1.0
    %v2055 = vrcp.pop %v2054
    %v2056 = vmul.f32 1.0, %v2055
    %v2057 = vtanh.pop %v1203
    %2059 = vrot.lane.b32.xlu0 %v2057, 32
    %v2060 = vpop.permute.xlu0 %2059
    %v2062 = vmul.f32 %v2056, %v2060
    %v2063 = vtanh.pop %v2062
    %2065 = vrot.lane.b32.xlu0 %v2063, 64
    %v2066 = vpop.permute.xlu0 %2065
    %v2068 = vmul.f32 %v2056, %v2066
    %v2069 = vld [vmem:[%s7] sm:$0xff]
    %v2070 = vld [vmem:[%s7 + $0x8] sm:$0xff]
    %v2071 = vld [vmem:[%s7 + $0x10] sm:$0xff]
    %v2072 = vld [vmem:[%s7 + $0x18] sm:$0xff]
    %v2073 = vld [vmem:[%s7 + $0x20] sm:$0xff]
    %v2074 = vld [vmem:[%s7 + $0x28] sm:$0xff]
    %v2075 = vld [vmem:[%s7 + $0x30] sm:$0xff]
    %v2076 = vld [vmem:[%s7 + $0x38] sm:$0xff]
    %v2077 = vld [vmem:[%s7 + $0x40] sm:$0xff]
    %v2078 = vld [vmem:[%s7 + $0x48] sm:$0xff]
    %v2079 = vld [vmem:[%s7 + $0x50] sm:$0xff]
    %v2080 = vld [vmem:[%s7 + $0x58] sm:$0xff]
    %v2081 = vld [vmem:[%s7 + $0x60] sm:$0xff]
    %v2082 = vld [vmem:[%s7 + $0x68] sm:$0xff]
    %v2083 = vld [vmem:[%s7 + $0x70] sm:$0xff]
    %v2084 = vld [vmem:[%s7 + $0x78] sm:$0xff]
    %v2085 = vld [vmem:[%s7 + $0x80] sm:$0xff]
    %v2086 = vld [vmem:[%s7 + $0x88] sm:$0xff]
    %v2087 = vld [vmem:[%s7 + $0x90] sm:$0xff]
    %v2088 = vld [vmem:[%s7 + $0x98] sm:$0xff]
    %v2089 = vld [vmem:[%s7 + $0xa0] sm:$0xff]
    %v2090 = vld [vmem:[%s7 + $0xa8] sm:$0xff]
    %v2091 = vld [vmem:[%s7 + $0xb0] sm:$0xff]
    %v2092 = vld [vmem:[%s7 + $0xb8] sm:$0xff]
    %v2093 = vld [vmem:[%s7 + $0xc0] sm:$0xff]
    %v2094 = vld [vmem:[%s7 + $0xc8] sm:$0xff]
    %v2095 = vld [vmem:[%s7 + $0xd0] sm:$0xff]
    %v2096 = vld [vmem:[%s7 + $0xd8] sm:$0xff]
    %v2097 = vld [vmem:[%s7 + $0xe0] sm:$0xff]
    %v2098 = vld [vmem:[%s7 + $0xe8] sm:$0xff]
    %v2099 = vld [vmem:[%s7 + $0xf0] sm:$0xff]
    %v2100 = vld [vmem:[%s7 + $0xf8] sm:$0xff]
    %v2101 = vld [vmem:[%s8] sm:$0xff]
    %v2102 = vld [vmem:[%s8 + $0x8] sm:$0xff]
    %v2103 = vld [vmem:[%s8 + $0x10] sm:$0xff]
    %v2104 = vld [vmem:[%s8 + $0x18] sm:$0xff]
    %v2105 = vld [vmem:[%s8 + $0x20] sm:$0xff]
    %v2106 = vld [vmem:[%s8 + $0x28] sm:$0xff]
    %v2107 = vld [vmem:[%s8 + $0x30] sm:$0xff]
    %v2108 = vld [vmem:[%s8 + $0x38] sm:$0xff]
    %v2109 = vld [vmem:[%s8 + $0x40] sm:$0xff]
    %v2110 = vld [vmem:[%s8 + $0x48] sm:$0xff]
    %v2111 = vld [vmem:[%s8 + $0x50] sm:$0xff]
    %v2112 = vld [vmem:[%s8 + $0x58] sm:$0xff]
    %v2113 = vld [vmem:[%s8 + $0x60] sm:$0xff]
    %v2114 = vld [vmem:[%s8 + $0x68] sm:$0xff]
    %v2115 = vld [vmem:[%s8 + $0x70] sm:$0xff]
    %v2116 = vld [vmem:[%s8 + $0x78] sm:$0xff]
    %v2117 = vld [vmem:[%s8 + $0x80] sm:$0xff]
    %v2118 = vld [vmem:[%s8 + $0x88] sm:$0xff]
    %v2119 = vld [vmem:[%s8 + $0x90] sm:$0xff]
    %v2120 = vld [vmem:[%s8 + $0x98] sm:$0xff]
    %v2121 = vld [vmem:[%s8 + $0xa0] sm:$0xff]
    %v2122 = vld [vmem:[%s8 + $0xa8] sm:$0xff]
    %v2123 = vld [vmem:[%s8 + $0xb0] sm:$0xff]
    %v2124 = vld [vmem:[%s8 + $0xb8] sm:$0xff]
    %v2125 = vld [vmem:[%s8 + $0xc0] sm:$0xff]
    %v2126 = vld [vmem:[%s8 + $0xc8] sm:$0xff]
    %v2127 = vld [vmem:[%s8 + $0xd0] sm:$0xff]
    %v2128 = vld [vmem:[%s8 + $0xd8] sm:$0xff]
    %v2129 = vld [vmem:[%s8 + $0xe0] sm:$0xff]
    %v2130 = vld [vmem:[%s8 + $0xe8] sm:$0xff]
    %v2131 = vld [vmem:[%s8 + $0xf0] sm:$0xff]
    %v2132 = vld [vmem:[%s8 + $0xf8] sm:$0xff]
    %v2134 = vrot.slane %v2068, 6
    %2135 = vrot.lane.b32.xlu0 %v2134, 64
    %v2136 = vpop.permute.xlu0 %2135
    %v2137 = vsel %vm1209, %v2136, 0
    %2139 = vmatprep.subr.mxu0 %v2102
    %2140 = vmatpush1.msra.mxu0 %v2101
    %2141 = vmatprep.subr.mxu0 %v2110
    %2142 = vmatpush1.msra.mxu0 %v2109
    %2143 = vmatprep.subr.mxu0 %v2118
    %2144 = vmatpush1.msra.mxu0 %v2117
    %2145 = vmatprep.subr.mxu0 %v2126
    %2146 = vmatpush1.msra.mxu0 %v2125
    %2147 = vmatprep.subr.mxu0 0.0
    %2148 = vmatpush1.msra.mxu0 0.0
    %2149 = vmatprep.subr.mxu0 0.0
    %2150 = vmatpush1.msra.mxu0 0.0
    %2151 = vmatprep.subr.mxu0 0.0
    %2152 = vmatpush1.msra.mxu0 0.0
    %2153 = vmatprep.subr.mxu0 0.0
    %2154 = vmatpush1.msra.mxu0 0.0
    %2155 = vmatprep.subr.mxu0 0.0
    %2156 = vmatpush1.msra.mxu0 0.0
    %2157 = vmatprep.subr.mxu0 0.0
    %2158 = vmatpush1.msra.mxu0 0.0
    %2159 = vmatprep.subr.mxu0 0.0
    %2160 = vmatpush1.msra.mxu0 0.0
    %2161 = vmatprep.subr.mxu0 0.0
    %2162 = vmatpush1.msra.mxu0 0.0
    %2163 = vmatprep.subr.mxu0 0.0
    %2164 = vmatpush1.msra.mxu0 0.0
    %2165 = vmatprep.subr.mxu0 0.0
    %2166 = vmatpush1.msra.mxu0 0.0
    %2167 = vmatprep.subr.mxu0 0.0
    %2168 = vmatpush1.msra.mxu0 0.0
    %2169 = vmatprep.subr.mxu0 0.0
    %2170 = vmatpush1.msra.mxu0 0.0
    %2171 = vmatprep.subr.mxu0 0.0
    %2172 = vmatpush1.msra.mxu0 0.0
    %2173 = vmatprep.subr.mxu0 0.0
    %2174 = vmatpush1.msra.mxu0 0.0
    %2175 = vmatprep.subr.mxu0 0.0
    %2176 = vmatpush1.msra.mxu0 0.0
    %2177 = vmatprep.subr.mxu0 0.0
    %2178 = vmatpush1.msra.mxu0 0.0
    %2179 = vmatprep.subr.mxu0 0.0
    %2180 = vmatpush1.msra.mxu0 0.0
    %2181 = vmatprep.subr.mxu0 0.0
    %2182 = vmatpush1.msra.mxu0 0.0
    %2183 = vmatprep.subr.mxu0 0.0
    %2184 = vmatpush1.msra.mxu0 0.0
    %2185 = vmatprep.subr.mxu0 0.0
    %2186 = vmatpush1.msra.mxu0 0.0
    %2187 = vmatprep.subr.mxu0 0.0
    %2188 = vmatpush1.msra.mxu0 0.0
    %2189 = vmatprep.subr.mxu0 0.0
    %2190 = vmatpush1.msra.mxu0 0.0
    %2191 = vmatprep.subr.mxu0 0.0
    %2192 = vmatpush1.msra.mxu0 0.0
    %2193 = vmatprep.subr.mxu0 0.0
    %2194 = vmatpush1.msra.mxu0 0.0
    %2195 = vmatprep.subr.mxu0 0.0
    %2196 = vmatpush1.msra.mxu0 0.0
    %2197 = vmatprep.subr.mxu0 0.0
    %2198 = vmatpush1.msra.mxu0 0.0
    %2199 = vmatprep.subr.mxu0 0.0
    %2200 = vmatpush1.msra.mxu0 0.0
    %2201 = vmatprep.subr.mxu0 0.0
    %2202 = vmatpush1.msra.mxu0 0.0
    %2203 = vmatprep.mubr.f32.mxu0 0.0
    %2204 = vmatmul.mubr.f32.gmra.mrb[0].mxu0 %v2137
    %v2205 = vpop.f32.mrb[0].mxu0
    %v2206 = vadd.f32 0.0, %v2205
    %v2207 = vpop.f32.mrb[0].mxu0
    %v2208 = vadd.f32 0.0, %v2207
    %2209 = vdwg.mxu0
    %2210 = vmatprep.subr.mxu0 %v2104
    %2211 = vmatpush1.msra.mxu0 %v2103
    %2212 = vmatprep.subr.mxu0 %v2112
    %2213 = vmatpush1.msra.mxu0 %v2111
    %2214 = vmatprep.subr.mxu0 %v2120
    %2215 = vmatpush1.msra.mxu0 %v2119
    %2216 = vmatprep.subr.mxu0 %v2128
    %2217 = vmatpush1.msra.mxu0 %v2127
    %2218 = vmatprep.subr.mxu0 0.0
    %2219 = vmatpush1.msra.mxu0 0.0
    %2220 = vmatprep.subr.mxu0 0.0
    %2221 = vmatpush1.msra.mxu0 0.0
    %2222 = vmatprep.subr.mxu0 0.0
    %2223 = vmatpush1.msra.mxu0 0.0
    %2224 = vmatprep.subr.mxu0 0.0
    %2225 = vmatpush1.msra.mxu0 0.0
    %2226 = vmatprep.subr.mxu0 0.0
    %2227 = vmatpush1.msra.mxu0 0.0
    %2228 = vmatprep.subr.mxu0 0.0
    %2229 = vmatpush1.msra.mxu0 0.0
    %2230 = vmatprep.subr.mxu0 0.0
    %2231 = vmatpush1.msra.mxu0 0.0
    %2232 = vmatprep.subr.mxu0 0.0
    %2233 = vmatpush1.msra.mxu0 0.0
    %2234 = vmatprep.subr.mxu0 0.0
    %2235 = vmatpush1.msra.mxu0 0.0
    %2236 = vmatprep.subr.mxu0 0.0
    %2237 = vmatpush1.msra.mxu0 0.0
    %2238 = vmatprep.subr.mxu0 0.0
    %2239 = vmatpush1.msra.mxu0 0.0
    %2240 = vmatprep.subr.mxu0 0.0
    %2241 = vmatpush1.msra.mxu0 0.0
    %2242 = vmatprep.subr.mxu0 0.0
    %2243 = vmatpush1.msra.mxu0 0.0
    %2244 = vmatprep.subr.mxu0 0.0
    %2245 = vmatpush1.msra.mxu0 0.0
    %2246 = vmatprep.subr.mxu0 0.0
    %2247 = vmatpush1.msra.mxu0 0.0
    %2248 = vmatprep.subr.mxu0 0.0
    %2249 = vmatpush1.msra.mxu0 0.0
    %2250 = vmatprep.subr.mxu0 0.0
    %2251 = vmatpush1.msra.mxu0 0.0
    %2252 = vmatprep.subr.mxu0 0.0
    %2253 = vmatpush1.msra.mxu0 0.0
    %2254 = vmatprep.subr.mxu0 0.0
    %2255 = vmatpush1.msra.mxu0 0.0
    %2256 = vmatprep.subr.mxu0 0.0
    %2257 = vmatpush1.msra.mxu0 0.0
    %2258 = vmatprep.subr.mxu0 0.0
    %2259 = vmatpush1.msra.mxu0 0.0
    %2260 = vmatprep.subr.mxu0 0.0
    %2261 = vmatpush1.msra.mxu0 0.0
    %2262 = vmatprep.subr.mxu0 0.0
    %2263 = vmatpush1.msra.mxu0 0.0
    %2264 = vmatprep.subr.mxu0 0.0
    %2265 = vmatpush1.msra.mxu0 0.0
    %2266 = vmatprep.subr.mxu0 0.0
    %2267 = vmatpush1.msra.mxu0 0.0
    %2268 = vmatprep.subr.mxu0 0.0
    %2269 = vmatpush1.msra.mxu0 0.0
    %2270 = vmatprep.subr.mxu0 0.0
    %2271 = vmatpush1.msra.mxu0 0.0
    %2272 = vmatprep.subr.mxu0 0.0
    %2273 = vmatpush1.msra.mxu0 0.0
    %2274 = vmatprep.mubr.f32.mxu0 0.0
    %2275 = vmatmul.mubr.f32.gmra.mrb[0].mxu0 %v2137
    %v2276 = vpop.f32.mrb[0].mxu0
    %v2277 = vadd.f32 0.0, %v2276
    %v2278 = vpop.f32.mrb[0].mxu0
    %v2279 = vadd.f32 0.0, %v2278
    %2280 = vdwg.mxu0
    %2281 = vmatprep.subr.mxu0 %v2106
    %2282 = vmatpush1.msra.mxu0 %v2105
    %2283 = vmatprep.subr.mxu0 %v2114
    %2284 = vmatpush1.msra.mxu0 %v2113
    %2285 = vmatprep.subr.mxu0 %v2122
    %2286 = vmatpush1.msra.mxu0 %v2121
    %2287 = vmatprep.subr.mxu0 %v2130
    %2288 = vmatpush1.msra.mxu0 %v2129
    %2289 = vmatprep.subr.mxu0 0.0
    %2290 = vmatpush1.msra.mxu0 0.0
    %2291 = vmatprep.subr.mxu0 0.0
    %2292 = vmatpush1.msra.mxu0 0.0
    %2293 = vmatprep.subr.mxu0 0.0
    %2294 = vmatpush1.msra.mxu0 0.0
    %2295 = vmatprep.subr.mxu0 0.0
    %2296 = vmatpush1.msra.mxu0 0.0
    %2297 = vmatprep.subr.mxu0 0.0
    %2298 = vmatpush1.msra.mxu0 0.0
    %2299 = vmatprep.subr.mxu0 0.0
    %2300 = vmatpush1.msra.mxu0 0.0
    %2301 = vmatprep.subr.mxu0 0.0
    %2302 = vmatpush1.msra.mxu0 0.0
    %2303 = vmatprep.subr.mxu0 0.0
    %2304 = vmatpush1.msra.mxu0 0.0
    %2305 = vmatprep.subr.mxu0 0.0
    %2306 = vmatpush1.msra.mxu0 0.0
    %2307 = vmatprep.subr.mxu0 0.0
    %2308 = vmatpush1.msra.mxu0 0.0
    %2309 = vmatprep.subr.mxu0 0.0
    %2310 = vmatpush1.msra.mxu0 0.0
    %2311 = vmatprep.subr.mxu0 0.0
    %2312 = vmatpush1.msra.mxu0 0.0
    %2313 = vmatprep.subr.mxu0 0.0
    %2314 = vmatpush1.msra.mxu0 0.0
    %2315 = vmatprep.subr.mxu0 0.0
    %2316 = vmatpush1.msra.mxu0 0.0
    %2317 = vmatprep.subr.mxu0 0.0
    %2318 = vmatpush1.msra.mxu0 0.0
    %2319 = vmatprep.subr.mxu0 0.0
    %2320 = vmatpush1.msra.mxu0 0.0
    %2321 = vmatprep.subr.mxu0 0.0
    %2322 = vmatpush1.msra.mxu0 0.0
    %2323 = vmatprep.subr.mxu0 0.0
    %2324 = vmatpush1.msra.mxu0 0.0
    %2325 = vmatprep.subr.mxu0 0.0
    %2326 = vmatpush1.msra.mxu0 0.0
    %2327 = vmatprep.subr.mxu0 0.0
    %2328 = vmatpush1.msra.mxu0 0.0
    %2329 = vmatprep.subr.mxu0 0.0
    %2330 = vmatpush1.msra.mxu0 0.0
    %2331 = vmatprep.subr.mxu0 0.0
    %2332 = vmatpush1.msra.mxu0 0.0
    %2333 = vmatprep.subr.mxu0 0.0
    %2334 = vmatpush1.msra.mxu0 0.0
    %2335 = vmatprep.subr.mxu0 0.0
    %2336 = vmatpush1.msra.mxu0 0.0
    %2337 = vmatprep.subr.mxu0 0.0
    %2338 = vmatpush1.msra.mxu0 0.0
    %2339 = vmatprep.subr.mxu0 0.0
    %2340 = vmatpush1.msra.mxu0 0.0
    %2341 = vmatprep.subr.mxu0 0.0
    %2342 = vmatpush1.msra.mxu0 0.0
    %2343 = vmatprep.subr.mxu0 0.0
    %2344 = vmatpush1.msra.mxu0 0.0
    %2345 = vmatprep.mubr.f32.mxu0 0.0
    %2346 = vmatmul.mubr.f32.gmra.mrb[0].mxu0 %v2137
    %v2347 = vpop.f32.mrb[0].mxu0
    %v2348 = vadd.f32 0.0, %v2347
    %v2349 = vpop.f32.mrb[0].mxu0
    %v2350 = vadd.f32 0.0, %v2349
    %2351 = vdwg.mxu0
    %2352 = vmatprep.subr.mxu0 %v2108
    %2353 = vmatpush1.msra.mxu0 %v2107
    %2354 = vmatprep.subr.mxu0 %v2116
    %2355 = vmatpush1.msra.mxu0 %v2115
    %2356 = vmatprep.subr.mxu0 %v2124
    %2357 = vmatpush1.msra.mxu0 %v2123
    %2358 = vmatprep.subr.mxu0 %v2132
    %2359 = vmatpush1.msra.mxu0 %v2131
    %2360 = vmatprep.subr.mxu0 0.0
    %2361 = vmatpush1.msra.mxu0 0.0
    %2362 = vmatprep.subr.mxu0 0.0
    %2363 = vmatpush1.msra.mxu0 0.0
    %2364 = vmatprep.subr.mxu0 0.0
    %2365 = vmatpush1.msra.mxu0 0.0
    %2366 = vmatprep.subr.mxu0 0.0
    %2367 = vmatpush1.msra.mxu0 0.0
    %2368 = vmatprep.subr.mxu0 0.0
    %2369 = vmatpush1.msra.mxu0 0.0
    %2370 = vmatprep.subr.mxu0 0.0
    %2371 = vmatpush1.msra.mxu0 0.0
    %2372 = vmatprep.subr.mxu0 0.0
    %2373 = vmatpush1.msra.mxu0 0.0
    %2374 = vmatprep.subr.mxu0 0.0
    %2375 = vmatpush1.msra.mxu0 0.0
    %2376 = vmatprep.subr.mxu0 0.0
    %2377 = vmatpush1.msra.mxu0 0.0
    %2378 = vmatprep.subr.mxu0 0.0
    %2379 = vmatpush1.msra.mxu0 0.0
    %2380 = vmatprep.subr.mxu0 0.0
    %2381 = vmatpush1.msra.mxu0 0.0
    %2382 = vmatprep.subr.mxu0 0.0
    %2383 = vmatpush1.msra.mxu0 0.0
    %2384 = vmatprep.subr.mxu0 0.0
    %2385 = vmatpush1.msra.mxu0 0.0
    %2386 = vmatprep.subr.mxu0 0.0
    %2387 = vmatpush1.msra.mxu0 0.0
    %2388 = vmatprep.subr.mxu0 0.0
    %2389 = vmatpush1.msra.mxu0 0.0
    %2390 = vmatprep.subr.mxu0 0.0
    %2391 = vmatpush1.msra.mxu0 0.0
    %2392 = vmatprep.subr.mxu0 0.0
    %2393 = vmatpush1.msra.mxu0 0.0
    %2394 = vmatprep.subr.mxu0 0.0
    %2395 = vmatpush1.msra.mxu0 0.0
    %2396 = vmatprep.subr.mxu0 0.0
    %2397 = vmatpush1.msra.mxu0 0.0
    %2398 = vmatprep.subr.mxu0 0.0
    %2399 = vmatpush1.msra.mxu0 0.0
    %2400 = vmatprep.subr.mxu0 0.0
    %2401 = vmatpush1.msra.mxu0 0.0
    %2402 = vmatprep.subr.mxu0 0.0
    %2403 = vmatpush1.msra.mxu0 0.0
    %2404 = vmatprep.subr.mxu0 0.0
    %2405 = vmatpush1.msra.mxu0 0.0
    %2406 = vmatprep.subr.mxu0 0.0
    %2407 = vmatpush1.msra.mxu0 0.0
    %2408 = vmatprep.subr.mxu0 0.0
    %2409 = vmatpush1.msra.mxu0 0.0
    %2410 = vmatprep.subr.mxu0 0.0
    %2411 = vmatpush1.msra.mxu0 0.0
    %2412 = vmatprep.subr.mxu0 0.0
    %2413 = vmatpush1.msra.mxu0 0.0
    %2414 = vmatprep.subr.mxu0 0.0
    %2415 = vmatpush1.msra.mxu0 0.0
    %2416 = vmatprep.mubr.f32.mxu0 0.0
    %2417 = vmatmul.mubr.f32.gmra.mrb[0].mxu0 %v2137
    %v2418 = vpop.f32.mrb[0].mxu0
    %v2419 = vadd.f32 0.0, %v2418
    %v2420 = vpop.f32.mrb[0].mxu0
    %v2421 = vadd.f32 0.0, %v2420
    %2422 = vdwg.mxu0
    %v2424 = vrot.slane %v2050, 6
    %2425 = vrot.lane.b32.xlu0 %v2424, 64
    %v2426 = vpop.permute.xlu0 %2425
    %v2427 = vsel %vm1209, %v2426, 0
    %2429 = vmatprep.subr.mxu0 %v2070
    %2430 = vmatpush1.msra.mxu0 %v2069
    %2431 = vmatprep.subr.mxu0 %v2078
    %2432 = vmatpush1.msra.mxu0 %v2077
    %2433 = vmatprep.subr.mxu0 %v2086
    %2434 = vmatpush1.msra.mxu0 %v2085
    %2435 = vmatprep.subr.mxu0 %v2094
    %2436 = vmatpush1.msra.mxu0 %v2093
    %2437 = vmatprep.subr.mxu0 0.0
    %2438 = vmatpush1.msra.mxu0 0.0
    %2439 = vmatprep.subr.mxu0 0.0
    %2440 = vmatpush1.msra.mxu0 0.0
    %2441 = vmatprep.subr.mxu0 0.0
    %2442 = vmatpush1.msra.mxu0 0.0
    %2443 = vmatprep.subr.mxu0 0.0
    %2444 = vmatpush1.msra.mxu0 0.0
    %2445 = vmatprep.subr.mxu0 0.0
    %2446 = vmatpush1.msra.mxu0 0.0
    %2447 = vmatprep.subr.mxu0 0.0
    %2448 = vmatpush1.msra.mxu0 0.0
    %2449 = vmatprep.subr.mxu0 0.0
    %2450 = vmatpush1.msra.mxu0 0.0
    %2451 = vmatprep.subr.mxu0 0.0
    %2452 = vmatpush1.msra.mxu0 0.0
    %2453 = vmatprep.subr.mxu0 0.0
    %2454 = vmatpush1.msra.mxu0 0.0
    %2455 = vmatprep.subr.mxu0 0.0
    %2456 = vmatpush1.msra.mxu0 0.0
    %2457 = vmatprep.subr.mxu0 0.0
    %2458 = vmatpush1.msra.mxu0 0.0
    %2459 = vmatprep.subr.mxu0 0.0
    %2460 = vmatpush1.msra.mxu0 0.0
    %2461 = vmatprep.subr.mxu0 0.0
    %2462 = vmatpush1.msra.mxu0 0.0
    %2463 = vmatprep.subr.mxu0 0.0
    %2464 = vmatpush1.msra.mxu0 0.0
    %2465 = vmatprep.subr.mxu0 0.0
    %2466 = vmatpush1.msra.mxu0 0.0
    %2467 = vmatprep.subr.mxu0 0.0
    %2468 = vmatpush1.msra.mxu0 0.0
    %2469 = vmatprep.subr.mxu0 0.0
    %2470 = vmatpush1.msra.mxu0 0.0
    %2471 = vmatprep.subr.mxu0 0.0
    %2472 = vmatpush1.msra.mxu0 0.0
    %2473 = vmatprep.subr.mxu0 0.0
    %2474 = vmatpush1.msra.mxu0 0.0
    %2475 = vmatprep.subr.mxu0 0.0
    %2476 = vmatpush1.msra.mxu0 0.0
    %2477 = vmatprep.subr.mxu0 0.0
    %2478 = vmatpush1.msra.mxu0 0.0
    %2479 = vmatprep.subr.mxu0 0.0
    %2480 = vmatpush1.msra.mxu0 0.0
    %2481 = vmatprep.subr.mxu0 0.0
    %2482 = vmatpush1.msra.mxu0 0.0
    %2483 = vmatprep.subr.mxu0 0.0
    %2484 = vmatpush1.msra.mxu0 0.0
    %2485 = vmatprep.subr.mxu0 0.0
    %2486 = vmatpush1.msra.mxu0 0.0
    %2487 = vmatprep.subr.mxu0 0.0
    %2488 = vmatpush1.msra.mxu0 0.0
    %2489 = vmatprep.subr.mxu0 0.0
    %2490 = vmatpush1.msra.mxu0 0.0
    %2491 = vmatprep.subr.mxu0 0.0
    %2492 = vmatpush1.msra.mxu0 0.0
    %2493 = vmatprep.mubr.f32.mxu0 0.0
    %2494 = vmatmul.mubr.f32.gmra.mrb[0].mxu0 %v2427
    %v2495 = vpop.f32.mrb[0].mxu0
    %v2496 = vadd.f32 %v2206, %v2495
    %v2497 = vpop.f32.mrb[0].mxu0
    %v2498 = vadd.f32 %v2208, %v2497
    %2499 = vdwg.mxu0
    %2500 = vmatprep.subr.mxu0 %v2072
    %2501 = vmatpush1.msra.mxu0 %v2071
    %2502 = vmatprep.subr.mxu0 %v2080
    %2503 = vmatpush1.msra.mxu0 %v2079
    %2504 = vmatprep.subr.mxu0 %v2088
    %2505 = vmatpush1.msra.mxu0 %v2087
    %2506 = vmatprep.subr.mxu0 %v2096
    %2507 = vmatpush1.msra.mxu0 %v2095
    %2508 = vmatprep.subr.mxu0 0.0
    %2509 = vmatpush1.msra.mxu0 0.0
    %2510 = vmatprep.subr.mxu0 0.0
    %2511 = vmatpush1.msra.mxu0 0.0
    %2512 = vmatprep.subr.mxu0 0.0
    %2513 = vmatpush1.msra.mxu0 0.0
    %2514 = vmatprep.subr.mxu0 0.0
    %2515 = vmatpush1.msra.mxu0 0.0
    %2516 = vmatprep.subr.mxu0 0.0
    %2517 = vmatpush1.msra.mxu0 0.0
    %2518 = vmatprep.subr.mxu0 0.0
    %2519 = vmatpush1.msra.mxu0 0.0
    %2520 = vmatprep.subr.mxu0 0.0
    %2521 = vmatpush1.msra.mxu0 0.0
    %2522 = vmatprep.subr.mxu0 0.0
    %2523 = vmatpush1.msra.mxu0 0.0
    %2524 = vmatprep.subr.mxu0 0.0
    %2525 = vmatpush1.msra.mxu0 0.0
    %2526 = vmatprep.subr.mxu0 0.0
    %2527 = vmatpush1.msra.mxu0 0.0
    %2528 = vmatprep.subr.mxu0 0.0
    %2529 = vmatpush1.msra.mxu0 0.0
    %2530 = vmatprep.subr.mxu0 0.0
    %2531 = vmatpush1.msra.mxu0 0.0
    %2532 = vmatprep.subr.mxu0 0.0
    %2533 = vmatpush1.msra.mxu0 0.0
    %2534 = vmatprep.subr.mxu0 0.0
    %2535 = vmatpush1.msra.mxu0 0.0
    %2536 = vmatprep.subr.mxu0 0.0
    %2537 = vmatpush1.msra.mxu0 0.0
    %2538 = vmatprep.subr.mxu0 0.0
    %2539 = vmatpush1.msra.mxu0 0.0
    %2540 = vmatprep.subr.mxu0 0.0
    %2541 = vmatpush1.msra.mxu0 0.0
    %2542 = vmatprep.subr.mxu0 0.0
    %2543 = vmatpush1.msra.mxu0 0.0
    %2544 = vmatprep.subr.mxu0 0.0
    %2545 = vmatpush1.msra.mxu0 0.0
    %2546 = vmatprep.subr.mxu0 0.0
    %2547 = vmatpush1.msra.mxu0 0.0
    %2548 = vmatprep.subr.mxu0 0.0
    %2549 = vmatpush1.msra.mxu0 0.0
    %2550 = vmatprep.subr.mxu0 0.0
    %2551 = vmatpush1.msra.mxu0 0.0
    %2552 = vmatprep.subr.mxu0 0.0
    %2553 = vmatpush1.msra.mxu0 0.0
    %2554 = vmatprep.subr.mxu0 0.0
    %2555 = vmatpush1.msra.mxu0 0.0
    %2556 = vmatprep.subr.mxu0 0.0
    %2557 = vmatpush1.msra.mxu0 0.0
    %2558 = vmatprep.subr.mxu0 0.0
    %2559 = vmatpush1.msra.mxu0 0.0
    %2560 = vmatprep.subr.mxu0 0.0
    %2561 = vmatpush1.msra.mxu0 0.0
    %2562 = vmatprep.subr.mxu0 0.0
    %2563 = vmatpush1.msra.mxu0 0.0
    %2564 = vmatprep.mubr.f32.mxu0 0.0
    %2565 = vmatmul.mubr.f32.gmra.mrb[0].mxu0 %v2427
    %v2566 = vpop.f32.mrb[0].mxu0
    %v2567 = vadd.f32 %v2277, %v2566
    %v2568 = vpop.f32.mrb[0].mxu0
    %v2569 = vadd.f32 %v2279, %v2568
    %2570 = vdwg.mxu0
    %2571 = vmatprep.subr.mxu0 %v2074
    %2572 = vmatpush1.msra.mxu0 %v2073
    %2573 = vmatprep.subr.mxu0 %v2082
    %2574 = vmatpush1.msra.mxu0 %v2081
    %2575 = vmatprep.subr.mxu0 %v2090
    %2576 = vmatpush1.msra.mxu0 %v2089
    %2577 = vmatprep.subr.mxu0 %v2098
    %2578 = vmatpush1.msra.mxu0 %v2097
    %2579 = vmatprep.subr.mxu0 0.0
    %2580 = vmatpush1.msra.mxu0 0.0
    %2581 = vmatprep.subr.mxu0 0.0
    %2582 = vmatpush1.msra.mxu0 0.0
    %2583 = vmatprep.subr.mxu0 0.0
    %2584 = vmatpush1.msra.mxu0 0.0
    %2585 = vmatprep.subr.mxu0 0.0
    %2586 = vmatpush1.msra.mxu0 0.0
    %2587 = vmatprep.subr.mxu0 0.0
    %2588 = vmatpush1.msra.mxu0 0.0
    %2589 = vmatprep.subr.mxu0 0.0
    %2590 = vmatpush1.msra.mxu0 0.0
    %2591 = vmatprep.subr.mxu0 0.0
    %2592 = vmatpush1.msra.mxu0 0.0
    %2593 = vmatprep.subr.mxu0 0.0
    %2594 = vmatpush1.msra.mxu0 0.0
    %2595 = vmatprep.subr.mxu0 0.0
    %2596 = vmatpush1.msra.mxu0 0.0
    %2597 = vmatprep.subr.mxu0 0.0
    %2598 = vmatpush1.msra.mxu0 0.0
    %2599 = vmatprep.subr.mxu0 0.0
    %2600 = vmatpush1.msra.mxu0 0.0
    %2601 = vmatprep.subr.mxu0 0.0
    %2602 = vmatpush1.msra.mxu0 0.0
    %2603 = vmatprep.subr.mxu0 0.0
    %2604 = vmatpush1.msra.mxu0 0.0
    %2605 = vmatprep.subr.mxu0 0.0
    %2606 = vmatpush1.msra.mxu0 0.0
    %2607 = vmatprep.subr.mxu0 0.0
    %2608 = vmatpush1.msra.mxu0 0.0
    %2609 = vmatprep.subr.mxu0 0.0
    %2610 = vmatpush1.msra.mxu0 0.0
    %2611 = vmatprep.subr.mxu0 0.0
    %2612 = vmatpush1.msra.mxu0 0.0
    %2613 = vmatprep.subr.mxu0 0.0
    %2614 = vmatpush1.msra.mxu0 0.0
    %2615 = vmatprep.subr.mxu0 0.0
    %2616 = vmatpush1.msra.mxu0 0.0
    %2617 = vmatprep.subr.mxu0 0.0
    %2618 = vmatpush1.msra.mxu0 0.0
    %2619 = vmatprep.subr.mxu0 0.0
    %2620 = vmatpush1.msra.mxu0 0.0
    %2621 = vmatprep.subr.mxu0 0.0
    %2622 = vmatpush1.msra.mxu0 0.0
    %2623 = vmatprep.subr.mxu0 0.0
    %2624 = vmatpush1.msra.mxu0 0.0
    %2625 = vmatprep.subr.mxu0 0.0
    %2626 = vmatpush1.msra.mxu0 0.0
    %2627 = vmatprep.subr.mxu0 0.0
    %2628 = vmatpush1.msra.mxu0 0.0
    %2629 = vmatprep.subr.mxu0 0.0
    %2630 = vmatpush1.msra.mxu0 0.0
    %2631 = vmatprep.subr.mxu0 0.0
    %2632 = vmatpush1.msra.mxu0 0.0
    %2633 = vmatprep.subr.mxu0 0.0
    %2634 = vmatpush1.msra.mxu0 0.0
    %2635 = vmatprep.mubr.f32.mxu0 0.0
    %2636 = vmatmul.mubr.f32.gmra.mrb[0].mxu0 %v2427
    %v2637 = vpop.f32.mrb[0].mxu0
    %v2638 = vadd.f32 %v2348, %v2637
    %v2639 = vpop.f32.mrb[0].mxu0
    %v2640 = vadd.f32 %v2350, %v2639
    %2641 = vdwg.mxu0
    %2642 = vmatprep.subr.mxu0 %v2076
    %2643 = vmatpush1.msra.mxu0 %v2075
    %2644 = vmatprep.subr.mxu0 %v2084
    %2645 = vmatpush1.msra.mxu0 %v2083
    %2646 = vmatprep.subr.mxu0 %v2092
    %2647 = vmatpush1.msra.mxu0 %v2091
    %2648 = vmatprep.subr.mxu0 %v2100
    %2649 = vmatpush1.msra.mxu0 %v2099
    %2650 = vmatprep.subr.mxu0 0.0
    %2651 = vmatpush1.msra.mxu0 0.0
    %2652 = vmatprep.subr.mxu0 0.0
    %2653 = vmatpush1.msra.mxu0 0.0
    %2654 = vmatprep.subr.mxu0 0.0
    %2655 = vmatpush1.msra.mxu0 0.0
    %2656 = vmatprep.subr.mxu0 0.0
    %2657 = vmatpush1.msra.mxu0 0.0
    %2658 = vmatprep.subr.mxu0 0.0
    %2659 = vmatpush1.msra.mxu0 0.0
    %2660 = vmatprep.subr.mxu0 0.0
    %2661 = vmatpush1.msra.mxu0 0.0
    %2662 = vmatprep.subr.mxu0 0.0
    %2663 = vmatpush1.msra.mxu0 0.0
    %2664 = vmatprep.subr.mxu0 0.0
    %2665 = vmatpush1.msra.mxu0 0.0
    %2666 = vmatprep.subr.mxu0 0.0
    %2667 = vmatpush1.msra.mxu0 0.0
    %2668 = vmatprep.subr.mxu0 0.0
    %2669 = vmatpush1.msra.mxu0 0.0
    %2670 = vmatprep.subr.mxu0 0.0
    %2671 = vmatpush1.msra.mxu0 0.0
    %2672 = vmatprep.subr.mxu0 0.0
    %2673 = vmatpush1.msra.mxu0 0.0
    %2674 = vmatprep.subr.mxu0 0.0
    %2675 = vmatpush1.msra.mxu0 0.0
    %2676 = vmatprep.subr.mxu0 0.0
    %2677 = vmatpush1.msra.mxu0 0.0
    %2678 = vmatprep.subr.mxu0 0.0
    %2679 = vmatpush1.msra.mxu0 0.0
    %2680 = vmatprep.subr.mxu0 0.0
    %2681 = vmatpush1.msra.mxu0 0.0
    %2682 = vmatprep.subr.mxu0 0.0
    %2683 = vmatpush1.msra.mxu0 0.0
    %2684 = vmatprep.subr.mxu0 0.0
    %2685 = vmatpush1.msra.mxu0 0.0
    %2686 = vmatprep.subr.mxu0 0.0
    %2687 = vmatpush1.msra.mxu0 0.0
    %2688 = vmatprep.subr.mxu0 0.0
    %2689 = vmatpush1.msra.mxu0 0.0
    %2690 = vmatprep.subr.mxu0 0.0
    %2691 = vmatpush1.msra.mxu0 0.0
    %2692 = vmatprep.subr.mxu0 0.0
    %2693 = vmatpush1.msra.mxu0 0.0
    %2694 = vmatprep.subr.mxu0 0.0
    %2695 = vmatpush1.msra.mxu0 0.0
    %2696 = vmatprep.subr.mxu0 0.0
    %2697 = vmatpush1.msra.mxu0 0.0
    %2698 = vmatprep.subr.mxu0 0.0
    %2699 = vmatpush1.msra.mxu0 0.0
    %2700 = vmatprep.subr.mxu0 0.0
    %2701 = vmatpush1.msra.mxu0 0.0
    %2702 = vmatprep.subr.mxu0 0.0
    %2703 = vmatpush1.msra.mxu0 0.0
    %2704 = vmatprep.subr.mxu0 0.0
    %2705 = vmatpush1.msra.mxu0 0.0
    %2706 = vmatprep.mubr.f32.mxu0 0.0
    %2707 = vmatmul.mubr.f32.gmra.mrb[0].mxu0 %v2427
    %v2708 = vpop.f32.mrb[0].mxu0
    %v2709 = vadd.f32 %v2419, %v2708
    %v2710 = vpop.f32.mrb[0].mxu0
    %v2711 = vadd.f32 %v2421, %v2710
    %2712 = vdwg.mxu0
    %v2713 = vld [vmem:[%s9] sm:$0xff]
    %v2715 = vlaneseq
    %v2716 = vshrl.u32 %v2715, 7
    %v2717 = vsub.s32 0, %v2716
    %v2718 = vrot.slane %v2713, %v2717
    %v2719 = vlaneseq
    %v2720 = vshrl.u32 %v2719, 7
    %v2721 = vsub.s32 1, %v2720
    %v2722 = vrot.slane %v2713, %v2721
    %v2723 = vlaneseq
    %v2724 = vshrl.u32 %v2723, 7
    %v2725 = vsub.s32 2, %v2724
    %v2726 = vrot.slane %v2713, %v2725
    %v2727 = vlaneseq
    %v2728 = vshrl.u32 %v2727, 7
    %v2729 = vsub.s32 3, %v2728
    %v2730 = vrot.slane %v2713, %v2729
    %v2731 = vlaneseq
    %v2732 = vshrl.u32 %v2731, 7
    %v2733 = vsub.s32 4, %v2732
    %v2734 = vrot.slane %v2713, %v2733
    %v2735 = vlaneseq
    %v2736 = vshrl.u32 %v2735, 7
    %v2737 = vsub.s32 5, %v2736
    %v2738 = vrot.slane %v2713, %v2737
    %v2739 = vlaneseq
    %v2740 = vshrl.u32 %v2739, 7
    %v2741 = vsub.s32 6, %v2740
    %v2742 = vrot.slane %v2713, %v2741
    %v2743 = vlaneseq
    %v2744 = vshrl.u32 %v2743, 7
    %v2745 = vsub.s32 7, %v2744
    %v2746 = vrot.slane %v2713, %v2745
    %v2755 = vadd.f32 %v2496, %v2718
    %v2756 = vadd.f32 %v2498, %v2722
    %v2757 = vadd.f32 %v2567, %v2726
    %v2758 = vadd.f32 %v2569, %v2730
    %v2759 = vadd.f32 %v2638, %v2734
    %v2760 = vadd.f32 %v2640, %v2738
    %v2761 = vadd.f32 %v2709, %v2742
    %v2762 = vadd.f32 %v2711, %v2746
    %v2763 = vmax.f32 %v2755, 0.0
    %v2764 = vmax.f32 %v2756, 0.0
    %v2765 = vmax.f32 %v2757, 0.0
    %v2766 = vmax.f32 %v2758, 0.0
    %v2767 = vmax.f32 %v2759, 0.0
    %v2768 = vmax.f32 %v2760, 0.0
    %v2769 = vmax.f32 %v2761, 0.0
    %v2770 = vmax.f32 %v2762, 0.0
    %v2771 = vld [vmem:[%s10] sm:$0xff]
    %v2772 = vld [vmem:[%s10 + $0x8] sm:$0xff]
    %v2773 = vld [vmem:[%s10 + $0x10] sm:$0xff]
    %v2774 = vld [vmem:[%s10 + $0x18] sm:$0xff]
    %v2775 = vld [vmem:[%s10 + $0x20] sm:$0xff]
    %v2776 = vld [vmem:[%s10 + $0x28] sm:$0xff]
    %v2777 = vld [vmem:[%s10 + $0x30] sm:$0xff]
    %v2778 = vld [vmem:[%s10 + $0x38] sm:$0xff]
    %v2779 = vld [vmem:[%s10 + $0x40] sm:$0xff]
    %v2780 = vld [vmem:[%s10 + $0x48] sm:$0xff]
    %v2781 = vld [vmem:[%s10 + $0x50] sm:$0xff]
    %v2782 = vld [vmem:[%s10 + $0x58] sm:$0xff]
    %v2783 = vld [vmem:[%s10 + $0x60] sm:$0xff]
    %v2784 = vld [vmem:[%s10 + $0x68] sm:$0xff]
    %v2785 = vld [vmem:[%s10 + $0x70] sm:$0xff]
    %v2786 = vld [vmem:[%s10 + $0x78] sm:$0xff]
    %v2787 = vld [vmem:[%s10 + $0x80] sm:$0xff]
    %v2788 = vld [vmem:[%s10 + $0x88] sm:$0xff]
    %v2789 = vld [vmem:[%s10 + $0x90] sm:$0xff]
    %v2790 = vld [vmem:[%s10 + $0x98] sm:$0xff]
    %v2791 = vld [vmem:[%s10 + $0xa0] sm:$0xff]
    %v2792 = vld [vmem:[%s10 + $0xa8] sm:$0xff]
    %v2793 = vld [vmem:[%s10 + $0xb0] sm:$0xff]
    %v2794 = vld [vmem:[%s10 + $0xb8] sm:$0xff]
    %v2795 = vld [vmem:[%s10 + $0xc0] sm:$0xff]
    %v2796 = vld [vmem:[%s10 + $0xc8] sm:$0xff]
    %v2797 = vld [vmem:[%s10 + $0xd0] sm:$0xff]
    %v2798 = vld [vmem:[%s10 + $0xd8] sm:$0xff]
    %v2799 = vld [vmem:[%s10 + $0xe0] sm:$0xff]
    %v2800 = vld [vmem:[%s10 + $0xe8] sm:$0xff]
    %v2801 = vld [vmem:[%s10 + $0xf0] sm:$0xff]
    %v2802 = vld [vmem:[%s10 + $0xf8] sm:$0xff]
    %v2803 = vld [vmem:[%s10 + $0x100] sm:$0xff]
    %v2804 = vld [vmem:[%s10 + $0x108] sm:$0xff]
    %v2805 = vld [vmem:[%s10 + $0x110] sm:$0xff]
    %v2806 = vld [vmem:[%s10 + $0x118] sm:$0xff]
    %v2807 = vld [vmem:[%s10 + $0x120] sm:$0xff]
    %v2808 = vld [vmem:[%s10 + $0x128] sm:$0xff]
    %v2809 = vld [vmem:[%s10 + $0x130] sm:$0xff]
    %v2810 = vld [vmem:[%s10 + $0x138] sm:$0xff]
    %v2811 = vld [vmem:[%s10 + $0x140] sm:$0xff]
    %v2812 = vld [vmem:[%s10 + $0x148] sm:$0xff]
    %v2813 = vld [vmem:[%s10 + $0x150] sm:$0xff]
    %v2814 = vld [vmem:[%s10 + $0x158] sm:$0xff]
    %v2815 = vld [vmem:[%s10 + $0x160] sm:$0xff]
    %v2816 = vld [vmem:[%s10 + $0x168] sm:$0xff]
    %v2817 = vld [vmem:[%s10 + $0x170] sm:$0xff]
    %v2818 = vld [vmem:[%s10 + $0x178] sm:$0xff]
    %v2819 = vld [vmem:[%s10 + $0x180] sm:$0xff]
    %v2820 = vld [vmem:[%s10 + $0x188] sm:$0xff]
    %v2821 = vld [vmem:[%s10 + $0x190] sm:$0xff]
    %v2822 = vld [vmem:[%s10 + $0x198] sm:$0xff]
    %v2823 = vld [vmem:[%s10 + $0x1a0] sm:$0xff]
    %v2824 = vld [vmem:[%s10 + $0x1a8] sm:$0xff]
    %v2825 = vld [vmem:[%s10 + $0x1b0] sm:$0xff]
    %v2826 = vld [vmem:[%s10 + $0x1b8] sm:$0xff]
    %v2827 = vld [vmem:[%s10 + $0x1c0] sm:$0xff]
    %v2828 = vld [vmem:[%s10 + $0x1c8] sm:$0xff]
    %v2829 = vld [vmem:[%s10 + $0x1d0] sm:$0xff]
    %v2830 = vld [vmem:[%s10 + $0x1d8] sm:$0xff]
    %v2831 = vld [vmem:[%s10 + $0x1e0] sm:$0xff]
    %v2832 = vld [vmem:[%s10 + $0x1e8] sm:$0xff]
    %v2833 = vld [vmem:[%s10 + $0x1f0] sm:$0xff]
    %v2834 = vld [vmem:[%s10 + $0x1f8] sm:$0xff]
    %v2835 = vld [vmem:[%s10 + $0x200] sm:$0xff]
    %v2836 = vld [vmem:[%s10 + $0x208] sm:$0xff]
    %v2837 = vld [vmem:[%s10 + $0x210] sm:$0xff]
    %v2838 = vld [vmem:[%s10 + $0x218] sm:$0xff]
    %v2839 = vld [vmem:[%s10 + $0x220] sm:$0xff]
    %v2840 = vld [vmem:[%s10 + $0x228] sm:$0xff]
    %v2841 = vld [vmem:[%s10 + $0x230] sm:$0xff]
    %v2842 = vld [vmem:[%s10 + $0x238] sm:$0xff]
    %v2843 = vld [vmem:[%s10 + $0x240] sm:$0xff]
    %v2844 = vld [vmem:[%s10 + $0x248] sm:$0xff]
    %v2845 = vld [vmem:[%s10 + $0x250] sm:$0xff]
    %v2846 = vld [vmem:[%s10 + $0x258] sm:$0xff]
    %v2847 = vld [vmem:[%s10 + $0x260] sm:$0xff]
    %v2848 = vld [vmem:[%s10 + $0x268] sm:$0xff]
    %v2849 = vld [vmem:[%s10 + $0x270] sm:$0xff]
    %v2850 = vld [vmem:[%s10 + $0x278] sm:$0xff]
    %v2851 = vld [vmem:[%s10 + $0x280] sm:$0xff]
    %v2852 = vld [vmem:[%s10 + $0x288] sm:$0xff]
    %v2853 = vld [vmem:[%s10 + $0x290] sm:$0xff]
    %v2854 = vld [vmem:[%s10 + $0x298] sm:$0xff]
    %v2855 = vld [vmem:[%s10 + $0x2a0] sm:$0xff]
    %v2856 = vld [vmem:[%s10 + $0x2a8] sm:$0xff]
    %v2857 = vld [vmem:[%s10 + $0x2b0] sm:$0xff]
    %v2858 = vld [vmem:[%s10 + $0x2b8] sm:$0xff]
    %v2859 = vld [vmem:[%s10 + $0x2c0] sm:$0xff]
    %v2860 = vld [vmem:[%s10 + $0x2c8] sm:$0xff]
    %v2861 = vld [vmem:[%s10 + $0x2d0] sm:$0xff]
    %v2862 = vld [vmem:[%s10 + $0x2d8] sm:$0xff]
    %v2863 = vld [vmem:[%s10 + $0x2e0] sm:$0xff]
    %v2864 = vld [vmem:[%s10 + $0x2e8] sm:$0xff]
    %v2865 = vld [vmem:[%s10 + $0x2f0] sm:$0xff]
    %v2866 = vld [vmem:[%s10 + $0x2f8] sm:$0xff]
    %v2867 = vld [vmem:[%s10 + $0x300] sm:$0xff]
    %v2868 = vld [vmem:[%s10 + $0x308] sm:$0xff]
    %v2869 = vld [vmem:[%s10 + $0x310] sm:$0xff]
    %v2870 = vld [vmem:[%s10 + $0x318] sm:$0xff]
    %v2871 = vld [vmem:[%s10 + $0x320] sm:$0xff]
    %v2872 = vld [vmem:[%s10 + $0x328] sm:$0xff]
    %v2873 = vld [vmem:[%s10 + $0x330] sm:$0xff]
    %v2874 = vld [vmem:[%s10 + $0x338] sm:$0xff]
    %v2875 = vld [vmem:[%s10 + $0x340] sm:$0xff]
    %v2876 = vld [vmem:[%s10 + $0x348] sm:$0xff]
    %v2877 = vld [vmem:[%s10 + $0x350] sm:$0xff]
    %v2878 = vld [vmem:[%s10 + $0x358] sm:$0xff]
    %v2879 = vld [vmem:[%s10 + $0x360] sm:$0xff]
    %v2880 = vld [vmem:[%s10 + $0x368] sm:$0xff]
    %v2881 = vld [vmem:[%s10 + $0x370] sm:$0xff]
    %v2882 = vld [vmem:[%s10 + $0x378] sm:$0xff]
    %v2883 = vld [vmem:[%s10 + $0x380] sm:$0xff]
    %v2884 = vld [vmem:[%s10 + $0x388] sm:$0xff]
    %v2885 = vld [vmem:[%s10 + $0x390] sm:$0xff]
    %v2886 = vld [vmem:[%s10 + $0x398] sm:$0xff]
    %v2887 = vld [vmem:[%s10 + $0x3a0] sm:$0xff]
    %v2888 = vld [vmem:[%s10 + $0x3a8] sm:$0xff]
    %v2889 = vld [vmem:[%s10 + $0x3b0] sm:$0xff]
    %v2890 = vld [vmem:[%s10 + $0x3b8] sm:$0xff]
    %v2891 = vld [vmem:[%s10 + $0x3c0] sm:$0xff]
    %v2892 = vld [vmem:[%s10 + $0x3c8] sm:$0xff]
    %v2893 = vld [vmem:[%s10 + $0x3d0] sm:$0xff]
    %v2894 = vld [vmem:[%s10 + $0x3d8] sm:$0xff]
    %v2895 = vld [vmem:[%s10 + $0x3e0] sm:$0xff]
    %v2896 = vld [vmem:[%s10 + $0x3e8] sm:$0xff]
    %v2897 = vld [vmem:[%s10 + $0x3f0] sm:$0xff]
    %v2898 = vld [vmem:[%s10 + $0x3f8] sm:$0xff]
    %v2899 = vld [vmem:[%s11] sm:$0x1]
    %v2901 = vlaneseq
    %v2902 = vshrl.u32 %v2901, 7
    %v2903 = vsub.s32 0, %v2902
    %v2904 = vrot.slane %v2899, %v2903
    %2906 = vmatprep.subr.mxu0 0.0
    %2907 = vmatpush1.msra.mxu0 %v2771
    %2908 = vmatprep.subr.mxu0 0.0
    %2909 = vmatpush1.msra.mxu0 %v2772
    %2910 = vmatprep.subr.mxu0 0.0
    %2911 = vmatpush1.msra.mxu0 %v2773
    %2912 = vmatprep.subr.mxu0 0.0
    %2913 = vmatpush1.msra.mxu0 %v2774
    %2914 = vmatprep.subr.mxu0 0.0
    %2915 = vmatpush1.msra.mxu0 %v2775
    %2916 = vmatprep.subr.mxu0 0.0
    %2917 = vmatpush1.msra.mxu0 %v2776
    %2918 = vmatprep.subr.mxu0 0.0
    %2919 = vmatpush1.msra.mxu0 %v2777
    %2920 = vmatprep.subr.mxu0 0.0
    %2921 = vmatpush1.msra.mxu0 %v2778
    %2922 = vmatprep.subr.mxu0 0.0
    %2923 = vmatpush1.msra.mxu0 %v2779
    %2924 = vmatprep.subr.mxu0 0.0
    %2925 = vmatpush1.msra.mxu0 %v2780
    %2926 = vmatprep.subr.mxu0 0.0
    %2927 = vmatpush1.msra.mxu0 %v2781
    %2928 = vmatprep.subr.mxu0 0.0
    %2929 = vmatpush1.msra.mxu0 %v2782
    %2930 = vmatprep.subr.mxu0 0.0
    %2931 = vmatpush1.msra.mxu0 %v2783
    %2932 = vmatprep.subr.mxu0 0.0
    %2933 = vmatpush1.msra.mxu0 %v2784
    %2934 = vmatprep.subr.mxu0 0.0
    %2935 = vmatpush1.msra.mxu0 %v2785
    %2936 = vmatprep.subr.mxu0 0.0
    %2937 = vmatpush1.msra.mxu0 %v2786
    %2938 = vmatprep.subr.mxu0 0.0
    %2939 = vmatpush1.msra.mxu0 %v2787
    %2940 = vmatprep.subr.mxu0 0.0
    %2941 = vmatpush1.msra.mxu0 %v2788
    %2942 = vmatprep.subr.mxu0 0.0
    %2943 = vmatpush1.msra.mxu0 %v2789
    %2944 = vmatprep.subr.mxu0 0.0
    %2945 = vmatpush1.msra.mxu0 %v2790
    %2946 = vmatprep.subr.mxu0 0.0
    %2947 = vmatpush1.msra.mxu0 %v2791
    %2948 = vmatprep.subr.mxu0 0.0
    %2949 = vmatpush1.msra.mxu0 %v2792
    %2950 = vmatprep.subr.mxu0 0.0
    %2951 = vmatpush1.msra.mxu0 %v2793
    %2952 = vmatprep.subr.mxu0 0.0
    %2953 = vmatpush1.msra.mxu0 %v2794
    %2954 = vmatprep.subr.mxu0 0.0
    %2955 = vmatpush1.msra.mxu0 %v2795
    %2956 = vmatprep.subr.mxu0 0.0
    %2957 = vmatpush1.msra.mxu0 %v2796
    %2958 = vmatprep.subr.mxu0 0.0
    %2959 = vmatpush1.msra.mxu0 %v2797
    %2960 = vmatprep.subr.mxu0 0.0
    %2961 = vmatpush1.msra.mxu0 %v2798
    %2962 = vmatprep.subr.mxu0 0.0
    %2963 = vmatpush1.msra.mxu0 %v2799
    %2964 = vmatprep.subr.mxu0 0.0
    %2965 = vmatpush1.msra.mxu0 %v2800
    %2966 = vmatprep.subr.mxu0 0.0
    %2967 = vmatpush1.msra.mxu0 %v2801
    %2968 = vmatprep.subr.mxu0 0.0
    %2969 = vmatpush1.msra.mxu0 %v2802
    %2970 = vmatprep.mubr.f32.mxu0 %v2764
    %2971 = vmatmul.mubr.f32.gmra.mrb[0].mxu0 %v2763
    %v2972 = vpop.f32.mrb[0].mxu0
    %v2973 = vadd.f32 %v2904, %v2972
    %v2974 = vpop.f32.mrb[0].mxu0
    %2975 = vdwg.mxu0
    %2976 = vmatprep.subr.mxu0 0.0
    %2977 = vmatpush1.msra.mxu0 %v2803
    %2978 = vmatprep.subr.mxu0 0.0
    %2979 = vmatpush1.msra.mxu0 %v2804
    %2980 = vmatprep.subr.mxu0 0.0
    %2981 = vmatpush1.msra.mxu0 %v2805
    %2982 = vmatprep.subr.mxu0 0.0
    %2983 = vmatpush1.msra.mxu0 %v2806
    %2984 = vmatprep.subr.mxu0 0.0
    %2985 = vmatpush1.msra.mxu0 %v2807
    %2986 = vmatprep.subr.mxu0 0.0
    %2987 = vmatpush1.msra.mxu0 %v2808
    %2988 = vmatprep.subr.mxu0 0.0
    %2989 = vmatpush1.msra.mxu0 %v2809
    %2990 = vmatprep.subr.mxu0 0.0
    %2991 = vmatpush1.msra.mxu0 %v2810
    %2992 = vmatprep.subr.mxu0 0.0
    %2993 = vmatpush1.msra.mxu0 %v2811
    %2994 = vmatprep.subr.mxu0 0.0
    %2995 = vmatpush1.msra.mxu0 %v2812
    %2996 = vmatprep.subr.mxu0 0.0
    %2997 = vmatpush1.msra.mxu0 %v2813
    %2998 = vmatprep.subr.mxu0 0.0
    %2999 = vmatpush1.msra.mxu0 %v2814
    %3000 = vmatprep.subr.mxu0 0.0
    %3001 = vmatpush1.msra.mxu0 %v2815
    %3002 = vmatprep.subr.mxu0 0.0
    %3003 = vmatpush1.msra.mxu0 %v2816
    %3004 = vmatprep.subr.mxu0 0.0
    %3005 = vmatpush1.msra.mxu0 %v2817
    %3006 = vmatprep.subr.mxu0 0.0
    %3007 = vmatpush1.msra.mxu0 %v2818
    %3008 = vmatprep.subr.mxu0 0.0
    %3009 = vmatpush1.msra.mxu0 %v2819
    %3010 = vmatprep.subr.mxu0 0.0
    %3011 = vmatpush1.msra.mxu0 %v2820
    %3012 = vmatprep.subr.mxu0 0.0
    %3013 = vmatpush1.msra.mxu0 %v2821
    %3014 = vmatprep.subr.mxu0 0.0
    %3015 = vmatpush1.msra.mxu0 %v2822
    %3016 = vmatprep.subr.mxu0 0.0
    %3017 = vmatpush1.msra.mxu0 %v2823
    %3018 = vmatprep.subr.mxu0 0.0
    %3019 = vmatpush1.msra.mxu0 %v2824
    %3020 = vmatprep.subr.mxu0 0.0
    %3021 = vmatpush1.msra.mxu0 %v2825
    %3022 = vmatprep.subr.mxu0 0.0
    %3023 = vmatpush1.msra.mxu0 %v2826
    %3024 = vmatprep.subr.mxu0 0.0
    %3025 = vmatpush1.msra.mxu0 %v2827
    %3026 = vmatprep.subr.mxu0 0.0
    %3027 = vmatpush1.msra.mxu0 %v2828
    %3028 = vmatprep.subr.mxu0 0.0
    %3029 = vmatpush1.msra.mxu0 %v2829
    %3030 = vmatprep.subr.mxu0 0.0
    %3031 = vmatpush1.msra.mxu0 %v2830
    %3032 = vmatprep.subr.mxu0 0.0
    %3033 = vmatpush1.msra.mxu0 %v2831
    %3034 = vmatprep.subr.mxu0 0.0
    %3035 = vmatpush1.msra.mxu0 %v2832
    %3036 = vmatprep.subr.mxu0 0.0
    %3037 = vmatpush1.msra.mxu0 %v2833
    %3038 = vmatprep.subr.mxu0 0.0
    %3039 = vmatpush1.msra.mxu0 %v2834
    %3040 = vmatprep.mubr.f32.mxu0 %v2766
    %3041 = vmatmul.mubr.f32.gmra.mrb[0].mxu0 %v2765
    %v3042 = vpop.f32.mrb[0].mxu0
    %v3043 = vadd.f32 %v2973, %v3042
    %v3044 = vpop.f32.mrb[0].mxu0
    %3045 = vdwg.mxu0
    %3046 = vmatprep.subr.mxu0 0.0
    %3047 = vmatpush1.msra.mxu0 %v2835
    %3048 = vmatprep.subr.mxu0 0.0
    %3049 = vmatpush1.msra.mxu0 %v2836
    %3050 = vmatprep.subr.mxu0 0.0
    %3051 = vmatpush1.msra.mxu0 %v2837
    %3052 = vmatprep.subr.mxu0 0.0
    %3053 = vmatpush1.msra.mxu0 %v2838
    %3054 = vmatprep.subr.mxu0 0.0
    %3055 = vmatpush1.msra.mxu0 %v2839
    %3056 = vmatprep.subr.mxu0 0.0
    %3057 = vmatpush1.msra.mxu0 %v2840
    %3058 = vmatprep.subr.mxu0 0.0
    %3059 = vmatpush1.msra.mxu0 %v2841
    %3060 = vmatprep.subr.mxu0 0.0
    %3061 = vmatpush1.msra.mxu0 %v2842
    %3062 = vmatprep.subr.mxu0 0.0
    %3063 = vmatpush1.msra.mxu0 %v2843
    %3064 = vmatprep.subr.mxu0 0.0
    %3065 = vmatpush1.msra.mxu0 %v2844
    %3066 = vmatprep.subr.mxu0 0.0
    %3067 = vmatpush1.msra.mxu0 %v2845
    %3068 = vmatprep.subr.mxu0 0.0
    %3069 = vmatpush1.msra.mxu0 %v2846
    %3070 = vmatprep.subr.mxu0 0.0
    %3071 = vmatpush1.msra.mxu0 %v2847
    %3072 = vmatprep.subr.mxu0 0.0
    %3073 = vmatpush1.msra.mxu0 %v2848
    %3074 = vmatprep.subr.mxu0 0.0
    %3075 = vmatpush1.msra.mxu0 %v2849
    %3076 = vmatprep.subr.mxu0 0.0
    %3077 = vmatpush1.msra.mxu0 %v2850
    %3078 = vmatprep.subr.mxu0 0.0
    %3079 = vmatpush1.msra.mxu0 %v2851
    %3080 = vmatprep.subr.mxu0 0.0
    %3081 = vmatpush1.msra.mxu0 %v2852
    %3082 = vmatprep.subr.mxu0 0.0
    %3083 = vmatpush1.msra.mxu0 %v2853
    %3084 = vmatprep.subr.mxu0 0.0
    %3085 = vmatpush1.msra.mxu0 %v2854
    %3086 = vmatprep.subr.mxu0 0.0
    %3087 = vmatpush1.msra.mxu0 %v2855
    %3088 = vmatprep.subr.mxu0 0.0
    %3089 = vmatpush1.msra.mxu0 %v2856
    %3090 = vmatprep.subr.mxu0 0.0
    %3091 = vmatpush1.msra.mxu0 %v2857
    %3092 = vmatprep.subr.mxu0 0.0
    %3093 = vmatpush1.msra.mxu0 %v2858
    %3094 = vmatprep.subr.mxu0 0.0
    %3095 = vmatpush1.msra.mxu0 %v2859
    %3096 = vmatprep.subr.mxu0 0.0
    %3097 = vmatpush1.msra.mxu0 %v2860
    %3098 = vmatprep.subr.mxu0 0.0
    %3099 = vmatpush1.msra.mxu0 %v2861
    %3100 = vmatprep.subr.mxu0 0.0
    %3101 = vmatpush1.msra.mxu0 %v2862
    %3102 = vmatprep.subr.mxu0 0.0
    %3103 = vmatpush1.msra.mxu0 %v2863
    %3104 = vmatprep.subr.mxu0 0.0
    %3105 = vmatpush1.msra.mxu0 %v2864
    %3106 = vmatprep.subr.mxu0 0.0
    %3107 = vmatpush1.msra.mxu0 %v2865
    %3108 = vmatprep.subr.mxu0 0.0
    %3109 = vmatpush1.msra.mxu0 %v2866
    %3110 = vmatprep.mubr.f32.mxu0 %v2768
    %3111 = vmatmul.mubr.f32.gmra.mrb[0].mxu0 %v2767
    %v3112 = vpop.f32.mrb[0].mxu0
    %v3113 = vadd.f32 %v3043, %v3112
    %v3114 = vpop.f32.mrb[0].mxu0
    %3115 = vdwg.mxu0
    %3116 = vmatprep.subr.mxu0 0.0
    %3117 = vmatpush1.msra.mxu0 %v2867
    %3118 = vmatprep.subr.mxu0 0.0
    %3119 = vmatpush1.msra.mxu0 %v2868
    %3120 = vmatprep.subr.mxu0 0.0
    %3121 = vmatpush1.msra.mxu0 %v2869
    %3122 = vmatprep.subr.mxu0 0.0
    %3123 = vmatpush1.msra.mxu0 %v2870
    %3124 = vmatprep.subr.mxu0 0.0
    %3125 = vmatpush1.msra.mxu0 %v2871
    %3126 = vmatprep.subr.mxu0 0.0
    %3127 = vmatpush1.msra.mxu0 %v2872
    %3128 = vmatprep.subr.mxu0 0.0
    %3129 = vmatpush1.msra.mxu0 %v2873
    %3130 = vmatprep.subr.mxu0 0.0
    %3131 = vmatpush1.msra.mxu0 %v2874
    %3132 = vmatprep.subr.mxu0 0.0
    %3133 = vmatpush1.msra.mxu0 %v2875
    %3134 = vmatprep.subr.mxu0 0.0
    %3135 = vmatpush1.msra.mxu0 %v2876
    %3136 = vmatprep.subr.mxu0 0.0
    %3137 = vmatpush1.msra.mxu0 %v2877
    %3138 = vmatprep.subr.mxu0 0.0
    %3139 = vmatpush1.msra.mxu0 %v2878
    %3140 = vmatprep.subr.mxu0 0.0
    %3141 = vmatpush1.msra.mxu0 %v2879
    %3142 = vmatprep.subr.mxu0 0.0
    %3143 = vmatpush1.msra.mxu0 %v2880
    %3144 = vmatprep.subr.mxu0 0.0
    %3145 = vmatpush1.msra.mxu0 %v2881
    %3146 = vmatprep.subr.mxu0 0.0
    %3147 = vmatpush1.msra.mxu0 %v2882
    %3148 = vmatprep.subr.mxu0 0.0
    %3149 = vmatpush1.msra.mxu0 %v2883
    %3150 = vmatprep.subr.mxu0 0.0
    %3151 = vmatpush1.msra.mxu0 %v2884
    %3152 = vmatprep.subr.mxu0 0.0
    %3153 = vmatpush1.msra.mxu0 %v2885
    %3154 = vmatprep.subr.mxu0 0.0
    %3155 = vmatpush1.msra.mxu0 %v2886
    %3156 = vmatprep.subr.mxu0 0.0
    %3157 = vmatpush1.msra.mxu0 %v2887
    %3158 = vmatprep.subr.mxu0 0.0
    %3159 = vmatpush1.msra.mxu0 %v2888
    %3160 = vmatprep.subr.mxu0 0.0
    %3161 = vmatpush1.msra.mxu0 %v2889
    %3162 = vmatprep.subr.mxu0 0.0
    %3163 = vmatpush1.msra.mxu0 %v2890
    %3164 = vmatprep.subr.mxu0 0.0
    %3165 = vmatpush1.msra.mxu0 %v2891
    %3166 = vmatprep.subr.mxu0 0.0
    %3167 = vmatpush1.msra.mxu0 %v2892
    %3168 = vmatprep.subr.mxu0 0.0
    %3169 = vmatpush1.msra.mxu0 %v2893
    %3170 = vmatprep.subr.mxu0 0.0
    %3171 = vmatpush1.msra.mxu0 %v2894
    %3172 = vmatprep.subr.mxu0 0.0
    %3173 = vmatpush1.msra.mxu0 %v2895
    %3174 = vmatprep.subr.mxu0 0.0
    %3175 = vmatpush1.msra.mxu0 %v2896
    %3176 = vmatprep.subr.mxu0 0.0
    %3177 = vmatpush1.msra.mxu0 %v2897
    %3178 = vmatprep.subr.mxu0 0.0
    %3179 = vmatpush1.msra.mxu0 %v2898
    %3180 = vmatprep.mubr.f32.mxu0 %v2770
    %3181 = vmatmul.mubr.f32.gmra.mrb[0].mxu0 %v2769
    %v3182 = vpop.f32.mrb[0].mxu0
    %v3183 = vadd.f32 %v3113, %v3182
    %v3184 = vpop.f32.mrb[0].mxu0
    %3185 = vdwg.mxu0
    %vm3186 = vcmask 25600
    %3187 = vst.msk [vmem:[#allocation3] sm:$0x3] %vm3186, %v3183
    // Predicated region
    $region50: #{tpu_custom_call.1} parent=1 // pred_check
      _
    $region51: #{tpu_custom_call.1} parent=1 // pred_check_branch
      %3189 = sbr.rel (0) target = $region53
    $region52: #{tpu_custom_call.1} parent=1 // pred_region
      %s3191 = ssub.s32 32, 32
      %3192 = vsyncadd [#allocation4], %s3191
      %s3194 = sshll.u32 [#allocation3], 4
      %s3195 = int_to_ptr.vmem [resolvable:$true] %s3194
      %3197 = dma.vmem_to_hbm [thread:$0]  %s3195, 32, %s12, [#allocation4]
    $region53: #{tpu_custom_call.1} parent=1 // pred_fallthru
      _
    // Predicated region
    $region54: #{tpu_custom_call.1} parent=1 // pred_check
      _
    $region55: #{tpu_custom_call.1} parent=1 // pred_check_branch
      %3199 = sbr.rel (0) target = $region57
    $region56: #{tpu_custom_call.1} parent=1 // pred_region
      %3200 = dma.done [#allocation4], 32
    $region57: #{tpu_custom_call.1} parent=1 // pred_fallthru
      _
    %3201 = vsyncpa [#allocation4], 1

</llo_original>
